<compile_context>
chip_gen: v7x
topology: tpu7x:2x2x1
jax: 0.10.0
libtpu: 0.0.40
codegen_flags: <defaults>
</compile_context>

<pallas_src>
import jax
import jax.numpy as jnp
from jax.experimental import pallas as pl
from jax.experimental.pallas import tpu as pltpu


def ibasic_block_kernel(x_ref, w1_ref, w2_ref, p_ref, o_ref, pad_ref):
    # x_ref: (1, H, W, C) f32      w*_ref: (9C, C) bf16 (im2col layout)
    # p_ref: (8, C) f32 rows = [s1, b1, s2, b2, alpha, s3, b3, pad]
    # pad_ref: VMEM scratch (H+2, W+2, C) bf16 with a 1-pixel zero halo
    H, W, C = x_ref.shape[1], x_ref.shape[2], x_ref.shape[3]
    HW = H * W

    # Zero the halo once.  Only the centre region is written afterwards, so
    # the 1-pixel border stays zero for both convolutions of every grid step.
    @pl.when(pl.program_id(0) == 0)
    def _():
        pad_ref[...] = jnp.zeros_like(pad_ref)

    x = x_ref[0]                                  # (H, W, C) f32
    p = p_ref[...]                                # (8, C) f32, one vreg
    scale1, bias1 = p[0], p[1]
    scale2, bias2 = p[2], p[3]
    alpha = p[4]
    scale3, bias3 = p[5], p[6]

    def conv3x3(y_hwc, w_ref):
        # Activation -> centre of the zero-padded bf16 scratch (single cast).
        pad_ref[pl.ds(1, H), pl.ds(1, W), :] = y_hwc.astype(jnp.bfloat16)
        # 3 aligned slab reads (one per ky); the kx shifts are cheap static
        # value slices handled by the XLU instead of misaligned vector loads.
        taps = []
        for ky in range(3):
            slab = pad_ref[pl.ds(ky, H), :, :]            # (H, W+2, C) bf16
            for kx in range(3):
                taps.append(slab[:, kx:kx + W, :])        # (H, W, C) bf16
        patches = jnp.concatenate(taps, axis=-1)          # (H, W, 9C) bf16
        # W % 8 == 0 here, so collapsing (H, W) onto the sublane axis is free.
        patches = patches.reshape(HW, 9 * C)
        out = jnp.dot(patches, w_ref[...],
                      preferred_element_type=jnp.float32)  # (HW, C) f32
        return out.reshape(H, W, C)

    y = x * scale1 + bias1                     # bn1 (eval-mode, folded)
    y = conv3x3(y, w1_ref)                     # conv1 (3x3, stride 1, pad 1)
    y = y * scale2 + bias2                     # bn2
    y = jnp.where(y >= 0.0, y, alpha * y)      # PReLU (per-channel alpha)
    y = conv3x3(y, w2_ref)                     # conv2 (3x3, stride 1, pad 1)
    y = y * scale3 + bias3 + x                 # bn3 + identity residual
    o_ref[0] = y.astype(o_ref.dtype)


def ibasic_block_forward(x_nchw, w1_im2col, w2_im2col, p):
    N, C, H, W = x_nchw.shape
    x_nhwc = jnp.transpose(x_nchw, (0, 2, 3, 1))          # (N, H, W, C)

    flops = int(N * 2 * (2 * H * W * (9 * C) * C))         # two 3x3 convs
    bytes_accessed = int(2 * N * H * W * C * 4             # x in + out (f32)
                         + 2 * 9 * C * C * 2               # two bf16 weights
                         + 8 * C * 4)                      # folded BN/PReLU

    out_nhwc = pl.pallas_call(
        ibasic_block_kernel,
        out_shape=jax.ShapeDtypeStruct((N, H, W, C), x_nchw.dtype),
        grid_spec=pltpu.PrefetchScalarGridSpec(
            num_scalar_prefetch=0,
            grid=(N,),
            in_specs=[
                pl.BlockSpec((1, H, W, C), lambda n: (n, 0, 0, 0)),
                pl.BlockSpec((9 * C, C), lambda n: (0, 0)),   # grid-invariant
                pl.BlockSpec((9 * C, C), lambda n: (0, 0)),   # grid-invariant
                pl.BlockSpec((8, C), lambda n: (0, 0)),       # folded BN/PReLU
            ],
            out_specs=pl.BlockSpec((1, H, W, C), lambda n: (n, 0, 0, 0)),
            scratch_shapes=[pltpu.VMEM((H + 2, W + 2, C), jnp.bfloat16)],
        ),
        # "arbitrary": the halo scratch is zeroed only on grid step 0 and then
        # reused by every later step, which requires sequential iteration on
        # the core that owns the scratch (perf-neutral vs "parallel" on
        # single-TC chips).
        compiler_params=pltpu.CompilerParams(
            dimension_semantics=("arbitrary",),
            vmem_limit_bytes=32 * 1024 * 1024),
        cost_estimate=pl.CostEstimate(
            flops=flops, transcendentals=0, bytes_accessed=bytes_accessed),
    )(x_nhwc, w1_im2col, w2_im2col, p)

    return jnp.transpose(out_nhwc, (0, 3, 1, 2))          # back to NCHW


if __name__ == "__main__":
    # inplanes == planes (residual must match), stride=1, downsample=None.
    # C = 128 (smallest lane-dense, realistic iresnet stage width), H*W = 256
    # so the MXU M/N dims are filled, per the perf review.
    N, C, H, W = 2, 128, 16, 16
    eps = 1e-5

    key = jax.random.PRNGKey(0)
    ks = jax.random.split(key, 12)
    x = jax.random.normal(ks[0], (N, C, H, W), jnp.float32)

    # conv weights in torch OIHW layout, deterministic init
    w1_t = 0.1 * jax.random.normal(ks[1], (C, C, 3, 3), jnp.float32)
    w2_t = 0.1 * jax.random.normal(ks[2], (C, C, 3, 3), jnp.float32)

    def bn_params(kg, kb, km, kv):
        gamma = 1.0 + 0.1 * jax.random.normal(kg, (C,), jnp.float32)
        beta = 0.1 * jax.random.normal(kb, (C,), jnp.float32)
        mean = 0.1 * jax.random.normal(km, (C,), jnp.float32)
        var = jax.random.uniform(kv, (C,), jnp.float32, minval=0.5, maxval=1.5)
        return gamma, beta, mean, var

    bn1 = bn_params(ks[3], ks[4], ks[5], ks[6])
    bn2 = bn_params(ks[7], ks[8], ks[9], ks[10])
    bn3 = bn_params(*jax.random.split(ks[11], 4))
    alpha = jnp.full((C,), 0.25, jnp.float32)   # nn.PReLU default init

    # fold eval-mode BN into per-channel scale/bias
    def fold(bn):
        g, b, m, v = bn
        s = g / jnp.sqrt(v + eps)
        return s, b - m * s

    s1, b1 = fold(bn1)
    s2, b2 = fold(bn2)
    s3, b3 = fold(bn3)
    p = jnp.stack([s1, b1, s2, b2, alpha, s3, b3, jnp.zeros_like(s1)], axis=0)

    # torch (O, I, Kh, Kw) -> im2col weight (9C, C), row index = (3*ky+kx)*C + cin
    def to_im2col(w_oihw):
        return jnp.transpose(w_oihw, (2, 3, 1, 0)).reshape(9 * C, C).astype(jnp.bfloat16)

    w1_im2col = to_im2col(w1_t)
    w2_im2col = to_im2col(w2_t)

    out = ibasic_block_forward(x, w1_im2col, w2_im2col, p)
    out = jax.block_until_ready(out)

    # pure-JAX reference of the same forward pass for sanity checking
    def ref_bn(t, bn):
        g, b, m, v = bn
        sh = (1, C, 1, 1)
        return (t - m.reshape(sh)) / jnp.sqrt(v.reshape(sh) + eps) * g.reshape(sh) + b.reshape(sh)

    def ref_conv(t, w):
        return jax.lax.conv_general_dilated(
            t, w, (1, 1), ((1, 1), (1, 1)),
            dimension_numbers=("NCHW", "OIHW", "NCHW"),
            precision=jax.lax.Precision.HIGHEST)

    ref = ref_bn(x, bn1)
    ref = ref_conv(ref, w1_t)
    ref = ref_bn(ref, bn2)
    ref = jnp.where(ref >= 0, ref, alpha.reshape(1, C, 1, 1) * ref)
    ref = ref_conv(ref, w2_t)
    ref = ref_bn(ref, bn3)
    ref = ref + x

    err = float(jnp.max(jnp.abs(out - ref)))
    scale = float(jnp.max(jnp.abs(ref)))
    assert out.shape == (N, C, H, W)
    # kernel uses bf16 MXU operands (f32 accumulate) across two chained convs;
    # reference is f32 HIGHEST -> compare with a relative tolerance.
    assert err <= 5e-2 * scale, f"max abs error {err} (ref max {scale})"
    print("KERNEL_OK")
</pallas_src>

<mosaic_0001>
module attributes {stable_mosaic.version = 11 : i64} {
  func.func @ibasic_block_kernel(%arg0: i32, %arg1: memref<1x16x16x128xf32, #tpu.memory_space<vmem>>, %arg2: memref<1152x128xbf16, #tpu.memory_space<vmem>>, %arg3: memref<1152x128xbf16, #tpu.memory_space<vmem>>, %arg4: memref<8x128xf32, #tpu.memory_space<vmem>>, %arg5: memref<1x16x16x128xf32, #tpu.memory_space<vmem>>, %arg6: memref<18x18x128xbf16, #tpu.memory_space<vmem>>) attributes {dimension_semantics = [#tpu.dimension_semantics<arbitrary>], iteration_bounds = array<i64: 2>, scalar_prefetch = 0 : i64, scratch_operands = 1 : i64, tpu.core_type = #tpu.core_type<tc>, window_params = [{transform_indices = @transform_0, window_bounds = array<i64: 1, 16, 16, 128>}, {pipeline_mode = #tpu.pipeline_mode<synchronous>, transform_indices = @transform_1, window_bounds = array<i64: 1152, 128>}, {pipeline_mode = #tpu.pipeline_mode<synchronous>, transform_indices = @transform_2, window_bounds = array<i64: 1152, 128>}, {pipeline_mode = #tpu.pipeline_mode<synchronous>, transform_indices = @transform_3, window_bounds = array<i64: 8, 128>}, {transform_indices = @transform_4, window_bounds = array<i64: 1, 16, 16, 128>}]} {
    %c0_i32 = arith.constant 0 : i32
    %0 = arith.cmpi eq, %arg0, %c0_i32 : i32
    %1 = arith.extui %0 : i1 to i32
    %c0_i32_0 = arith.constant 0 : i32
    %2 = arith.cmpi ne, %1, %c0_i32_0 : i32
    scf.if %2 {
      %cst_38 = arith.constant 0.000000e+00 : bf16
      %86 = vector.broadcast %cst_38 : bf16 to vector<18x18x128xbf16>
      %c0_39 = arith.constant 0 : index
      %c0_40 = arith.constant 0 : index
      %c0_41 = arith.constant 0 : index
      %87 = vector.load %arg6[%c0_39, %c0_40, %c0_41] : memref<18x18x128xbf16, #tpu.memory_space<vmem>>, vector<18x18x128xbf16>
      tpu.vector_store %arg6[%c0_39, %c0_40, %c0_41], %86 {strides = array<i32>} : memref<18x18x128xbf16, #tpu.memory_space<vmem>>, vector<18x18x128xbf16>,
    } else {
    }
    %c0 = arith.constant 0 : index
    %c0_1 = arith.constant 0 : index
    %c0_2 = arith.constant 0 : index
    %c0_3 = arith.constant 0 : index
    %3 = vector.load %arg1[%c0, %c0_1, %c0_2, %c0_3] : memref<1x16x16x128xf32, #tpu.memory_space<vmem>>, vector<1x16x16x128xf32>
    %4 = vector.shape_cast %3 : vector<1x16x16x128xf32> to vector<16x16x128xf32>
    %c0_4 = arith.constant 0 : index
    %c0_5 = arith.constant 0 : index
    %5 = vector.load %arg4[%c0_4, %c0_5] : memref<8x128xf32, #tpu.memory_space<vmem>>, vector<8x128xf32>
    %6 = vector.extract_strided_slice %5 {offsets = [0, 0], sizes = [1, 128], strides = [1, 1]} : vector<8x128xf32> to vector<1x128xf32>
    %7 = vector.shape_cast %6 : vector<1x128xf32> to vector<128xf32>
    %8 = vector.extract_strided_slice %5 {offsets = [1, 0], sizes = [1, 128], strides = [1, 1]} : vector<8x128xf32> to vector<1x128xf32>
    %9 = vector.shape_cast %8 : vector<1x128xf32> to vector<128xf32>
    %10 = vector.extract_strided_slice %5 {offsets = [2, 0], sizes = [1, 128], strides = [1, 1]} : vector<8x128xf32> to vector<1x128xf32>
    %11 = vector.shape_cast %10 : vector<1x128xf32> to vector<128xf32>
    %12 = vector.extract_strided_slice %5 {offsets = [3, 0], sizes = [1, 128], strides = [1, 1]} : vector<8x128xf32> to vector<1x128xf32>
    %13 = vector.shape_cast %12 : vector<1x128xf32> to vector<128xf32>
    %14 = vector.extract_strided_slice %5 {offsets = [4, 0], sizes = [1, 128], strides = [1, 1]} : vector<8x128xf32> to vector<1x128xf32>
    %15 = vector.shape_cast %14 : vector<1x128xf32> to vector<128xf32>
    %16 = vector.extract_strided_slice %5 {offsets = [5, 0], sizes = [1, 128], strides = [1, 1]} : vector<8x128xf32> to vector<1x128xf32>
    %17 = vector.shape_cast %16 : vector<1x128xf32> to vector<128xf32>
    %18 = vector.extract_strided_slice %5 {offsets = [6, 0], sizes = [1, 128], strides = [1, 1]} : vector<8x128xf32> to vector<1x128xf32>
    %19 = vector.shape_cast %18 : vector<1x128xf32> to vector<128xf32>
    %20 = vector.shape_cast %7 : vector<128xf32> to vector<1x1x128xf32>
    %21 = vector.broadcast %20 : vector<1x1x128xf32> to vector<16x16x128xf32>
    %22 = arith.mulf %4, %21 : vector<16x16x128xf32>
    %23 = vector.shape_cast %9 : vector<128xf32> to vector<1x1x128xf32>
    %24 = vector.broadcast %23 : vector<1x1x128xf32> to vector<16x16x128xf32>
    %25 = arith.addf %22, %24 : vector<16x16x128xf32>
    %26 = arith.truncf %25 : vector<16x16x128xf32> to vector<16x16x128xbf16>
    %c1 = arith.constant 1 : index
    %c1_6 = arith.constant 1 : index
    %c0_7 = arith.constant 0 : index
    %27 = vector.load %arg6[%c1, %c1_6, %c0_7] : memref<18x18x128xbf16, #tpu.memory_space<vmem>>, vector<16x16x128xbf16>
    tpu.vector_store %arg6[%c1, %c1_6, %c0_7], %26 {strides = array<i32>} : memref<18x18x128xbf16, #tpu.memory_space<vmem>>, vector<16x16x128xbf16>,
    %c0_8 = arith.constant 0 : index
    %c0_9 = arith.constant 0 : index
    %c0_10 = arith.constant 0 : index
    %28 = vector.load %arg6[%c0_8, %c0_9, %c0_10] : memref<18x18x128xbf16, #tpu.memory_space<vmem>>, vector<16x18x128xbf16>
    %29 = vector.extract_strided_slice %28 {offsets = [0, 0, 0], sizes = [16, 16, 128], strides = [1, 1, 1]} : vector<16x18x128xbf16> to vector<16x16x128xbf16>
    %30 = vector.extract_strided_slice %28 {offsets = [0, 1, 0], sizes = [16, 16, 128], strides = [1, 1, 1]} : vector<16x18x128xbf16> to vector<16x16x128xbf16>
    %31 = vector.extract_strided_slice %28 {offsets = [0, 2, 0], sizes = [16, 16, 128], strides = [1, 1, 1]} : vector<16x18x128xbf16> to vector<16x16x128xbf16>
    %c1_11 = arith.constant 1 : index
    %c0_12 = arith.constant 0 : index
    %c0_13 = arith.constant 0 : index
    %32 = vector.load %arg6[%c1_11, %c0_12, %c0_13] : memref<18x18x128xbf16, #tpu.memory_space<vmem>>, vector<16x18x128xbf16>
    %33 = vector.extract_strided_slice %32 {offsets = [0, 0, 0], sizes = [16, 16, 128], strides = [1, 1, 1]} : vector<16x18x128xbf16> to vector<16x16x128xbf16>
    %34 = vector.extract_strided_slice %32 {offsets = [0, 1, 0], sizes = [16, 16, 128], strides = [1, 1, 1]} : vector<16x18x128xbf16> to vector<16x16x128xbf16>
    %35 = vector.extract_strided_slice %32 {offsets = [0, 2, 0], sizes = [16, 16, 128], strides = [1, 1, 1]} : vector<16x18x128xbf16> to vector<16x16x128xbf16>
    %c2 = arith.constant 2 : index
    %c0_14 = arith.constant 0 : index
    %c0_15 = arith.constant 0 : index
    %36 = vector.load %arg6[%c2, %c0_14, %c0_15] : memref<18x18x128xbf16, #tpu.memory_space<vmem>>, vector<16x18x128xbf16>
    %37 = vector.extract_strided_slice %36 {offsets = [0, 0, 0], sizes = [16, 16, 128], strides = [1, 1, 1]} : vector<16x18x128xbf16> to vector<16x16x128xbf16>
    %38 = vector.extract_strided_slice %36 {offsets = [0, 1, 0], sizes = [16, 16, 128], strides = [1, 1, 1]} : vector<16x18x128xbf16> to vector<16x16x128xbf16>
    %39 = vector.extract_strided_slice %36 {offsets = [0, 2, 0], sizes = [16, 16, 128], strides = [1, 1, 1]} : vector<16x18x128xbf16> to vector<16x16x128xbf16>
    %40 = tpu.concatenate %29, %30, %31, %33, %34, %35, %37, %38, %39 in 2 : vector<16x16x128xbf16>, vector<16x16x128xbf16>, vector<16x16x128xbf16>, vector<16x16x128xbf16>, vector<16x16x128xbf16>, vector<16x16x128xbf16>, vector<16x16x128xbf16>, vector<16x16x128xbf16>, vector<16x16x128xbf16> -> vector<16x16x1152xbf16>
    %41 = vector.shape_cast %40 : vector<16x16x1152xbf16> to vector<256x1152xbf16>
    %c0_16 = arith.constant 0 : index
    %c0_17 = arith.constant 0 : index
    %42 = vector.load %arg2[%c0_16, %c0_17] : memref<1152x128xbf16, #tpu.memory_space<vmem>>, vector<1152x128xbf16>
    %cst = arith.constant dense<0.000000e+00> : vector<256x128xf32>
    %43 = tpu.matmul %41, %42, %cst {dimension_numbers = #tpu.dot_dimension_numbers<[1], [0], [0], [1], [0, 0, 1, 1], [], []>} : vector<256x1152xbf16>, vector<1152x128xbf16>, vector<256x128xf32> -> vector<256x128xf32>
    %44 = vector.shape_cast %43 : vector<256x128xf32> to vector<16x16x128xf32>
    %45 = vector.shape_cast %11 : vector<128xf32> to vector<1x1x128xf32>
    %46 = vector.broadcast %45 : vector<1x1x128xf32> to vector<16x16x128xf32>
    %47 = arith.mulf %44, %46 : vector<16x16x128xf32>
    %48 = vector.shape_cast %13 : vector<128xf32> to vector<1x1x128xf32>
    %49 = vector.broadcast %48 : vector<1x1x128xf32> to vector<16x16x128xf32>
    %50 = arith.addf %47, %49 : vector<16x16x128xf32>
    %cst_18 = arith.constant 0.000000e+00 : f32
    %51 = vector.broadcast %cst_18 : f32 to vector<16x16x128xf32>
    %52 = arith.cmpf oge, %50, %51 : vector<16x16x128xf32>
    %53 = vector.shape_cast %15 : vector<128xf32> to vector<1x1x128xf32>
    %54 = vector.broadcast %53 : vector<1x1x128xf32> to vector<16x16x128xf32>
    %55 = arith.mulf %54, %50 : vector<16x16x128xf32>
    %56 = arith.select %52, %50, %55 : vector<16x16x128xi1>, vector<16x16x128xf32>
    %57 = arith.truncf %56 : vector<16x16x128xf32> to vector<16x16x128xbf16>
    %c1_19 = arith.constant 1 : index
    %c1_20 = arith.constant 1 : index
    %c0_21 = arith.constant 0 : index
    %58 = vector.load %arg6[%c1_19, %c1_20, %c0_21] : memref<18x18x128xbf16, #tpu.memory_space<vmem>>, vector<16x16x128xbf16>
    tpu.vector_store %arg6[%c1_19, %c1_20, %c0_21], %57 {strides = array<i32>} : memref<18x18x128xbf16, #tpu.memory_space<vmem>>, vector<16x16x128xbf16>,
    %c0_22 = arith.constant 0 : index
    %c0_23 = arith.constant 0 : index
    %c0_24 = arith.constant 0 : index
    %59 = vector.load %arg6[%c0_22, %c0_23, %c0_24] : memref<18x18x128xbf16, #tpu.memory_space<vmem>>, vector<16x18x128xbf16>
    %60 = vector.extract_strided_slice %59 {offsets = [0, 0, 0], sizes = [16, 16, 128], strides = [1, 1, 1]} : vector<16x18x128xbf16> to vector<16x16x128xbf16>
    %61 = vector.extract_strided_slice %59 {offsets = [0, 1, 0], sizes = [16, 16, 128], strides = [1, 1, 1]} : vector<16x18x128xbf16> to vector<16x16x128xbf16>
    %62 = vector.extract_strided_slice %59 {offsets = [0, 2, 0], sizes = [16, 16, 128], strides = [1, 1, 1]} : vector<16x18x128xbf16> to vector<16x16x128xbf16>
    %c1_25 = arith.constant 1 : index
    %c0_26 = arith.constant 0 : index
    %c0_27 = arith.constant 0 : index
    %63 = vector.load %arg6[%c1_25, %c0_26, %c0_27] : memref<18x18x128xbf16, #tpu.memory_space<vmem>>, vector<16x18x128xbf16>
    %64 = vector.extract_strided_slice %63 {offsets = [0, 0, 0], sizes = [16, 16, 128], strides = [1, 1, 1]} : vector<16x18x128xbf16> to vector<16x16x128xbf16>
    %65 = vector.extract_strided_slice %63 {offsets = [0, 1, 0], sizes = [16, 16, 128], strides = [1, 1, 1]} : vector<16x18x128xbf16> to vector<16x16x128xbf16>
    %66 = vector.extract_strided_slice %63 {offsets = [0, 2, 0], sizes = [16, 16, 128], strides = [1, 1, 1]} : vector<16x18x128xbf16> to vector<16x16x128xbf16>
    %c2_28 = arith.constant 2 : index
    %c0_29 = arith.constant 0 : index
    %c0_30 = arith.constant 0 : index
    %67 = vector.load %arg6[%c2_28, %c0_29, %c0_30] : memref<18x18x128xbf16, #tpu.memory_space<vmem>>, vector<16x18x128xbf16>
    %68 = vector.extract_strided_slice %67 {offsets = [0, 0, 0], sizes = [16, 16, 128], strides = [1, 1, 1]} : vector<16x18x128xbf16> to vector<16x16x128xbf16>
    %69 = vector.extract_strided_slice %67 {offsets = [0, 1, 0], sizes = [16, 16, 128], strides = [1, 1, 1]} : vector<16x18x128xbf16> to vector<16x16x128xbf16>
    %70 = vector.extract_strided_slice %67 {offsets = [0, 2, 0], sizes = [16, 16, 128], strides = [1, 1, 1]} : vector<16x18x128xbf16> to vector<16x16x128xbf16>
    %71 = tpu.concatenate %60, %61, %62, %64, %65, %66, %68, %69, %70 in 2 : vector<16x16x128xbf16>, vector<16x16x128xbf16>, vector<16x16x128xbf16>, vector<16x16x128xbf16>, vector<16x16x128xbf16>, vector<16x16x128xbf16>, vector<16x16x128xbf16>, vector<16x16x128xbf16>, vector<16x16x128xbf16> -> vector<16x16x1152xbf16>
    %72 = vector.shape_cast %71 : vector<16x16x1152xbf16> to vector<256x1152xbf16>
    %c0_31 = arith.constant 0 : index
    %c0_32 = arith.constant 0 : index
    %73 = vector.load %arg3[%c0_31, %c0_32] : memref<1152x128xbf16, #tpu.memory_space<vmem>>, vector<1152x128xbf16>
    %cst_33 = arith.constant dense<0.000000e+00> : vector<256x128xf32>
    %74 = tpu.matmul %72, %73, %cst_33 {dimension_numbers = #tpu.dot_dimension_numbers<[1], [0], [0], [1], [0, 0, 1, 1], [], []>} : vector<256x1152xbf16>, vector<1152x128xbf16>, vector<256x128xf32> -> vector<256x128xf32>
    %75 = vector.shape_cast %74 : vector<256x128xf32> to vector<16x16x128xf32>
    %76 = vector.shape_cast %17 : vector<128xf32> to vector<1x1x128xf32>
    %77 = vector.broadcast %76 : vector<1x1x128xf32> to vector<16x16x128xf32>
    %78 = arith.mulf %75, %77 : vector<16x16x128xf32>
    %79 = vector.shape_cast %19 : vector<128xf32> to vector<1x1x128xf32>
    %80 = vector.broadcast %79 : vector<1x1x128xf32> to vector<16x16x128xf32>
    %81 = arith.addf %78, %80 : vector<16x16x128xf32>
    %82 = arith.addf %81, %4 : vector<16x16x128xf32>
    %c0_34 = arith.constant 0 : index
    %c0_35 = arith.constant 0 : index
    %c0_36 = arith.constant 0 : index
    %c0_37 = arith.constant 0 : index
    %83 = vector.load %arg5[%c0_34, %c0_35, %c0_36, %c0_37] : memref<1x16x16x128xf32, #tpu.memory_space<vmem>>, vector<1x16x16x128xf32>
    %84 = vector.shape_cast %83 : vector<1x16x16x128xf32> to vector<16x16x128xf32>
    %85 = vector.shape_cast %82 : vector<16x16x128xf32> to vector<1x16x16x128xf32>
    tpu.vector_store %arg5[%c0_34, %c0_35, %c0_36, %c0_37], %85 {strides = array<i32>} : memref<1x16x16x128xf32, #tpu.memory_space<vmem>>, vector<1x16x16x128xf32>,
    return
  }
  func.func @transform_0(%arg0: i32) -> (i32, i32, i32, i32) {
    %c0_i32 = arith.constant 0 : i32
    %c0_i32_0 = arith.constant 0 : i32
    %c0_i32_1 = arith.constant 0 : i32
    %c0_i32_2 = arith.constant 0 : i32
    return %arg0, %c0_i32, %c0_i32_0, %c0_i32_1 : i32, i32, i32, i32
  }
  func.func @transform_1(%arg0: i32) -> (i32, i32) {
    %c0_i32 = arith.constant 0 : i32
    %c0_i32_0 = arith.constant 0 : i32
    %c0_i32_1 = arith.constant 0 : i32
    return %c0_i32, %c0_i32_0 : i32, i32
  }
  func.func @transform_2(%arg0: i32) -> (i32, i32) {
    %c0_i32 = arith.constant 0 : i32
    %c0_i32_0 = arith.constant 0 : i32
    %c0_i32_1 = arith.constant 0 : i32
    return %c0_i32, %c0_i32_0 : i32, i32
  }
  func.func @transform_3(%arg0: i32) -> (i32, i32) {
    %c0_i32 = arith.constant 0 : i32
    %c0_i32_0 = arith.constant 0 : i32
    %c0_i32_1 = arith.constant 0 : i32
    return %c0_i32, %c0_i32_0 : i32, i32
  }
  func.func @transform_4(%arg0: i32) -> (i32, i32, i32, i32) {
    %c0_i32 = arith.constant 0 : i32
    %c0_i32_0 = arith.constant 0 : i32
    %c0_i32_1 = arith.constant 0 : i32
    %c0_i32_2 = arith.constant 0 : i32
    return %arg0, %c0_i32, %c0_i32_0, %c0_i32_1 : i32, i32, i32, i32
  }
}

</mosaic_0001>

<llo_original>
// kernel: tpu_custom_call.1
$region0: #{tpu_custom_call.1}
  #allocation0 [shape = 'u32[]', space=smem, size = 0x4, offset = 0x4, fixed_abs, tag = 'smem constant byte address 0x4 - core index']
  #allocation1 [shape = 'u32[144,128]{1,0:T(1,128)}', space=vmem, size = 0x12000, scoped, tag = 'internal scratch']
  #allocation2 [shape = 'bf16[18,18,128]{2,1,0:T(8,128)(2,1)}', space=vmem, size = 0x1b000, scoped, tag = 'scratch operand']
  %s0 = inlined_call_operand.hbm [shape: f32[2,16,16,128], index: 0, kind: input, shape index: {}]
  %s1 = inlined_call_operand.hbm [shape: bf16[1152,128], index: 1, kind: input, shape index: {}]
  %s2 = inlined_call_operand.hbm [shape: bf16[1152,128], index: 2, kind: input, shape index: {}]
  %s3 = inlined_call_operand.vmem [shape: f32[8,128], index: 3, kind: input, shape index: {}]
  %s4 = inlined_call_operand.hbm [shape: f32[2,16,16,128], index: 4, kind: output, shape index: {}]
  %s5 = sld [smem:[#allocation0]]
  $region65: #{tpu_custom_call.1} parent=0
    _
  %s7 = ssub.s32 1, %s5
  %s8 = scalar_select 0, %s7, %s5
  $region1: #{tpu_custom_call.1} parent=0
    #allocation3 [shape = 'u8[262144]{0}', space=vmem, size = 0x40000, scoped, tag = 'input window, operand 0']
    #allocation4 [shape = 's32[2]{0}', space=sflag, size = 0x8, scoped, tag = 'scoped memory for tpu_custom_call.1']
    #allocation5 [shape = 's32[2]{0}', space=sflag, size = 0x8, scoped, tag = 'scoped memory for tpu_custom_call.1']
    #allocation6 [shape = 'u8[294912]{0}', space=vmem, size = 0x48000, scoped, tag = 'input window, operand 1, single buffered']
    #allocation7 [shape = 's32[1]{0}', space=sflag, size = 0x4, scoped, tag = 'scoped memory for tpu_custom_call.1']
    #allocation8 [shape = 'u8[294912]{0}', space=vmem, size = 0x48000, scoped, tag = 'input window, operand 2, single buffered']
    #allocation9 [shape = 'u8[262144]{0}', space=vmem, size = 0x40000, scoped, tag = 'output window, operand 0']
    %9 = vsyncpa [#allocation4], 0
    %s10 = scalar_lea.sflag [#allocation4], 1
    %11 = vsyncpa %s10, 0
    %12 = vsyncpa [#allocation7], 0
    %13 = vsyncpa [#allocation5], 0
    %s14 = scalar_lea.sflag [#allocation5], 1
    %15 = vsyncpa %s14, 0
    loop: start=0, step=1, limit=4
    $region2: #{tpu_custom_call.1} parent=1 // loop_pre_header
      _
    $region3: #{tpu_custom_call.1} parent=1 // loop_header
      %s17 = sphi 0, %s21
      %p18 = scmp.ge.s32.totalorder %s17, 4
      %s27 = sphi 0, %s29
      %s30 = sphi 0, %s27
      %s31 = sphi 0, %s30
      %s47 = sphi 0, %s31
      %s51 = sphi 0, %s51
      %s53 = sphi 0, %s51
      %s54 = sphi 0, %s53
      %s68 = sphi 0, %s54
      %s72 = sphi 0, %s72
      %s74 = sphi 0, %s72
      %s75 = sphi 0, %s74
      %s89 = sphi 0, %s75
      %s93 = sphi 0, %s93
      %s95 = sphi 0, %s93
      %s96 = sphi 0, %s95
      %s110 = sphi 0, %s96
      %s116 = sphi 0, %s118
      %s119 = sphi 0, %s116
      %s120 = sphi 0, %s119
      %s136 = sphi 0, %s120
    $region4: #{tpu_custom_call.1} parent=1 // loop_header_branch
      %20 = sbr.rel (%p18) target = $region8
    $region5: #{tpu_custom_call.1} parent=1 // loop_body
      %s22 = ssub.s32 %s17, 1
      %s23 = ssub.s32 %s17, 2
      %s24 = sadd.s32 %s17, 1
      %s25 = ssub.s32 %s17, %s24
      %p26 = scmp.eq.s32.totalorder %s25, 0
      %s28 = sadd.s32 %s27, 1
      %s29 = scalar_select %p26, %s27, %s28
      %p32 = pneg %p26
      %p33 = scmp.eq.s32.totalorder %s17, 1
      %p34 = por %p32, %p33
      %p35 = scmp.ne.s32.totalorder %s27, %s30
      %p36 = scmp.eq.s32.totalorder %s17, 0
      %p37 = por %p35, %p36
      %p38 = scmp.ne.s32.totalorder %s27, %s30
      %p39 = scmp.eq.s32.totalorder %s22, 1
      %p40 = por %p38, %p39
      %p41 = scmp.ne.s32.totalorder %s30, %s31
      %p42 = scmp.eq.s32.totalorder %s22, 0
      %p43 = por %p41, %p42
      %p44 = scmp.ne.s32.totalorder %s30, %s31
      %p45 = scmp.eq.s32.totalorder %s23, 1
      %p46 = por %p44, %p45
      %p48 = scmp.ne.s32.totalorder %s31, %s47
      %p49 = scmp.eq.s32.totalorder %s23, 0
      %p50 = por %p48, %p49
      %s52 = sadd.s32 %s51, 1
      %p55 = scmp.eq.s32.totalorder %s17, 1
      %p56 = scmp.ne.s32.totalorder %s51, %s53
      %p57 = scmp.eq.s32.totalorder %s17, 0
      %p58 = por %p56, %p57
      %p59 = scmp.ne.s32.totalorder %s51, %s53
      %p60 = scmp.eq.s32.totalorder %s22, 1
      %p61 = por %p59, %p60
      %p62 = scmp.ne.s32.totalorder %s53, %s54
      %p63 = scmp.eq.s32.totalorder %s22, 0
      %p64 = por %p62, %p63
      %p65 = scmp.ne.s32.totalorder %s53, %s54
      %p66 = scmp.eq.s32.totalorder %s23, 1
      %p67 = por %p65, %p66
      %p69 = scmp.ne.s32.totalorder %s54, %s68
      %p70 = scmp.eq.s32.totalorder %s23, 0
      %p71 = por %p69, %p70
      %s73 = sadd.s32 %s72, 1
      %p76 = scmp.eq.s32.totalorder %s17, 1
      %p77 = scmp.ne.s32.totalorder %s72, %s74
      %p78 = scmp.eq.s32.totalorder %s17, 0
      %p79 = por %p77, %p78
      %p80 = scmp.ne.s32.totalorder %s72, %s74
      %p81 = scmp.eq.s32.totalorder %s22, 1
      %p82 = por %p80, %p81
      %p83 = scmp.ne.s32.totalorder %s74, %s75
      %p84 = scmp.eq.s32.totalorder %s22, 0
      %p85 = por %p83, %p84
      %p86 = scmp.ne.s32.totalorder %s74, %s75
      %p87 = scmp.eq.s32.totalorder %s23, 1
      %p88 = por %p86, %p87
      %p90 = scmp.ne.s32.totalorder %s75, %s89
      %p91 = scmp.eq.s32.totalorder %s23, 0
      %p92 = por %p90, %p91
      %s94 = sadd.s32 %s93, 1
      %p97 = scmp.eq.s32.totalorder %s17, 1
      %p98 = scmp.ne.s32.totalorder %s93, %s95
      %p99 = scmp.eq.s32.totalorder %s17, 0
      %p100 = por %p98, %p99
      %p101 = scmp.ne.s32.totalorder %s93, %s95
      %p102 = scmp.eq.s32.totalorder %s22, 1
      %p103 = por %p101, %p102
      %p104 = scmp.ne.s32.totalorder %s95, %s96
      %p105 = scmp.eq.s32.totalorder %s22, 0
      %p106 = por %p104, %p105
      %p107 = scmp.ne.s32.totalorder %s95, %s96
      %p108 = scmp.eq.s32.totalorder %s23, 1
      %p109 = por %p107, %p108
      %p111 = scmp.ne.s32.totalorder %s96, %s110
      %p112 = scmp.eq.s32.totalorder %s23, 0
      %p113 = por %p111, %p112
      %s114 = ssub.s32 %s17, %s24
      %p115 = scmp.eq.s32.totalorder %s114, 0
      %s117 = sadd.s32 %s116, 1
      %s118 = scalar_select %p115, %s116, %s117
      %p121 = pneg %p115
      %p122 = scmp.eq.s32.totalorder %s17, 1
      %p123 = por %p121, %p122
      %p124 = scmp.ne.s32.totalorder %s116, %s119
      %p125 = scmp.eq.s32.totalorder %s17, 0
      %p126 = por %p124, %p125
      %p127 = scmp.ne.s32.totalorder %s116, %s119
      %p128 = scmp.eq.s32.totalorder %s22, 1
      %p129 = por %p127, %p128
      %p130 = scmp.ne.s32.totalorder %s119, %s120
      %p131 = scmp.eq.s32.totalorder %s22, 0
      %p132 = por %p130, %p131
      %p133 = scmp.ne.s32.totalorder %s119, %s120
      %p134 = scmp.eq.s32.totalorder %s23, 1
      %p135 = por %p133, %p134
      %p137 = scmp.ne.s32.totalorder %s120, %s136
      %p138 = scmp.eq.s32.totalorder %s23, 0
      %p139 = por %p137, %p138
      %p140 = scmp.le.s32.totalorder 1, %s17
      %p141 = scmp.lt.s32.totalorder %s17, 3
      %p142 = pnand %p140, %p141
      %p143 = pneg %p142
      // Predicated region
      $region9: #{tpu_custom_call.1} parent=5 // pred_check
        _
      $region10: #{tpu_custom_call.1} parent=5 // pred_check_branch
        %145 = sbr.rel (%p142) target = $region12
      $region11: #{tpu_custom_call.1} parent=5 // pred_region
        %s146 = ssub.s32 %s17, 1
        // Predicated region
        $region13: #{tpu_custom_call.1} parent=11 // pred_check
          %p147 = pneg %p64
        $region14: #{tpu_custom_call.1} parent=11 // pred_check_branch
          %149 = sbr.rel (%p147) target = $region16
        $region15: #{tpu_custom_call.1} parent=11 // pred_region
          %s151 = ssub.s32 9216, 9216
          %152 = vsyncadd [#allocation7], %s151
          %s153 = sshll.u32 [#allocation6], 4
          %s154 = int_to_ptr.vmem [resolvable:$true] %s153
          %159 = dma.hbm_to_vmem [thread:$0]  %s1, 9216, %s154, [#allocation7], 64, 64, 4
        $region16: #{tpu_custom_call.1} parent=11 // pred_fallthru
          _
        // Predicated region
        $region17: #{tpu_custom_call.1} parent=11 // pred_check
          %p160 = pneg %p85
        $region18: #{tpu_custom_call.1} parent=11 // pred_check_branch
          %162 = sbr.rel (%p160) target = $region20
        $region19: #{tpu_custom_call.1} parent=11 // pred_region
          %s164 = ssub.s32 9216, 9216
          %165 = vsyncadd [#allocation7], %s164
          %s166 = sshll.u32 [#allocation8], 4
          %s167 = int_to_ptr.vmem [resolvable:$true] %s166
          %172 = dma.hbm_to_vmem [thread:$0]  %s2, 9216, %s167, [#allocation7], 64, 64, 4
        $region20: #{tpu_custom_call.1} parent=11 // pred_fallthru
          _
        // Predicated region
        $region21: #{tpu_custom_call.1} parent=11 // pred_check
          %p173 = pneg %p106
        $region22: #{tpu_custom_call.1} parent=11 // pred_check_branch
          %175 = sbr.rel (%p173) target = $region24
        $region23: #{tpu_custom_call.1} parent=11 // pred_region
          _
        $region24: #{tpu_custom_call.1} parent=11 // pred_fallthru
          _
      $region12: #{tpu_custom_call.1} parent=5 // pred_fallthru
        _
      %p176 = scmp.lt.s32.totalorder %s17, 2
      // Predicated region
      $region25: #{tpu_custom_call.1} parent=5 // pred_check
        %p177 = pneg %p176
      $region26: #{tpu_custom_call.1} parent=5 // pred_check_branch
        %179 = sbr.rel (%p177) target = $region28
      $region27: #{tpu_custom_call.1} parent=5 // pred_region
        // Predicated region
        $region29: #{tpu_custom_call.1} parent=27 // pred_check
          %p180 = pneg %p37
        $region30: #{tpu_custom_call.1} parent=27 // pred_check_branch
          %182 = sbr.rel (%p180) target = $region32
        $region31: #{tpu_custom_call.1} parent=27 // pred_region
          %s183 = sand.u32 %s27, 1
          %s184 = scalar_lea.sflag [#allocation4], %s183
          %s185 = sand.u32 %s27, 1
          %s186 = smul.addr %s185, 256
          %s187 = scalar_lea.vmem [#allocation3], %s186
          %s189 = ssub.s32 4096, 4096
          %190 = vsyncadd %s184, %s189
          %s191 = smul.addr %s17, 32
          %s192 = smul.addr %s191, 128
          %s193 = scalar_lea.hbm %s0, %s192
          %s194 = sshll.u32 %s187, 4
          %s195 = int_to_ptr.vmem [resolvable:$true] %s194
          %200 = dma.hbm_to_vmem [thread:$0]  %s193, 4096, %s195, %s184, 128, 128, 8
        $region32: #{tpu_custom_call.1} parent=27 // pred_fallthru
          _
      $region28: #{tpu_custom_call.1} parent=5 // pred_fallthru
        _
      %p201 = scmp.le.s32.totalorder 1, %s17
      %p202 = scmp.lt.s32.totalorder %s17, 3
      %p203 = pnand %p201, %p202
      %p204 = pneg %p203
      // Predicated region
      $region33: #{tpu_custom_call.1} parent=5 // pred_check
        _
      $region34: #{tpu_custom_call.1} parent=5 // pred_check_branch
        %206 = sbr.rel (%p203) target = $region36
      $region35: #{tpu_custom_call.1} parent=5 // pred_region
        %s207 = ssub.s32 %s17, 1
        %s208 = sand.u32 %s30, 1
        %s209 = scalar_lea.sflag [#allocation4], %s208
        %s210 = sand.u32 %s30, 1
        %s211 = smul.addr %s210, 256
        %s212 = scalar_lea.vmem [#allocation3], %s211
        // Predicated region
        $region37: #{tpu_custom_call.1} parent=35 // pred_check
          %p213 = pneg %p43
        $region38: #{tpu_custom_call.1} parent=35 // pred_check_branch
          %215 = sbr.rel (%p213) target = $region40
        $region39: #{tpu_custom_call.1} parent=35 // pred_region
          %216 = dma.done %s209, 4096
        $region40: #{tpu_custom_call.1} parent=35 // pred_fallthru
          _
        // Predicated region
        $region41: #{tpu_custom_call.1} parent=35 // pred_check
          %p217 = pneg %p64
        $region42: #{tpu_custom_call.1} parent=35 // pred_check_branch
          %219 = sbr.rel (%p217) target = $region44
        $region43: #{tpu_custom_call.1} parent=35 // pred_region
          %220 = dma.done [#allocation7], 9216
        $region44: #{tpu_custom_call.1} parent=35 // pred_fallthru
          _
        // Predicated region
        $region45: #{tpu_custom_call.1} parent=35 // pred_check
          %p221 = pneg %p85
        $region46: #{tpu_custom_call.1} parent=35 // pred_check_branch
          %223 = sbr.rel (%p221) target = $region48
        $region47: #{tpu_custom_call.1} parent=35 // pred_region
          %224 = dma.done [#allocation7], 9216
        $region48: #{tpu_custom_call.1} parent=35 // pred_fallthru
          _
        %s225 = sand.u32 %s30, 1
        %s226 = scalar_lea.sflag [#allocation4], %s225
        %s227 = sand.u32 %s30, 1
        %s228 = smul.addr %s227, 256
        %s229 = scalar_lea.vmem [#allocation3], %s228
        %p230 = pneg %p43
        %p231 = pneg %p40
        %p232 = pneg %p64
        %p233 = pneg %p61
        %p234 = pneg %p85
        %p235 = pneg %p82
        %p236 = pneg %p106
        %p237 = pneg %p103
        %p238 = pneg %p132
        %p239 = pneg %p129
        %s240 = sand.u32 %s119, 1
        %s241 = scalar_lea.sflag [#allocation5], %s240
        %s242 = sand.u32 %s119, 1
        %s243 = smul.addr %s242, 256
        %s244 = scalar_lea.vmem [#allocation9], %s243
        %p246 = scmp.eq.s32.totalorder %s22, 0
        // Predicated region
        $region49: #{tpu_custom_call.1} parent=35 // pred_check
          %p247 = pneg %p246
        $region50: #{tpu_custom_call.1} parent=35 // pred_check_branch
          %249 = sbr.rel (%p247) target = $region52
        $region51: #{tpu_custom_call.1} parent=35 // pred_region
          %250 = vst [vmem:[#allocation2] sm:$0xf] 0
          %251 = vst [vmem:[#allocation2 + $0x4] sm:$0xf] 0
          %252 = vst [vmem:[#allocation2 + $0x8] sm:$0x1] 0
          %253 = vst [vmem:[#allocation2 + $0xc] sm:$0xf] 0
          %254 = vst [vmem:[#allocation2 + $0x10] sm:$0xf] 0
          %255 = vst [vmem:[#allocation2 + $0x14] sm:$0x1] 0
          %256 = vst [vmem:[#allocation2 + $0x18] sm:$0xf] 0
          %257 = vst [vmem:[#allocation2 + $0x1c] sm:$0xf] 0
          %258 = vst [vmem:[#allocation2 + $0x20] sm:$0x1] 0
          %259 = vst [vmem:[#allocation2 + $0x24] sm:$0xf] 0
          %260 = vst [vmem:[#allocation2 + $0x28] sm:$0xf] 0
          %261 = vst [vmem:[#allocation2 + $0x2c] sm:$0x1] 0
          %262 = vst [vmem:[#allocation2 + $0x30] sm:$0xf] 0
          %263 = vst [vmem:[#allocation2 + $0x34] sm:$0xf] 0
          %264 = vst [vmem:[#allocation2 + $0x38] sm:$0x1] 0
          %265 = vst [vmem:[#allocation2 + $0x3c] sm:$0xf] 0
          %266 = vst [vmem:[#allocation2 + $0x40] sm:$0xf] 0
          %267 = vst [vmem:[#allocation2 + $0x44] sm:$0x1] 0
          %268 = vst [vmem:[#allocation2 + $0x48] sm:$0xf] 0
          %269 = vst [vmem:[#allocation2 + $0x4c] sm:$0xf] 0
          %270 = vst [vmem:[#allocation2 + $0x50] sm:$0x1] 0
          %271 = vst [vmem:[#allocation2 + $0x54] sm:$0xf] 0
          %272 = vst [vmem:[#allocation2 + $0x58] sm:$0xf] 0
          %273 = vst [vmem:[#allocation2 + $0x5c] sm:$0x1] 0
          %274 = vst [vmem:[#allocation2 + $0x60] sm:$0xf] 0
          %275 = vst [vmem:[#allocation2 + $0x64] sm:$0xf] 0
          %276 = vst [vmem:[#allocation2 + $0x68] sm:$0x1] 0
          %277 = vst [vmem:[#allocation2 + $0x6c] sm:$0xf] 0
          %278 = vst [vmem:[#allocation2 + $0x70] sm:$0xf] 0
          %279 = vst [vmem:[#allocation2 + $0x74] sm:$0x1] 0
          %280 = vst [vmem:[#allocation2 + $0x78] sm:$0xf] 0
          %281 = vst [vmem:[#allocation2 + $0x7c] sm:$0xf] 0
          %282 = vst [vmem:[#allocation2 + $0x80] sm:$0x1] 0
          %283 = vst [vmem:[#allocation2 + $0x84] sm:$0xf] 0
          %284 = vst [vmem:[#allocation2 + $0x88] sm:$0xf] 0
          %285 = vst [vmem:[#allocation2 + $0x8c] sm:$0x1] 0
          %286 = vst [vmem:[#allocation2 + $0x90] sm:$0xf] 0
          %287 = vst [vmem:[#allocation2 + $0x94] sm:$0xf] 0
          %288 = vst [vmem:[#allocation2 + $0x98] sm:$0x1] 0
          %289 = vst [vmem:[#allocation2 + $0x9c] sm:$0xf] 0
          %290 = vst [vmem:[#allocation2 + $0xa0] sm:$0xf] 0
          %291 = vst [vmem:[#allocation2 + $0xa4] sm:$0x1] 0
          %292 = vst [vmem:[#allocation2 + $0xa8] sm:$0xf] 0
          %293 = vst [vmem:[#allocation2 + $0xac] sm:$0xf] 0
          %294 = vst [vmem:[#allocation2 + $0xb0] sm:$0x1] 0
          %295 = vst [vmem:[#allocation2 + $0xb4] sm:$0xf] 0
          %296 = vst [vmem:[#allocation2 + $0xb8] sm:$0xf] 0
          %297 = vst [vmem:[#allocation2 + $0xbc] sm:$0x1] 0
          %298 = vst [vmem:[#allocation2 + $0xc0] sm:$0xf] 0
          %299 = vst [vmem:[#allocation2 + $0xc4] sm:$0xf] 0
          %300 = vst [vmem:[#allocation2 + $0xc8] sm:$0x1] 0
          %301 = vst [vmem:[#allocation2 + $0xcc] sm:$0xf] 0
          %302 = vst [vmem:[#allocation2 + $0xd0] sm:$0xf] 0
          %303 = vst [vmem:[#allocation2 + $0xd4] sm:$0x1] 0
        $region52: #{tpu_custom_call.1} parent=35 // pred_fallthru
          _
        %v304 = vld [vmem:[%s212] sm:$0xff]
        %v305 = vld [vmem:[%s212 + $0x8] sm:$0xff]
        %v306 = vld [vmem:[%s212 + $0x10] sm:$0xff]
        %v307 = vld [vmem:[%s212 + $0x18] sm:$0xff]
        %v308 = vld [vmem:[%s212 + $0x20] sm:$0xff]
        %v309 = vld [vmem:[%s212 + $0x28] sm:$0xff]
        %v310 = vld [vmem:[%s212 + $0x30] sm:$0xff]
        %v311 = vld [vmem:[%s212 + $0x38] sm:$0xff]
        %v312 = vld [vmem:[%s212 + $0x40] sm:$0xff]
        %v313 = vld [vmem:[%s212 + $0x48] sm:$0xff]
        %v314 = vld [vmem:[%s212 + $0x50] sm:$0xff]
        %v315 = vld [vmem:[%s212 + $0x58] sm:$0xff]
        %v316 = vld [vmem:[%s212 + $0x60] sm:$0xff]
        %v317 = vld [vmem:[%s212 + $0x68] sm:$0xff]
        %v318 = vld [vmem:[%s212 + $0x70] sm:$0xff]
        %v319 = vld [vmem:[%s212 + $0x78] sm:$0xff]
        %v320 = vld [vmem:[%s212 + $0x80] sm:$0xff]
        %v321 = vld [vmem:[%s212 + $0x88] sm:$0xff]
        %v322 = vld [vmem:[%s212 + $0x90] sm:$0xff]
        %v323 = vld [vmem:[%s212 + $0x98] sm:$0xff]
        %v324 = vld [vmem:[%s212 + $0xa0] sm:$0xff]
        %v325 = vld [vmem:[%s212 + $0xa8] sm:$0xff]
        %v326 = vld [vmem:[%s212 + $0xb0] sm:$0xff]
        %v327 = vld [vmem:[%s212 + $0xb8] sm:$0xff]
        %v328 = vld [vmem:[%s212 + $0xc0] sm:$0xff]
        %v329 = vld [vmem:[%s212 + $0xc8] sm:$0xff]
        %v330 = vld [vmem:[%s212 + $0xd0] sm:$0xff]
        %v331 = vld [vmem:[%s212 + $0xd8] sm:$0xff]
        %v332 = vld [vmem:[%s212 + $0xe0] sm:$0xff]
        %v333 = vld [vmem:[%s212 + $0xe8] sm:$0xff]
        %v334 = vld [vmem:[%s212 + $0xf0] sm:$0xff]
        %v335 = vld [vmem:[%s212 + $0xf8] sm:$0xff]
        %v336 = vld [vmem:[%s3] sm:$0xff]
        %v337 = vlaneseq
        %v338 = vshrl.u32 %v337, 7
        %v339 = vsub.s32 0, %v338
        %v340 = vrot.slane %v336, %v339
        %v341 = vmul.f32 %v304, %v340
        %v342 = vmul.f32 %v305, %v340
        %v343 = vmul.f32 %v306, %v340
        %v344 = vmul.f32 %v307, %v340
        %v345 = vmul.f32 %v308, %v340
        %v346 = vmul.f32 %v309, %v340
        %v347 = vmul.f32 %v310, %v340
        %v348 = vmul.f32 %v311, %v340
        %v349 = vmul.f32 %v312, %v340
        %v350 = vmul.f32 %v313, %v340
        %v351 = vmul.f32 %v314, %v340
        %v352 = vmul.f32 %v315, %v340
        %v353 = vmul.f32 %v316, %v340
        %v354 = vmul.f32 %v317, %v340
        %v355 = vmul.f32 %v318, %v340
        %v356 = vmul.f32 %v319, %v340
        %v357 = vmul.f32 %v320, %v340
        %v358 = vmul.f32 %v321, %v340
        %v359 = vmul.f32 %v322, %v340
        %v360 = vmul.f32 %v323, %v340
        %v361 = vmul.f32 %v324, %v340
        %v362 = vmul.f32 %v325, %v340
        %v363 = vmul.f32 %v326, %v340
        %v364 = vmul.f32 %v327, %v340
        %v365 = vmul.f32 %v328, %v340
        %v366 = vmul.f32 %v329, %v340
        %v367 = vmul.f32 %v330, %v340
        %v368 = vmul.f32 %v331, %v340
        %v369 = vmul.f32 %v332, %v340
        %v370 = vmul.f32 %v333, %v340
        %v371 = vmul.f32 %v334, %v340
        %v372 = vmul.f32 %v335, %v340
        %v373 = vlaneseq
        %v374 = vshrl.u32 %v373, 7
        %v375 = vsub.s32 1, %v374
        %v376 = vrot.slane %v336, %v375
        %v377 = vadd.f32 %v341, %v376
        %v378 = vadd.f32 %v342, %v376
        %v379 = vadd.f32 %v343, %v376
        %v380 = vadd.f32 %v344, %v376
        %v381 = vadd.f32 %v345, %v376
        %v382 = vadd.f32 %v346, %v376
        %v383 = vadd.f32 %v347, %v376
        %v384 = vadd.f32 %v348, %v376
        %v385 = vadd.f32 %v349, %v376
        %v386 = vadd.f32 %v350, %v376
        %v387 = vadd.f32 %v351, %v376
        %v388 = vadd.f32 %v352, %v376
        %v389 = vadd.f32 %v353, %v376
        %v390 = vadd.f32 %v354, %v376
        %v391 = vadd.f32 %v355, %v376
        %v392 = vadd.f32 %v356, %v376
        %v393 = vadd.f32 %v357, %v376
        %v394 = vadd.f32 %v358, %v376
        %v395 = vadd.f32 %v359, %v376
        %v396 = vadd.f32 %v360, %v376
        %v397 = vadd.f32 %v361, %v376
        %v398 = vadd.f32 %v362, %v376
        %v399 = vadd.f32 %v363, %v376
        %v400 = vadd.f32 %v364, %v376
        %v401 = vadd.f32 %v365, %v376
        %v402 = vadd.f32 %v366, %v376
        %v403 = vadd.f32 %v367, %v376
        %v404 = vadd.f32 %v368, %v376
        %v405 = vadd.f32 %v369, %v376
        %v406 = vadd.f32 %v370, %v376
        %v407 = vadd.f32 %v371, %v376
        %v408 = vadd.f32 %v372, %v376
        %v409 = vpack.c.bf16 %v378, %v377
        %v410 = vpack.c.bf16 %v380, %v379
        %v411 = vpack.c.bf16 %v382, %v381
        %v412 = vpack.c.bf16 %v384, %v383
        %v413 = vpack.c.bf16 %v386, %v385
        %v414 = vpack.c.bf16 %v388, %v387
        %v415 = vpack.c.bf16 %v390, %v389
        %v416 = vpack.c.bf16 %v392, %v391
        %v417 = vpack.c.bf16 %v394, %v393
        %v418 = vpack.c.bf16 %v396, %v395
        %v419 = vpack.c.bf16 %v398, %v397
        %v420 = vpack.c.bf16 %v400, %v399
        %v421 = vpack.c.bf16 %v402, %v401
        %v422 = vpack.c.bf16 %v404, %v403
        %v423 = vpack.c.bf16 %v406, %v405
        %v424 = vpack.c.bf16 %v408, %v407
        %v441 = vunpack.c.l.b16 %v409
        %v442 = vunpack.c.h.b16 %v409
        %v443 = vunpack.c.l.b16 %v410
        %v444 = vunpack.c.h.b16 %v410
        %v445 = vunpack.c.l.b16 %v411
        %v446 = vunpack.c.h.b16 %v411
        %v447 = vunpack.c.l.b16 %v412
        %v448 = vunpack.c.h.b16 %v412
        %v449 = vunpack.c.l.b16 %v413
        %v450 = vunpack.c.h.b16 %v413
        %v451 = vunpack.c.l.b16 %v414
        %v452 = vunpack.c.h.b16 %v414
        %v453 = vunpack.c.l.b16 %v415
        %v454 = vunpack.c.h.b16 %v415
        %v455 = vunpack.c.l.b16 %v416
        %v456 = vunpack.c.h.b16 %v416
        %v457 = vunpack.c.l.b16 %v417
        %v458 = vunpack.c.h.b16 %v417
        %v459 = vunpack.c.l.b16 %v418
        %v460 = vunpack.c.h.b16 %v418
        %v461 = vunpack.c.l.b16 %v419
        %v462 = vunpack.c.h.b16 %v419
        %v463 = vunpack.c.l.b16 %v420
        %v464 = vunpack.c.h.b16 %v420
        %v465 = vunpack.c.l.b16 %v421
        %v466 = vunpack.c.h.b16 %v421
        %v467 = vunpack.c.l.b16 %v422
        %v468 = vunpack.c.h.b16 %v422
        %v469 = vunpack.c.l.b16 %v423
        %v470 = vunpack.c.h.b16 %v423
        %v471 = vunpack.c.l.b16 %v424
        %v472 = vunpack.c.h.b16 %v424
        %v473 = vpack.c.b16 %v441, %v441
        %v474 = vpack.c.b16 %v442, %v442
        %v475 = vpack.c.b16 %v443, %v443
        %v476 = vpack.c.b16 %v444, %v444
        %v477 = vpack.c.b16 %v445, %v445
        %v478 = vpack.c.b16 %v446, %v446
        %v479 = vpack.c.b16 %v447, %v447
        %v480 = vpack.c.b16 %v448, %v448
        %v481 = vpack.c.b16 %v449, %v449
        %v482 = vpack.c.b16 %v450, %v450
        %v483 = vpack.c.b16 %v451, %v451
        %v484 = vpack.c.b16 %v452, %v452
        %v485 = vpack.c.b16 %v453, %v453
        %v486 = vpack.c.b16 %v454, %v454
        %v487 = vpack.c.b16 %v455, %v455
        %v488 = vpack.c.b16 %v456, %v456
        %v489 = vpack.c.b16 %v457, %v457
        %v490 = vpack.c.b16 %v458, %v458
        %v491 = vpack.c.b16 %v459, %v459
        %v492 = vpack.c.b16 %v460, %v460
        %v493 = vpack.c.b16 %v461, %v461
        %v494 = vpack.c.b16 %v462, %v462
        %v495 = vpack.c.b16 %v463, %v463
        %v496 = vpack.c.b16 %v464, %v464
        %v497 = vpack.c.b16 %v465, %v465
        %v498 = vpack.c.b16 %v466, %v466
        %v499 = vpack.c.b16 %v467, %v467
        %v500 = vpack.c.b16 %v468, %v468
        %v501 = vpack.c.b16 %v469, %v469
        %v502 = vpack.c.b16 %v470, %v470
        %v503 = vpack.c.b16 %v471, %v471
        %v504 = vpack.c.b16 %v472, %v472
        %vm505 = vsmask.f32 256
        %vm506 = vsmask.f32 4368
        %vm507 = vmor %vm505, %vm506
        %v509 = vshrl.u32 %v473, 16
        %v511 = vrot.slane %v509, 7
        %v512 = vshll.u32 %v473, 16
        %v514 = vor.u32 %v511, %v512
        %v515 = vrot.slane %v511, 4
        %v517 = vshrl.u32 %v474, 16
        %v519 = vrot.slane %v517, 7
        %v520 = vshll.u32 %v474, 16
        %v522 = vor.u32 %v519, %v520
        %v523 = vsel %vm507, %v515, %v522
        %v524 = vrot.slane %v519, 4
        %v526 = vshrl.u32 %v475, 16
        %v528 = vrot.slane %v526, 7
        %v529 = vshll.u32 %v475, 16
        %v531 = vor.u32 %v528, %v529
        %v532 = vrot.slane %v528, 4
        %v534 = vshrl.u32 %v476, 16
        %v536 = vrot.slane %v534, 7
        %v537 = vshll.u32 %v476, 16
        %v539 = vor.u32 %v536, %v537
        %v540 = vsel %vm507, %v532, %v539
        %v541 = vrot.slane %v536, 4
        %v543 = vshrl.u32 %v477, 16
        %v545 = vrot.slane %v543, 7
        %v546 = vshll.u32 %v477, 16
        %v548 = vor.u32 %v545, %v546
        %v549 = vrot.slane %v545, 4
        %v551 = vshrl.u32 %v478, 16
        %v553 = vrot.slane %v551, 7
        %v554 = vshll.u32 %v478, 16
        %v556 = vor.u32 %v553, %v554
        %v557 = vsel %vm507, %v549, %v556
        %v558 = vrot.slane %v553, 4
        %v560 = vshrl.u32 %v479, 16
        %v562 = vrot.slane %v560, 7
        %v563 = vshll.u32 %v479, 16
        %v565 = vor.u32 %v562, %v563
        %v566 = vrot.slane %v562, 4
        %v568 = vshrl.u32 %v480, 16
        %v570 = vrot.slane %v568, 7
        %v571 = vshll.u32 %v480, 16
        %v573 = vor.u32 %v570, %v571
        %v574 = vsel %vm507, %v566, %v573
        %v575 = vrot.slane %v570, 4
        %v577 = vshrl.u32 %v481, 16
        %v579 = vrot.slane %v577, 7
        %v580 = vshll.u32 %v481, 16
        %v582 = vor.u32 %v579, %v580
        %v583 = vrot.slane %v579, 4
        %v585 = vshrl.u32 %v482, 16
        %v587 = vrot.slane %v585, 7
        %v588 = vshll.u32 %v482, 16
        %v590 = vor.u32 %v587, %v588
        %v591 = vsel %vm507, %v583, %v590
        %v592 = vrot.slane %v587, 4
        %v594 = vshrl.u32 %v483, 16
        %v596 = vrot.slane %v594, 7
        %v597 = vshll.u32 %v483, 16
        %v599 = vor.u32 %v596, %v597
        %v600 = vrot.slane %v596, 4
        %v602 = vshrl.u32 %v484, 16
        %v604 = vrot.slane %v602, 7
        %v605 = vshll.u32 %v484, 16
        %v607 = vor.u32 %v604, %v605
        %v608 = vsel %vm507, %v600, %v607
        %v609 = vrot.slane %v604, 4
        %v611 = vshrl.u32 %v485, 16
        %v613 = vrot.slane %v611, 7
        %v614 = vshll.u32 %v485, 16
        %v616 = vor.u32 %v613, %v614
        %v617 = vrot.slane %v613, 4
        %v619 = vshrl.u32 %v486, 16
        %v621 = vrot.slane %v619, 7
        %v622 = vshll.u32 %v486, 16
        %v624 = vor.u32 %v621, %v622
        %v625 = vsel %vm507, %v617, %v624
        %v626 = vrot.slane %v621, 4
        %v628 = vshrl.u32 %v487, 16
        %v630 = vrot.slane %v628, 7
        %v631 = vshll.u32 %v487, 16
        %v633 = vor.u32 %v630, %v631
        %v634 = vrot.slane %v630, 4
        %v636 = vshrl.u32 %v488, 16
        %v638 = vrot.slane %v636, 7
        %v639 = vshll.u32 %v488, 16
        %v641 = vor.u32 %v638, %v639
        %v642 = vsel %vm507, %v634, %v641
        %v643 = vrot.slane %v638, 4
        %v645 = vshrl.u32 %v489, 16
        %v647 = vrot.slane %v645, 7
        %v648 = vshll.u32 %v489, 16
        %v650 = vor.u32 %v647, %v648
        %v651 = vrot.slane %v647, 4
        %v653 = vshrl.u32 %v490, 16
        %v655 = vrot.slane %v653, 7
        %v656 = vshll.u32 %v490, 16
        %v658 = vor.u32 %v655, %v656
        %v659 = vsel %vm507, %v651, %v658
        %v660 = vrot.slane %v655, 4
        %v662 = vshrl.u32 %v491, 16
        %v664 = vrot.slane %v662, 7
        %v665 = vshll.u32 %v491, 16
        %v667 = vor.u32 %v664, %v665
        %v668 = vrot.slane %v664, 4
        %v670 = vshrl.u32 %v492, 16
        %v672 = vrot.slane %v670, 7
        %v673 = vshll.u32 %v492, 16
        %v675 = vor.u32 %v672, %v673
        %v676 = vsel %vm507, %v668, %v675
        %v677 = vrot.slane %v672, 4
        %v679 = vshrl.u32 %v493, 16
        %v681 = vrot.slane %v679, 7
        %v682 = vshll.u32 %v493, 16
        %v684 = vor.u32 %v681, %v682
        %v685 = vrot.slane %v681, 4
        %v687 = vshrl.u32 %v494, 16
        %v689 = vrot.slane %v687, 7
        %v690 = vshll.u32 %v494, 16
        %v692 = vor.u32 %v689, %v690
        %v693 = vsel %vm507, %v685, %v692
        %v694 = vrot.slane %v689, 4
        %v696 = vshrl.u32 %v495, 16
        %v698 = vrot.slane %v696, 7
        %v699 = vshll.u32 %v495, 16
        %v701 = vor.u32 %v698, %v699
        %v702 = vrot.slane %v698, 4
        %v704 = vshrl.u32 %v496, 16
        %v706 = vrot.slane %v704, 7
        %v707 = vshll.u32 %v496, 16
        %v709 = vor.u32 %v706, %v707
        %v710 = vsel %vm507, %v702, %v709
        %v711 = vrot.slane %v706, 4
        %v713 = vshrl.u32 %v497, 16
        %v715 = vrot.slane %v713, 7
        %v716 = vshll.u32 %v497, 16
        %v718 = vor.u32 %v715, %v716
        %v719 = vrot.slane %v715, 4
        %v721 = vshrl.u32 %v498, 16
        %v723 = vrot.slane %v721, 7
        %v724 = vshll.u32 %v498, 16
        %v726 = vor.u32 %v723, %v724
        %v727 = vsel %vm507, %v719, %v726
        %v728 = vrot.slane %v723, 4
        %v730 = vshrl.u32 %v499, 16
        %v732 = vrot.slane %v730, 7
        %v733 = vshll.u32 %v499, 16
        %v735 = vor.u32 %v732, %v733
        %v736 = vrot.slane %v732, 4
        %v738 = vshrl.u32 %v500, 16
        %v740 = vrot.slane %v738, 7
        %v741 = vshll.u32 %v500, 16
        %v743 = vor.u32 %v740, %v741
        %v744 = vsel %vm507, %v736, %v743
        %v745 = vrot.slane %v740, 4
        %v747 = vshrl.u32 %v501, 16
        %v749 = vrot.slane %v747, 7
        %v750 = vshll.u32 %v501, 16
        %v752 = vor.u32 %v749, %v750
        %v753 = vrot.slane %v749, 4
        %v755 = vshrl.u32 %v502, 16
        %v757 = vrot.slane %v755, 7
        %v758 = vshll.u32 %v502, 16
        %v760 = vor.u32 %v757, %v758
        %v761 = vsel %vm507, %v753, %v760
        %v762 = vrot.slane %v757, 4
        %v764 = vshrl.u32 %v503, 16
        %v766 = vrot.slane %v764, 7
        %v767 = vshll.u32 %v503, 16
        %v769 = vor.u32 %v766, %v767
        %v770 = vrot.slane %v766, 4
        %v772 = vshrl.u32 %v504, 16
        %v774 = vrot.slane %v772, 7
        %v775 = vshll.u32 %v504, 16
        %v777 = vor.u32 %v774, %v775
        %v778 = vsel %vm507, %v770, %v777
        %v779 = vrot.slane %v774, 4
        %s828 = scalar_lea.vmem [#allocation2], 12
        %vm829 = vcmask 1043456
        %vm830 = vsmask.f32 7938
        %vm831 = vmand %vm829, %vm830
        %v832 = vld [vmem:[%s828] sm:$0xf]
        %v833 = vsel %vm831, %v514, %v832
        %834 = vst [vmem:[%s828] sm:$0xf] %v833
        %835 = vst [vmem:[%s828 + $0x4] sm:$0xf] %v523
        %vm836 = vcmask 1040384
        %vm837 = vmand %vm836, %vm505
        %v838 = vld [vmem:[%s828 + $0x8] sm:$0x1]
        %v839 = vsel %vm837, %v524, %v838
        %840 = vst [vmem:[%s828 + $0x8] sm:$0x1] %v839
        %v841 = vld [vmem:[%s828 + $0xc] sm:$0xf]
        %v842 = vsel %vm831, %v531, %v841
        %843 = vst [vmem:[%s828 + $0xc] sm:$0xf] %v842
        %844 = vst [vmem:[%s828 + $0x10] sm:$0xf] %v540
        %v845 = vld [vmem:[%s828 + $0x14] sm:$0x1]
        %v846 = vsel %vm837, %v541, %v845
        %847 = vst [vmem:[%s828 + $0x14] sm:$0x1] %v846
        %v848 = vld [vmem:[%s828 + $0x18] sm:$0xf]
        %v849 = vsel %vm831, %v548, %v848
        %850 = vst [vmem:[%s828 + $0x18] sm:$0xf] %v849
        %851 = vst [vmem:[%s828 + $0x1c] sm:$0xf] %v557
        %v852 = vld [vmem:[%s828 + $0x20] sm:$0x1]
        %v853 = vsel %vm837, %v558, %v852
        %854 = vst [vmem:[%s828 + $0x20] sm:$0x1] %v853
        %v855 = vld [vmem:[%s828 + $0x24] sm:$0xf]
        %v856 = vsel %vm831, %v565, %v855
        %857 = vst [vmem:[%s828 + $0x24] sm:$0xf] %v856
        %858 = vst [vmem:[%s828 + $0x28] sm:$0xf] %v574
        %v859 = vld [vmem:[%s828 + $0x2c] sm:$0x1]
        %v860 = vsel %vm837, %v575, %v859
        %861 = vst [vmem:[%s828 + $0x2c] sm:$0x1] %v860
        %v862 = vld [vmem:[%s828 + $0x30] sm:$0xf]
        %v863 = vsel %vm831, %v582, %v862
        %864 = vst [vmem:[%s828 + $0x30] sm:$0xf] %v863
        %865 = vst [vmem:[%s828 + $0x34] sm:$0xf] %v591
        %v866 = vld [vmem:[%s828 + $0x38] sm:$0x1]
        %v867 = vsel %vm837, %v592, %v866
        %868 = vst [vmem:[%s828 + $0x38] sm:$0x1] %v867
        %v869 = vld [vmem:[%s828 + $0x3c] sm:$0xf]
        %v870 = vsel %vm831, %v599, %v869
        %871 = vst [vmem:[%s828 + $0x3c] sm:$0xf] %v870
        %872 = vst [vmem:[%s828 + $0x40] sm:$0xf] %v608
        %v873 = vld [vmem:[%s828 + $0x44] sm:$0x1]
        %v874 = vsel %vm837, %v609, %v873
        %875 = vst [vmem:[%s828 + $0x44] sm:$0x1] %v874
        %v876 = vld [vmem:[%s828 + $0x48] sm:$0xf]
        %v877 = vsel %vm831, %v616, %v876
        %878 = vst [vmem:[%s828 + $0x48] sm:$0xf] %v877
        %879 = vst [vmem:[%s828 + $0x4c] sm:$0xf] %v625
        %v880 = vld [vmem:[%s828 + $0x50] sm:$0x1]
        %v881 = vsel %vm837, %v626, %v880
        %882 = vst [vmem:[%s828 + $0x50] sm:$0x1] %v881
        %v883 = vld [vmem:[%s828 + $0x54] sm:$0xf]
        %v884 = vsel %vm831, %v633, %v883
        %885 = vst [vmem:[%s828 + $0x54] sm:$0xf] %v884
        %886 = vst [vmem:[%s828 + $0x58] sm:$0xf] %v642
        %v887 = vld [vmem:[%s828 + $0x5c] sm:$0x1]
        %v888 = vsel %vm837, %v643, %v887
        %889 = vst [vmem:[%s828 + $0x5c] sm:$0x1] %v888
        %v890 = vld [vmem:[%s828 + $0x60] sm:$0xf]
        %v891 = vsel %vm831, %v650, %v890
        %892 = vst [vmem:[%s828 + $0x60] sm:$0xf] %v891
        %893 = vst [vmem:[%s828 + $0x64] sm:$0xf] %v659
        %v894 = vld [vmem:[%s828 + $0x68] sm:$0x1]
        %v895 = vsel %vm837, %v660, %v894
        %896 = vst [vmem:[%s828 + $0x68] sm:$0x1] %v895
        %v897 = vld [vmem:[%s828 + $0x6c] sm:$0xf]
        %v898 = vsel %vm831, %v667, %v897
        %899 = vst [vmem:[%s828 + $0x6c] sm:$0xf] %v898
        %900 = vst [vmem:[%s828 + $0x70] sm:$0xf] %v676
        %v901 = vld [vmem:[%s828 + $0x74] sm:$0x1]
        %v902 = vsel %vm837, %v677, %v901
        %903 = vst [vmem:[%s828 + $0x74] sm:$0x1] %v902
        %v904 = vld [vmem:[%s828 + $0x78] sm:$0xf]
        %v905 = vsel %vm831, %v684, %v904
        %906 = vst [vmem:[%s828 + $0x78] sm:$0xf] %v905
        %907 = vst [vmem:[%s828 + $0x7c] sm:$0xf] %v693
        %v908 = vld [vmem:[%s828 + $0x80] sm:$0x1]
        %v909 = vsel %vm837, %v694, %v908
        %910 = vst [vmem:[%s828 + $0x80] sm:$0x1] %v909
        %v911 = vld [vmem:[%s828 + $0x84] sm:$0xf]
        %v912 = vsel %vm831, %v701, %v911
        %913 = vst [vmem:[%s828 + $0x84] sm:$0xf] %v912
        %914 = vst [vmem:[%s828 + $0x88] sm:$0xf] %v710
        %v915 = vld [vmem:[%s828 + $0x8c] sm:$0x1]
        %v916 = vsel %vm837, %v711, %v915
        %917 = vst [vmem:[%s828 + $0x8c] sm:$0x1] %v916
        %v918 = vld [vmem:[%s828 + $0x90] sm:$0xf]
        %v919 = vsel %vm831, %v718, %v918
        %920 = vst [vmem:[%s828 + $0x90] sm:$0xf] %v919
        %921 = vst [vmem:[%s828 + $0x94] sm:$0xf] %v727
        %v922 = vld [vmem:[%s828 + $0x98] sm:$0x1]
        %v923 = vsel %vm837, %v728, %v922
        %924 = vst [vmem:[%s828 + $0x98] sm:$0x1] %v923
        %v925 = vld [vmem:[%s828 + $0x9c] sm:$0xf]
        %v926 = vsel %vm831, %v735, %v925
        %927 = vst [vmem:[%s828 + $0x9c] sm:$0xf] %v926
        %928 = vst [vmem:[%s828 + $0xa0] sm:$0xf] %v744
        %v929 = vld [vmem:[%s828 + $0xa4] sm:$0x1]
        %v930 = vsel %vm837, %v745, %v929
        %931 = vst [vmem:[%s828 + $0xa4] sm:$0x1] %v930
        %v932 = vld [vmem:[%s828 + $0xa8] sm:$0xf]
        %v933 = vsel %vm831, %v752, %v932
        %934 = vst [vmem:[%s828 + $0xa8] sm:$0xf] %v933
        %935 = vst [vmem:[%s828 + $0xac] sm:$0xf] %v761
        %v936 = vld [vmem:[%s828 + $0xb0] sm:$0x1]
        %v937 = vsel %vm837, %v762, %v936
        %938 = vst [vmem:[%s828 + $0xb0] sm:$0x1] %v937
        %v939 = vld [vmem:[%s828 + $0xb4] sm:$0xf]
        %v940 = vsel %vm831, %v769, %v939
        %941 = vst [vmem:[%s828 + $0xb4] sm:$0xf] %v940
        %942 = vst [vmem:[%s828 + $0xb8] sm:$0xf] %v778
        %v943 = vld [vmem:[%s828 + $0xbc] sm:$0x1]
        %v944 = vsel %vm837, %v779, %v943
        %945 = vst [vmem:[%s828 + $0xbc] sm:$0x1] %v944
        %v946 = vld [vmem:[#allocation2] sm:$0xf]
        %v947 = vld [vmem:[#allocation2 + $0x4] sm:$0xf]
        %v948 = vld [vmem:[#allocation2 + $0x8] sm:$0x1]
        %v949 = vld [vmem:[#allocation2 + $0xc] sm:$0xf]
        %v950 = vld [vmem:[#allocation2 + $0x10] sm:$0xf]
        %v951 = vld [vmem:[#allocation2 + $0x14] sm:$0x1]
        %v952 = vld [vmem:[#allocation2 + $0x18] sm:$0xf]
        %v953 = vld [vmem:[#allocation2 + $0x1c] sm:$0xf]
        %v954 = vld [vmem:[#allocation2 + $0x20] sm:$0x1]
        %v955 = vld [vmem:[#allocation2 + $0x24] sm:$0xf]
        %v956 = vld [vmem:[#allocation2 + $0x28] sm:$0xf]
        %v957 = vld [vmem:[#allocation2 + $0x2c] sm:$0x1]
        %v958 = vld [vmem:[#allocation2 + $0x30] sm:$0xf]
        %v959 = vld [vmem:[#allocation2 + $0x34] sm:$0xf]
        %v960 = vld [vmem:[#allocation2 + $0x38] sm:$0x1]
        %v961 = vld [vmem:[#allocation2 + $0x3c] sm:$0xf]
        %v962 = vld [vmem:[#allocation2 + $0x40] sm:$0xf]
        %v963 = vld [vmem:[#allocation2 + $0x44] sm:$0x1]
        %v964 = vld [vmem:[#allocation2 + $0x48] sm:$0xf]
        %v965 = vld [vmem:[#allocation2 + $0x4c] sm:$0xf]
        %v966 = vld [vmem:[#allocation2 + $0x50] sm:$0x1]
        %v967 = vld [vmem:[#allocation2 + $0x54] sm:$0xf]
        %v968 = vld [vmem:[#allocation2 + $0x58] sm:$0xf]
        %v969 = vld [vmem:[#allocation2 + $0x5c] sm:$0x1]
        %v970 = vld [vmem:[#allocation2 + $0x60] sm:$0xf]
        %v971 = vld [vmem:[#allocation2 + $0x64] sm:$0xf]
        %v972 = vld [vmem:[#allocation2 + $0x68] sm:$0x1]
        %v973 = vld [vmem:[#allocation2 + $0x6c] sm:$0xf]
        %v974 = vld [vmem:[#allocation2 + $0x70] sm:$0xf]
        %v975 = vld [vmem:[#allocation2 + $0x74] sm:$0x1]
        %v976 = vld [vmem:[#allocation2 + $0x78] sm:$0xf]
        %v977 = vld [vmem:[#allocation2 + $0x7c] sm:$0xf]
        %v978 = vld [vmem:[#allocation2 + $0x80] sm:$0x1]
        %v979 = vld [vmem:[#allocation2 + $0x84] sm:$0xf]
        %v980 = vld [vmem:[#allocation2 + $0x88] sm:$0xf]
        %v981 = vld [vmem:[#allocation2 + $0x8c] sm:$0x1]
        %v982 = vld [vmem:[#allocation2 + $0x90] sm:$0xf]
        %v983 = vld [vmem:[#allocation2 + $0x94] sm:$0xf]
        %v984 = vld [vmem:[#allocation2 + $0x98] sm:$0x1]
        %v985 = vld [vmem:[#allocation2 + $0x9c] sm:$0xf]
        %v986 = vld [vmem:[#allocation2 + $0xa0] sm:$0xf]
        %v987 = vld [vmem:[#allocation2 + $0xa4] sm:$0x1]
        %v988 = vld [vmem:[#allocation2 + $0xa8] sm:$0xf]
        %v989 = vld [vmem:[#allocation2 + $0xac] sm:$0xf]
        %v990 = vld [vmem:[#allocation2 + $0xb0] sm:$0x1]
        %v991 = vld [vmem:[#allocation2 + $0xb4] sm:$0xf]
        %v992 = vld [vmem:[#allocation2 + $0xb8] sm:$0xf]
        %v993 = vld [vmem:[#allocation2 + $0xbc] sm:$0x1]
        %v994 = vld [vmem:[%s828] sm:$0xf]
        %v995 = vld [vmem:[%s828 + $0x4] sm:$0xf]
        %v996 = vld [vmem:[%s828 + $0x8] sm:$0x1]
        %v997 = vld [vmem:[%s828 + $0xc] sm:$0xf]
        %v998 = vld [vmem:[%s828 + $0x10] sm:$0xf]
        %v999 = vld [vmem:[%s828 + $0x14] sm:$0x1]
        %v1000 = vld [vmem:[%s828 + $0x18] sm:$0xf]
        %v1001 = vld [vmem:[%s828 + $0x1c] sm:$0xf]
        %v1002 = vld [vmem:[%s828 + $0x20] sm:$0x1]
        %v1003 = vld [vmem:[%s828 + $0x24] sm:$0xf]
        %v1004 = vld [vmem:[%s828 + $0x28] sm:$0xf]
        %v1005 = vld [vmem:[%s828 + $0x2c] sm:$0x1]
        %v1006 = vld [vmem:[%s828 + $0x30] sm:$0xf]
        %v1007 = vld [vmem:[%s828 + $0x34] sm:$0xf]
        %v1008 = vld [vmem:[%s828 + $0x38] sm:$0x1]
        %v1009 = vld [vmem:[%s828 + $0x3c] sm:$0xf]
        %v1010 = vld [vmem:[%s828 + $0x40] sm:$0xf]
        %v1011 = vld [vmem:[%s828 + $0x44] sm:$0x1]
        %v1012 = vld [vmem:[%s828 + $0x48] sm:$0xf]
        %v1013 = vld [vmem:[%s828 + $0x4c] sm:$0xf]
        %v1014 = vld [vmem:[%s828 + $0x50] sm:$0x1]
        %v1015 = vld [vmem:[%s828 + $0x54] sm:$0xf]
        %v1016 = vld [vmem:[%s828 + $0x58] sm:$0xf]
        %v1017 = vld [vmem:[%s828 + $0x5c] sm:$0x1]
        %v1018 = vld [vmem:[%s828 + $0x60] sm:$0xf]
        %v1019 = vld [vmem:[%s828 + $0x64] sm:$0xf]
        %v1020 = vld [vmem:[%s828 + $0x68] sm:$0x1]
        %v1021 = vld [vmem:[%s828 + $0x6c] sm:$0xf]
        %v1022 = vld [vmem:[%s828 + $0x70] sm:$0xf]
        %v1023 = vld [vmem:[%s828 + $0x74] sm:$0x1]
        %v1024 = vld [vmem:[%s828 + $0x78] sm:$0xf]
        %v1025 = vld [vmem:[%s828 + $0x7c] sm:$0xf]
        %v1026 = vld [vmem:[%s828 + $0x80] sm:$0x1]
        %v1027 = vld [vmem:[%s828 + $0x84] sm:$0xf]
        %v1028 = vld [vmem:[%s828 + $0x88] sm:$0xf]
        %v1029 = vld [vmem:[%s828 + $0x8c] sm:$0x1]
        %v1030 = vld [vmem:[%s828 + $0x90] sm:$0xf]
        %v1031 = vld [vmem:[%s828 + $0x94] sm:$0xf]
        %v1032 = vld [vmem:[%s828 + $0x98] sm:$0x1]
        %v1033 = vld [vmem:[%s828 + $0x9c] sm:$0xf]
        %v1034 = vld [vmem:[%s828 + $0xa0] sm:$0xf]
        %v1035 = vld [vmem:[%s828 + $0xa4] sm:$0x1]
        %v1036 = vld [vmem:[%s828 + $0xa8] sm:$0xf]
        %v1037 = vld [vmem:[%s828 + $0xac] sm:$0xf]
        %v1038 = vld [vmem:[%s828 + $0xb0] sm:$0x1]
        %v1039 = vld [vmem:[%s828 + $0xb4] sm:$0xf]
        %v1040 = vld [vmem:[%s828 + $0xb8] sm:$0xf]
        %v1041 = vld [vmem:[%s828 + $0xbc] sm:$0x1]
        %s1042 = scalar_lea.vmem [#allocation2], 24
        %v1043 = vld [vmem:[%s1042] sm:$0xf]
        %v1044 = vld [vmem:[%s1042 + $0x4] sm:$0xf]
        %v1045 = vld [vmem:[%s1042 + $0x8] sm:$0x1]
        %v1046 = vld [vmem:[%s1042 + $0xc] sm:$0xf]
        %v1047 = vld [vmem:[%s1042 + $0x10] sm:$0xf]
        %v1048 = vld [vmem:[%s1042 + $0x14] sm:$0x1]
        %v1049 = vld [vmem:[%s1042 + $0x18] sm:$0xf]
        %v1050 = vld [vmem:[%s1042 + $0x1c] sm:$0xf]
        %v1051 = vld [vmem:[%s1042 + $0x20] sm:$0x1]
        %v1052 = vld [vmem:[%s1042 + $0x24] sm:$0xf]
        %v1053 = vld [vmem:[%s1042 + $0x28] sm:$0xf]
        %v1054 = vld [vmem:[%s1042 + $0x2c] sm:$0x1]
        %v1055 = vld [vmem:[%s1042 + $0x30] sm:$0xf]
        %v1056 = vld [vmem:[%s1042 + $0x34] sm:$0xf]
        %v1057 = vld [vmem:[%s1042 + $0x38] sm:$0x1]
        %v1058 = vld [vmem:[%s1042 + $0x3c] sm:$0xf]
        %v1059 = vld [vmem:[%s1042 + $0x40] sm:$0xf]
        %v1060 = vld [vmem:[%s1042 + $0x44] sm:$0x1]
        %v1061 = vld [vmem:[%s1042 + $0x48] sm:$0xf]
        %v1062 = vld [vmem:[%s1042 + $0x4c] sm:$0xf]
        %v1063 = vld [vmem:[%s1042 + $0x50] sm:$0x1]
        %v1064 = vld [vmem:[%s1042 + $0x54] sm:$0xf]
        %v1065 = vld [vmem:[%s1042 + $0x58] sm:$0xf]
        %v1066 = vld [vmem:[%s1042 + $0x5c] sm:$0x1]
        %v1067 = vld [vmem:[%s1042 + $0x60] sm:$0xf]
        %v1068 = vld [vmem:[%s1042 + $0x64] sm:$0xf]
        %v1069 = vld [vmem:[%s1042 + $0x68] sm:$0x1]
        %v1070 = vld [vmem:[%s1042 + $0x6c] sm:$0xf]
        %v1071 = vld [vmem:[%s1042 + $0x70] sm:$0xf]
        %v1072 = vld [vmem:[%s1042 + $0x74] sm:$0x1]
        %v1073 = vld [vmem:[%s1042 + $0x78] sm:$0xf]
        %v1074 = vld [vmem:[%s1042 + $0x7c] sm:$0xf]
        %v1075 = vld [vmem:[%s1042 + $0x80] sm:$0x1]
        %v1076 = vld [vmem:[%s1042 + $0x84] sm:$0xf]
        %v1077 = vld [vmem:[%s1042 + $0x88] sm:$0xf]
        %v1078 = vld [vmem:[%s1042 + $0x8c] sm:$0x1]
        %v1079 = vld [vmem:[%s1042 + $0x90] sm:$0xf]
        %v1080 = vld [vmem:[%s1042 + $0x94] sm:$0xf]
        %v1081 = vld [vmem:[%s1042 + $0x98] sm:$0x1]
        %v1082 = vld [vmem:[%s1042 + $0x9c] sm:$0xf]
        %v1083 = vld [vmem:[%s1042 + $0xa0] sm:$0xf]
        %v1084 = vld [vmem:[%s1042 + $0xa4] sm:$0x1]
        %v1085 = vld [vmem:[%s1042 + $0xa8] sm:$0xf]
        %v1086 = vld [vmem:[%s1042 + $0xac] sm:$0xf]
        %v1087 = vld [vmem:[%s1042 + $0xb0] sm:$0x1]
        %v1088 = vld [vmem:[%s1042 + $0xb4] sm:$0xf]
        %v1089 = vld [vmem:[%s1042 + $0xb8] sm:$0xf]
        %v1090 = vld [vmem:[%s1042 + $0xbc] sm:$0x1]
        %v1123 = vunpack.c.l.b16 %v946
        %v1124 = vunpack.c.l.b16 %v947
        %v1125 = vunpack.c.l.b16 %v949
        %v1126 = vunpack.c.l.b16 %v950
        %v1127 = vunpack.c.l.b16 %v952
        %v1128 = vunpack.c.l.b16 %v953
        %v1129 = vunpack.c.l.b16 %v955
        %v1130 = vunpack.c.l.b16 %v956
        %v1131 = vunpack.c.l.b16 %v958
        %v1132 = vunpack.c.l.b16 %v959
        %v1133 = vunpack.c.l.b16 %v961
        %v1134 = vunpack.c.l.b16 %v962
        %v1135 = vunpack.c.l.b16 %v964
        %v1136 = vunpack.c.l.b16 %v965
        %v1137 = vunpack.c.l.b16 %v967
        %v1138 = vunpack.c.l.b16 %v968
        %v1139 = vunpack.c.l.b16 %v970
        %v1140 = vunpack.c.l.b16 %v971
        %v1141 = vunpack.c.l.b16 %v973
        %v1142 = vunpack.c.l.b16 %v974
        %v1143 = vunpack.c.l.b16 %v976
        %v1144 = vunpack.c.l.b16 %v977
        %v1145 = vunpack.c.l.b16 %v979
        %v1146 = vunpack.c.l.b16 %v980
        %v1147 = vunpack.c.l.b16 %v982
        %v1148 = vunpack.c.l.b16 %v983
        %v1149 = vunpack.c.l.b16 %v985
        %v1150 = vunpack.c.l.b16 %v986
        %v1151 = vunpack.c.l.b16 %v988
        %v1152 = vunpack.c.l.b16 %v989
        %v1153 = vunpack.c.l.b16 %v991
        %v1154 = vunpack.c.l.b16 %v992
        %v1155 = vpack.c.b16 %v1124, %v1123
        %v1156 = vpack.c.b16 %v1126, %v1125
        %v1157 = vpack.c.b16 %v1128, %v1127
        %v1158 = vpack.c.b16 %v1130, %v1129
        %v1159 = vpack.c.b16 %v1132, %v1131
        %v1160 = vpack.c.b16 %v1134, %v1133
        %v1161 = vpack.c.b16 %v1136, %v1135
        %v1162 = vpack.c.b16 %v1138, %v1137
        %v1163 = vpack.c.b16 %v1140, %v1139
        %v1164 = vpack.c.b16 %v1142, %v1141
        %v1165 = vpack.c.b16 %v1144, %v1143
        %v1166 = vpack.c.b16 %v1146, %v1145
        %v1167 = vpack.c.b16 %v1148, %v1147
        %v1168 = vpack.c.b16 %v1150, %v1149
        %v1169 = vpack.c.b16 %v1152, %v1151
        %v1170 = vpack.c.b16 %v1154, %v1153
        %v1203 = vunpack.c.l.b16 %v948
        %v1204 = vunpack.c.l.b16 %v951
        %v1205 = vunpack.c.l.b16 %v954
        %v1206 = vunpack.c.l.b16 %v957
        %v1207 = vunpack.c.l.b16 %v960
        %v1208 = vunpack.c.l.b16 %v963
        %v1209 = vunpack.c.l.b16 %v966
        %v1210 = vunpack.c.l.b16 %v969
        %v1211 = vunpack.c.l.b16 %v972
        %v1212 = vunpack.c.l.b16 %v975
        %v1213 = vunpack.c.l.b16 %v978
        %v1214 = vunpack.c.l.b16 %v981
        %v1215 = vunpack.c.l.b16 %v984
        %v1216 = vunpack.c.l.b16 %v987
        %v1217 = vunpack.c.l.b16 %v990
        %v1218 = vunpack.c.l.b16 %v993
        %v1219 = vpack.c.b16 %v1203, %v1203
        %v1220 = vpack.c.b16 %v1204, %v1204
        %v1221 = vpack.c.b16 %v1205, %v1205
        %v1222 = vpack.c.b16 %v1206, %v1206
        %v1223 = vpack.c.b16 %v1207, %v1207
        %v1224 = vpack.c.b16 %v1208, %v1208
        %v1225 = vpack.c.b16 %v1209, %v1209
        %v1226 = vpack.c.b16 %v1210, %v1210
        %v1227 = vpack.c.b16 %v1211, %v1211
        %v1228 = vpack.c.b16 %v1212, %v1212
        %v1229 = vpack.c.b16 %v1213, %v1213
        %v1230 = vpack.c.b16 %v1214, %v1214
        %v1231 = vpack.c.b16 %v1215, %v1215
        %v1232 = vpack.c.b16 %v1216, %v1216
        %v1233 = vpack.c.b16 %v1217, %v1217
        %v1234 = vpack.c.b16 %v1218, %v1218
        %vm1235 = vsmask.f32 7424
        %v1237 = vshrl.u32 %v1155, 16
        %v1239 = vshll.u32 %v1155, 16
        %v1241 = vrot.slane %v1239, 1
        %v1242 = vor.u32 %v1237, %v1241
        %v1244 = vshll.u32 %v1219, 16
        %v1246 = vrot.slane %v1244, 1
        %v1247 = vsel %vm1235, %v1242, %v1246
        %v1249 = vshrl.u32 %v1156, 16
        %v1251 = vshll.u32 %v1156, 16
        %v1253 = vrot.slane %v1251, 1
        %v1254 = vor.u32 %v1249, %v1253
        %v1256 = vshll.u32 %v1220, 16
        %v1258 = vrot.slane %v1256, 1
        %v1259 = vsel %vm1235, %v1254, %v1258
        %v1261 = vshrl.u32 %v1157, 16
        %v1263 = vshll.u32 %v1157, 16
        %v1265 = vrot.slane %v1263, 1
        %v1266 = vor.u32 %v1261, %v1265
        %v1268 = vshll.u32 %v1221, 16
        %v1270 = vrot.slane %v1268, 1
        %v1271 = vsel %vm1235, %v1266, %v1270
        %v1273 = vshrl.u32 %v1158, 16
        %v1275 = vshll.u32 %v1158, 16
        %v1277 = vrot.slane %v1275, 1
        %v1278 = vor.u32 %v1273, %v1277
        %v1280 = vshll.u32 %v1222, 16
        %v1282 = vrot.slane %v1280, 1
        %v1283 = vsel %vm1235, %v1278, %v1282
        %v1285 = vshrl.u32 %v1159, 16
        %v1287 = vshll.u32 %v1159, 16
        %v1289 = vrot.slane %v1287, 1
        %v1290 = vor.u32 %v1285, %v1289
        %v1292 = vshll.u32 %v1223, 16
        %v1294 = vrot.slane %v1292, 1
        %v1295 = vsel %vm1235, %v1290, %v1294
        %v1297 = vshrl.u32 %v1160, 16
        %v1299 = vshll.u32 %v1160, 16
        %v1301 = vrot.slane %v1299, 1
        %v1302 = vor.u32 %v1297, %v1301
        %v1304 = vshll.u32 %v1224, 16
        %v1306 = vrot.slane %v1304, 1
        %v1307 = vsel %vm1235, %v1302, %v1306
        %v1309 = vshrl.u32 %v1161, 16
        %v1311 = vshll.u32 %v1161, 16
        %v1313 = vrot.slane %v1311, 1
        %v1314 = vor.u32 %v1309, %v1313
        %v1316 = vshll.u32 %v1225, 16
        %v1318 = vrot.slane %v1316, 1
        %v1319 = vsel %vm1235, %v1314, %v1318
        %v1321 = vshrl.u32 %v1162, 16
        %v1323 = vshll.u32 %v1162, 16
        %v1325 = vrot.slane %v1323, 1
        %v1326 = vor.u32 %v1321, %v1325
        %v1328 = vshll.u32 %v1226, 16
        %v1330 = vrot.slane %v1328, 1
        %v1331 = vsel %vm1235, %v1326, %v1330
        %v1333 = vshrl.u32 %v1163, 16
        %v1335 = vshll.u32 %v1163, 16
        %v1337 = vrot.slane %v1335, 1
        %v1338 = vor.u32 %v1333, %v1337
        %v1340 = vshll.u32 %v1227, 16
        %v1342 = vrot.slane %v1340, 1
        %v1343 = vsel %vm1235, %v1338, %v1342
        %v1345 = vshrl.u32 %v1164, 16
        %v1347 = vshll.u32 %v1164, 16
        %v1349 = vrot.slane %v1347, 1
        %v1350 = vor.u32 %v1345, %v1349
        %v1352 = vshll.u32 %v1228, 16
        %v1354 = vrot.slane %v1352, 1
        %v1355 = vsel %vm1235, %v1350, %v1354
        %v1357 = vshrl.u32 %v1165, 16
        %v1359 = vshll.u32 %v1165, 16
        %v1361 = vrot.slane %v1359, 1
        %v1362 = vor.u32 %v1357, %v1361
        %v1364 = vshll.u32 %v1229, 16
        %v1366 = vrot.slane %v1364, 1
        %v1367 = vsel %vm1235, %v1362, %v1366
        %v1369 = vshrl.u32 %v1166, 16
        %v1371 = vshll.u32 %v1166, 16
        %v1373 = vrot.slane %v1371, 1
        %v1374 = vor.u32 %v1369, %v1373
        %v1376 = vshll.u32 %v1230, 16
        %v1378 = vrot.slane %v1376, 1
        %v1379 = vsel %vm1235, %v1374, %v1378
        %v1381 = vshrl.u32 %v1167, 16
        %v1383 = vshll.u32 %v1167, 16
        %v1385 = vrot.slane %v1383, 1
        %v1386 = vor.u32 %v1381, %v1385
        %v1388 = vshll.u32 %v1231, 16
        %v1390 = vrot.slane %v1388, 1
        %v1391 = vsel %vm1235, %v1386, %v1390
        %v1393 = vshrl.u32 %v1168, 16
        %v1395 = vshll.u32 %v1168, 16
        %v1397 = vrot.slane %v1395, 1
        %v1398 = vor.u32 %v1393, %v1397
        %v1400 = vshll.u32 %v1232, 16
        %v1402 = vrot.slane %v1400, 1
        %v1403 = vsel %vm1235, %v1398, %v1402
        %v1405 = vshrl.u32 %v1169, 16
        %v1407 = vshll.u32 %v1169, 16
        %v1409 = vrot.slane %v1407, 1
        %v1410 = vor.u32 %v1405, %v1409
        %v1412 = vshll.u32 %v1233, 16
        %v1414 = vrot.slane %v1412, 1
        %v1415 = vsel %vm1235, %v1410, %v1414
        %v1417 = vshrl.u32 %v1170, 16
        %v1419 = vshll.u32 %v1170, 16
        %v1421 = vrot.slane %v1419, 1
        %v1422 = vor.u32 %v1417, %v1421
        %v1424 = vshll.u32 %v1234, 16
        %v1426 = vrot.slane %v1424, 1
        %v1427 = vsel %vm1235, %v1422, %v1426
        %vm1444 = vcmask 1046528
        %v1445 = vrot.slane %v1155, 1
        %v1446 = vrot.slane %v1219, 1
        %v1447 = vsel %vm1444, %v1445, %v1446
        %v1448 = vrot.slane %v1156, 1
        %v1449 = vrot.slane %v1220, 1
        %v1450 = vsel %vm1444, %v1448, %v1449
        %v1451 = vrot.slane %v1157, 1
        %v1452 = vrot.slane %v1221, 1
        %v1453 = vsel %vm1444, %v1451, %v1452
        %v1454 = vrot.slane %v1158, 1
        %v1455 = vrot.slane %v1222, 1
        %v1456 = vsel %vm1444, %v1454, %v1455
        %v1457 = vrot.slane %v1159, 1
        %v1458 = vrot.slane %v1223, 1
        %v1459 = vsel %vm1444, %v1457, %v1458
        %v1460 = vrot.slane %v1160, 1
        %v1461 = vrot.slane %v1224, 1
        %v1462 = vsel %vm1444, %v1460, %v1461
        %v1463 = vrot.slane %v1161, 1
        %v1464 = vrot.slane %v1225, 1
        %v1465 = vsel %vm1444, %v1463, %v1464
        %v1466 = vrot.slane %v1162, 1
        %v1467 = vrot.slane %v1226, 1
        %v1468 = vsel %vm1444, %v1466, %v1467
        %v1469 = vrot.slane %v1163, 1
        %v1470 = vrot.slane %v1227, 1
        %v1471 = vsel %vm1444, %v1469, %v1470
        %v1472 = vrot.slane %v1164, 1
        %v1473 = vrot.slane %v1228, 1
        %v1474 = vsel %vm1444, %v1472, %v1473
        %v1475 = vrot.slane %v1165, 1
        %v1476 = vrot.slane %v1229, 1
        %v1477 = vsel %vm1444, %v1475, %v1476
        %v1478 = vrot.slane %v1166, 1
        %v1479 = vrot.slane %v1230, 1
        %v1480 = vsel %vm1444, %v1478, %v1479
        %v1481 = vrot.slane %v1167, 1
        %v1482 = vrot.slane %v1231, 1
        %v1483 = vsel %vm1444, %v1481, %v1482
        %v1484 = vrot.slane %v1168, 1
        %v1485 = vrot.slane %v1232, 1
        %v1486 = vsel %vm1444, %v1484, %v1485
        %v1487 = vrot.slane %v1169, 1
        %v1488 = vrot.slane %v1233, 1
        %v1489 = vsel %vm1444, %v1487, %v1488
        %v1490 = vrot.slane %v1170, 1
        %v1491 = vrot.slane %v1234, 1
        %v1492 = vsel %vm1444, %v1490, %v1491
        %v1541 = vunpack.c.l.b16 %v994
        %v1542 = vunpack.c.l.b16 %v995
        %v1543 = vunpack.c.l.b16 %v997
        %v1544 = vunpack.c.l.b16 %v998
        %v1545 = vunpack.c.l.b16 %v1000
        %v1546 = vunpack.c.l.b16 %v1001
        %v1547 = vunpack.c.l.b16 %v1003
        %v1548 = vunpack.c.l.b16 %v1004
        %v1549 = vunpack.c.l.b16 %v1006
        %v1550 = vunpack.c.l.b16 %v1007
        %v1551 = vunpack.c.l.b16 %v1009
        %v1552 = vunpack.c.l.b16 %v1010
        %v1553 = vunpack.c.l.b16 %v1012
        %v1554 = vunpack.c.l.b16 %v1013
        %v1555 = vunpack.c.l.b16 %v1015
        %v1556 = vunpack.c.l.b16 %v1016
        %v1557 = vunpack.c.l.b16 %v1018
        %v1558 = vunpack.c.l.b16 %v1019
        %v1559 = vunpack.c.l.b16 %v1021
        %v1560 = vunpack.c.l.b16 %v1022
        %v1561 = vunpack.c.l.b16 %v1024
        %v1562 = vunpack.c.l.b16 %v1025
        %v1563 = vunpack.c.l.b16 %v1027
        %v1564 = vunpack.c.l.b16 %v1028
        %v1565 = vunpack.c.l.b16 %v1030
        %v1566 = vunpack.c.l.b16 %v1031
        %v1567 = vunpack.c.l.b16 %v1033
        %v1568 = vunpack.c.l.b16 %v1034
        %v1569 = vunpack.c.l.b16 %v1036
        %v1570 = vunpack.c.l.b16 %v1037
        %v1571 = vunpack.c.l.b16 %v1039
        %v1572 = vunpack.c.l.b16 %v1040
        %v1573 = vpack.c.b16 %v1542, %v1541
        %v1574 = vpack.c.b16 %v1544, %v1543
        %v1575 = vpack.c.b16 %v1546, %v1545
        %v1576 = vpack.c.b16 %v1548, %v1547
        %v1577 = vpack.c.b16 %v1550, %v1549
        %v1578 = vpack.c.b16 %v1552, %v1551
        %v1579 = vpack.c.b16 %v1554, %v1553
        %v1580 = vpack.c.b16 %v1556, %v1555
        %v1581 = vpack.c.b16 %v1558, %v1557
        %v1582 = vpack.c.b16 %v1560, %v1559
        %v1583 = vpack.c.b16 %v1562, %v1561
        %v1584 = vpack.c.b16 %v1564, %v1563
        %v1585 = vpack.c.b16 %v1566, %v1565
        %v1586 = vpack.c.b16 %v1568, %v1567
        %v1587 = vpack.c.b16 %v1570, %v1569
        %v1588 = vpack.c.b16 %v1572, %v1571
        %v1621 = vunpack.c.l.b16 %v996
        %v1622 = vunpack.c.l.b16 %v999
        %v1623 = vunpack.c.l.b16 %v1002
        %v1624 = vunpack.c.l.b16 %v1005
        %v1625 = vunpack.c.l.b16 %v1008
        %v1626 = vunpack.c.l.b16 %v1011
        %v1627 = vunpack.c.l.b16 %v1014
        %v1628 = vunpack.c.l.b16 %v1017
        %v1629 = vunpack.c.l.b16 %v1020
        %v1630 = vunpack.c.l.b16 %v1023
        %v1631 = vunpack.c.l.b16 %v1026
        %v1632 = vunpack.c.l.b16 %v1029
        %v1633 = vunpack.c.l.b16 %v1032
        %v1634 = vunpack.c.l.b16 %v1035
        %v1635 = vunpack.c.l.b16 %v1038
        %v1636 = vunpack.c.l.b16 %v1041
        %v1637 = vpack.c.b16 %v1621, %v1621
        %v1638 = vpack.c.b16 %v1622, %v1622
        %v1639 = vpack.c.b16 %v1623, %v1623
        %v1640 = vpack.c.b16 %v1624, %v1624
        %v1641 = vpack.c.b16 %v1625, %v1625
        %v1642 = vpack.c.b16 %v1626, %v1626
        %v1643 = vpack.c.b16 %v1627, %v1627
        %v1644 = vpack.c.b16 %v1628, %v1628
        %v1645 = vpack.c.b16 %v1629, %v1629
        %v1646 = vpack.c.b16 %v1630, %v1630
        %v1647 = vpack.c.b16 %v1631, %v1631
        %v1648 = vpack.c.b16 %v1632, %v1632
        %v1649 = vpack.c.b16 %v1633, %v1633
        %v1650 = vpack.c.b16 %v1634, %v1634
        %v1651 = vpack.c.b16 %v1635, %v1635
        %v1652 = vpack.c.b16 %v1636, %v1636
        %v1654 = vshrl.u32 %v1573, 16
        %v1656 = vshll.u32 %v1573, 16
        %v1658 = vrot.slane %v1656, 1
        %v1659 = vor.u32 %v1654, %v1658
        %v1661 = vshll.u32 %v1637, 16
        %v1663 = vrot.slane %v1661, 1
        %v1664 = vsel %vm1235, %v1659, %v1663
        %v1666 = vshrl.u32 %v1574, 16
        %v1668 = vshll.u32 %v1574, 16
        %v1670 = vrot.slane %v1668, 1
        %v1671 = vor.u32 %v1666, %v1670
        %v1673 = vshll.u32 %v1638, 16
        %v1675 = vrot.slane %v1673, 1
        %v1676 = vsel %vm1235, %v1671, %v1675
        %v1678 = vshrl.u32 %v1575, 16
        %v1680 = vshll.u32 %v1575, 16
        %v1682 = vrot.slane %v1680, 1
        %v1683 = vor.u32 %v1678, %v1682
        %v1685 = vshll.u32 %v1639, 16
        %v1687 = vrot.slane %v1685, 1
        %v1688 = vsel %vm1235, %v1683, %v1687
        %v1690 = vshrl.u32 %v1576, 16
        %v1692 = vshll.u32 %v1576, 16
        %v1694 = vrot.slane %v1692, 1
        %v1695 = vor.u32 %v1690, %v1694
        %v1697 = vshll.u32 %v1640, 16
        %v1699 = vrot.slane %v1697, 1
        %v1700 = vsel %vm1235, %v1695, %v1699
        %v1702 = vshrl.u32 %v1577, 16
        %v1704 = vshll.u32 %v1577, 16
        %v1706 = vrot.slane %v1704, 1
        %v1707 = vor.u32 %v1702, %v1706
        %v1709 = vshll.u32 %v1641, 16
        %v1711 = vrot.slane %v1709, 1
        %v1712 = vsel %vm1235, %v1707, %v1711
        %v1714 = vshrl.u32 %v1578, 16
        %v1716 = vshll.u32 %v1578, 16
        %v1718 = vrot.slane %v1716, 1
        %v1719 = vor.u32 %v1714, %v1718
        %v1721 = vshll.u32 %v1642, 16
        %v1723 = vrot.slane %v1721, 1
        %v1724 = vsel %vm1235, %v1719, %v1723
        %v1726 = vshrl.u32 %v1579, 16
        %v1728 = vshll.u32 %v1579, 16
        %v1730 = vrot.slane %v1728, 1
        %v1731 = vor.u32 %v1726, %v1730
        %v1733 = vshll.u32 %v1643, 16
        %v1735 = vrot.slane %v1733, 1
        %v1736 = vsel %vm1235, %v1731, %v1735
        %v1738 = vshrl.u32 %v1580, 16
        %v1740 = vshll.u32 %v1580, 16
        %v1742 = vrot.slane %v1740, 1
        %v1743 = vor.u32 %v1738, %v1742
        %v1745 = vshll.u32 %v1644, 16
        %v1747 = vrot.slane %v1745, 1
        %v1748 = vsel %vm1235, %v1743, %v1747
        %v1750 = vshrl.u32 %v1581, 16
        %v1752 = vshll.u32 %v1581, 16
        %v1754 = vrot.slane %v1752, 1
        %v1755 = vor.u32 %v1750, %v1754
        %v1757 = vshll.u32 %v1645, 16
        %v1759 = vrot.slane %v1757, 1
        %v1760 = vsel %vm1235, %v1755, %v1759
        %v1762 = vshrl.u32 %v1582, 16
        %v1764 = vshll.u32 %v1582, 16
        %v1766 = vrot.slane %v1764, 1
        %v1767 = vor.u32 %v1762, %v1766
        %v1769 = vshll.u32 %v1646, 16
        %v1771 = vrot.slane %v1769, 1
        %v1772 = vsel %vm1235, %v1767, %v1771
        %v1774 = vshrl.u32 %v1583, 16
        %v1776 = vshll.u32 %v1583, 16
        %v1778 = vrot.slane %v1776, 1
        %v1779 = vor.u32 %v1774, %v1778
        %v1781 = vshll.u32 %v1647, 16
        %v1783 = vrot.slane %v1781, 1
        %v1784 = vsel %vm1235, %v1779, %v1783
        %v1786 = vshrl.u32 %v1584, 16
        %v1788 = vshll.u32 %v1584, 16
        %v1790 = vrot.slane %v1788, 1
        %v1791 = vor.u32 %v1786, %v1790
        %v1793 = vshll.u32 %v1648, 16
        %v1795 = vrot.slane %v1793, 1
        %v1796 = vsel %vm1235, %v1791, %v1795
        %v1798 = vshrl.u32 %v1585, 16
        %v1800 = vshll.u32 %v1585, 16
        %v1802 = vrot.slane %v1800, 1
        %v1803 = vor.u32 %v1798, %v1802
        %v1805 = vshll.u32 %v1649, 16
        %v1807 = vrot.slane %v1805, 1
        %v1808 = vsel %vm1235, %v1803, %v1807
        %v1810 = vshrl.u32 %v1586, 16
        %v1812 = vshll.u32 %v1586, 16
        %v1814 = vrot.slane %v1812, 1
        %v1815 = vor.u32 %v1810, %v1814
        %v1817 = vshll.u32 %v1650, 16
        %v1819 = vrot.slane %v1817, 1
        %v1820 = vsel %vm1235, %v1815, %v1819
        %v1822 = vshrl.u32 %v1587, 16
        %v1824 = vshll.u32 %v1587, 16
        %v1826 = vrot.slane %v1824, 1
        %v1827 = vor.u32 %v1822, %v1826
        %v1829 = vshll.u32 %v1651, 16
        %v1831 = vrot.slane %v1829, 1
        %v1832 = vsel %vm1235, %v1827, %v1831
        %v1834 = vshrl.u32 %v1588, 16
        %v1836 = vshll.u32 %v1588, 16
        %v1838 = vrot.slane %v1836, 1
        %v1839 = vor.u32 %v1834, %v1838
        %v1841 = vshll.u32 %v1652, 16
        %v1843 = vrot.slane %v1841, 1
        %v1844 = vsel %vm1235, %v1839, %v1843
        %v1861 = vrot.slane %v1573, 1
        %v1862 = vrot.slane %v1637, 1
        %v1863 = vsel %vm1444, %v1861, %v1862
        %v1864 = vrot.slane %v1574, 1
        %v1865 = vrot.slane %v1638, 1
        %v1866 = vsel %vm1444, %v1864, %v1865
        %v1867 = vrot.slane %v1575, 1
        %v1868 = vrot.slane %v1639, 1
        %v1869 = vsel %vm1444, %v1867, %v1868
        %v1870 = vrot.slane %v1576, 1
        %v1871 = vrot.slane %v1640, 1
        %v1872 = vsel %vm1444, %v1870, %v1871
        %v1873 = vrot.slane %v1577, 1
        %v1874 = vrot.slane %v1641, 1
        %v1875 = vsel %vm1444, %v1873, %v1874
        %v1876 = vrot.slane %v1578, 1
        %v1877 = vrot.slane %v1642, 1
        %v1878 = vsel %vm1444, %v1876, %v1877
        %v1879 = vrot.slane %v1579, 1
        %v1880 = vrot.slane %v1643, 1
        %v1881 = vsel %vm1444, %v1879, %v1880
        %v1882 = vrot.slane %v1580, 1
        %v1883 = vrot.slane %v1644, 1
        %v1884 = vsel %vm1444, %v1882, %v1883
        %v1885 = vrot.slane %v1581, 1
        %v1886 = vrot.slane %v1645, 1
        %v1887 = vsel %vm1444, %v1885, %v1886
        %v1888 = vrot.slane %v1582, 1
        %v1889 = vrot.slane %v1646, 1
        %v1890 = vsel %vm1444, %v1888, %v1889
        %v1891 = vrot.slane %v1583, 1
        %v1892 = vrot.slane %v1647, 1
        %v1893 = vsel %vm1444, %v1891, %v1892
        %v1894 = vrot.slane %v1584, 1
        %v1895 = vrot.slane %v1648, 1
        %v1896 = vsel %vm1444, %v1894, %v1895
        %v1897 = vrot.slane %v1585, 1
        %v1898 = vrot.slane %v1649, 1
        %v1899 = vsel %vm1444, %v1897, %v1898
        %v1900 = vrot.slane %v1586, 1
        %v1901 = vrot.slane %v1650, 1
        %v1902 = vsel %vm1444, %v1900, %v1901
        %v1903 = vrot.slane %v1587, 1
        %v1904 = vrot.slane %v1651, 1
        %v1905 = vsel %vm1444, %v1903, %v1904
        %v1906 = vrot.slane %v1588, 1
        %v1907 = vrot.slane %v1652, 1
        %v1908 = vsel %vm1444, %v1906, %v1907
        %v1957 = vunpack.c.l.b16 %v1043
        %v1958 = vunpack.c.l.b16 %v1044
        %v1959 = vunpack.c.l.b16 %v1046
        %v1960 = vunpack.c.l.b16 %v1047
        %v1961 = vunpack.c.l.b16 %v1049
        %v1962 = vunpack.c.l.b16 %v1050
        %v1963 = vunpack.c.l.b16 %v1052
        %v1964 = vunpack.c.l.b16 %v1053
        %v1965 = vunpack.c.l.b16 %v1055
        %v1966 = vunpack.c.l.b16 %v1056
        %v1967 = vunpack.c.l.b16 %v1058
        %v1968 = vunpack.c.l.b16 %v1059
        %v1969 = vunpack.c.l.b16 %v1061
        %v1970 = vunpack.c.l.b16 %v1062
        %v1971 = vunpack.c.l.b16 %v1064
        %v1972 = vunpack.c.l.b16 %v1065
        %v1973 = vunpack.c.l.b16 %v1067
        %v1974 = vunpack.c.l.b16 %v1068
        %v1975 = vunpack.c.l.b16 %v1070
        %v1976 = vunpack.c.l.b16 %v1071
        %v1977 = vunpack.c.l.b16 %v1073
        %v1978 = vunpack.c.l.b16 %v1074
        %v1979 = vunpack.c.l.b16 %v1076
        %v1980 = vunpack.c.l.b16 %v1077
        %v1981 = vunpack.c.l.b16 %v1079
        %v1982 = vunpack.c.l.b16 %v1080
        %v1983 = vunpack.c.l.b16 %v1082
        %v1984 = vunpack.c.l.b16 %v1083
        %v1985 = vunpack.c.l.b16 %v1085
        %v1986 = vunpack.c.l.b16 %v1086
        %v1987 = vunpack.c.l.b16 %v1088
        %v1988 = vunpack.c.l.b16 %v1089
        %v1989 = vpack.c.b16 %v1958, %v1957
        %v1990 = vpack.c.b16 %v1960, %v1959
        %v1991 = vpack.c.b16 %v1962, %v1961
        %v1992 = vpack.c.b16 %v1964, %v1963
        %v1993 = vpack.c.b16 %v1966, %v1965
        %v1994 = vpack.c.b16 %v1968, %v1967
        %v1995 = vpack.c.b16 %v1970, %v1969
        %v1996 = vpack.c.b16 %v1972, %v1971
        %v1997 = vpack.c.b16 %v1974, %v1973
        %v1998 = vpack.c.b16 %v1976, %v1975
        %v1999 = vpack.c.b16 %v1978, %v1977
        %v2000 = vpack.c.b16 %v1980, %v1979
        %v2001 = vpack.c.b16 %v1982, %v1981
        %v2002 = vpack.c.b16 %v1984, %v1983
        %v2003 = vpack.c.b16 %v1986, %v1985
        %v2004 = vpack.c.b16 %v1988, %v1987
        %v2037 = vunpack.c.l.b16 %v1045
        %v2038 = vunpack.c.l.b16 %v1048
        %v2039 = vunpack.c.l.b16 %v1051
        %v2040 = vunpack.c.l.b16 %v1054
        %v2041 = vunpack.c.l.b16 %v1057
        %v2042 = vunpack.c.l.b16 %v1060
        %v2043 = vunpack.c.l.b16 %v1063
        %v2044 = vunpack.c.l.b16 %v1066
        %v2045 = vunpack.c.l.b16 %v1069
        %v2046 = vunpack.c.l.b16 %v1072
        %v2047 = vunpack.c.l.b16 %v1075
        %v2048 = vunpack.c.l.b16 %v1078
        %v2049 = vunpack.c.l.b16 %v1081
        %v2050 = vunpack.c.l.b16 %v1084
        %v2051 = vunpack.c.l.b16 %v1087
        %v2052 = vunpack.c.l.b16 %v1090
        %v2053 = vpack.c.b16 %v2037, %v2037
        %v2054 = vpack.c.b16 %v2038, %v2038
        %v2055 = vpack.c.b16 %v2039, %v2039
        %v2056 = vpack.c.b16 %v2040, %v2040
        %v2057 = vpack.c.b16 %v2041, %v2041
        %v2058 = vpack.c.b16 %v2042, %v2042
        %v2059 = vpack.c.b16 %v2043, %v2043
        %v2060 = vpack.c.b16 %v2044, %v2044
        %v2061 = vpack.c.b16 %v2045, %v2045
        %v2062 = vpack.c.b16 %v2046, %v2046
        %v2063 = vpack.c.b16 %v2047, %v2047
        %v2064 = vpack.c.b16 %v2048, %v2048
        %v2065 = vpack.c.b16 %v2049, %v2049
        %v2066 = vpack.c.b16 %v2050, %v2050
        %v2067 = vpack.c.b16 %v2051, %v2051
        %v2068 = vpack.c.b16 %v2052, %v2052
        %v2070 = vshrl.u32 %v1989, 16
        %v2072 = vshll.u32 %v1989, 16
        %v2074 = vrot.slane %v2072, 1
        %v2075 = vor.u32 %v2070, %v2074
        %v2077 = vshll.u32 %v2053, 16
        %v2079 = vrot.slane %v2077, 1
        %v2080 = vsel %vm1235, %v2075, %v2079
        %v2082 = vshrl.u32 %v1990, 16
        %v2084 = vshll.u32 %v1990, 16
        %v2086 = vrot.slane %v2084, 1
        %v2087 = vor.u32 %v2082, %v2086
        %v2089 = vshll.u32 %v2054, 16
        %v2091 = vrot.slane %v2089, 1
        %v2092 = vsel %vm1235, %v2087, %v2091
        %v2094 = vshrl.u32 %v1991, 16
        %v2096 = vshll.u32 %v1991, 16
        %v2098 = vrot.slane %v2096, 1
        %v2099 = vor.u32 %v2094, %v2098
        %v2101 = vshll.u32 %v2055, 16
        %v2103 = vrot.slane %v2101, 1
        %v2104 = vsel %vm1235, %v2099, %v2103
        %v2106 = vshrl.u32 %v1992, 16
        %v2108 = vshll.u32 %v1992, 16
        %v2110 = vrot.slane %v2108, 1
        %v2111 = vor.u32 %v2106, %v2110
        %v2113 = vshll.u32 %v2056, 16
        %v2115 = vrot.slane %v2113, 1
        %v2116 = vsel %vm1235, %v2111, %v2115
        %v2118 = vshrl.u32 %v1993, 16
        %v2120 = vshll.u32 %v1993, 16
        %v2122 = vrot.slane %v2120, 1
        %v2123 = vor.u32 %v2118, %v2122
        %v2125 = vshll.u32 %v2057, 16
        %v2127 = vrot.slane %v2125, 1
        %v2128 = vsel %vm1235, %v2123, %v2127
        %v2130 = vshrl.u32 %v1994, 16
        %v2132 = vshll.u32 %v1994, 16
        %v2134 = vrot.slane %v2132, 1
        %v2135 = vor.u32 %v2130, %v2134
        %v2137 = vshll.u32 %v2058, 16
        %v2139 = vrot.slane %v2137, 1
        %v2140 = vsel %vm1235, %v2135, %v2139
        %v2142 = vshrl.u32 %v1995, 16
        %v2144 = vshll.u32 %v1995, 16
        %v2146 = vrot.slane %v2144, 1
        %v2147 = vor.u32 %v2142, %v2146
        %v2149 = vshll.u32 %v2059, 16
        %v2151 = vrot.slane %v2149, 1
        %v2152 = vsel %vm1235, %v2147, %v2151
        %v2154 = vshrl.u32 %v1996, 16
        %v2156 = vshll.u32 %v1996, 16
        %v2158 = vrot.slane %v2156, 1
        %v2159 = vor.u32 %v2154, %v2158
        %v2161 = vshll.u32 %v2060, 16
        %v2163 = vrot.slane %v2161, 1
        %v2164 = vsel %vm1235, %v2159, %v2163
        %v2166 = vshrl.u32 %v1997, 16
        %v2168 = vshll.u32 %v1997, 16
        %v2170 = vrot.slane %v2168, 1
        %v2171 = vor.u32 %v2166, %v2170
        %v2173 = vshll.u32 %v2061, 16
        %v2175 = vrot.slane %v2173, 1
        %v2176 = vsel %vm1235, %v2171, %v2175
        %v2178 = vshrl.u32 %v1998, 16
        %v2180 = vshll.u32 %v1998, 16
        %v2182 = vrot.slane %v2180, 1
        %v2183 = vor.u32 %v2178, %v2182
        %v2185 = vshll.u32 %v2062, 16
        %v2187 = vrot.slane %v2185, 1
        %v2188 = vsel %vm1235, %v2183, %v2187
        %v2190 = vshrl.u32 %v1999, 16
        %v2192 = vshll.u32 %v1999, 16
        %v2194 = vrot.slane %v2192, 1
        %v2195 = vor.u32 %v2190, %v2194
        %v2197 = vshll.u32 %v2063, 16
        %v2199 = vrot.slane %v2197, 1
        %v2200 = vsel %vm1235, %v2195, %v2199
        %v2202 = vshrl.u32 %v2000, 16
        %v2204 = vshll.u32 %v2000, 16
        %v2206 = vrot.slane %v2204, 1
        %v2207 = vor.u32 %v2202, %v2206
        %v2209 = vshll.u32 %v2064, 16
        %v2211 = vrot.slane %v2209, 1
        %v2212 = vsel %vm1235, %v2207, %v2211
        %v2214 = vshrl.u32 %v2001, 16
        %v2216 = vshll.u32 %v2001, 16
        %v2218 = vrot.slane %v2216, 1
        %v2219 = vor.u32 %v2214, %v2218
        %v2221 = vshll.u32 %v2065, 16
        %v2223 = vrot.slane %v2221, 1
        %v2224 = vsel %vm1235, %v2219, %v2223
        %v2226 = vshrl.u32 %v2002, 16
        %v2228 = vshll.u32 %v2002, 16
        %v2230 = vrot.slane %v2228, 1
        %v2231 = vor.u32 %v2226, %v2230
        %v2233 = vshll.u32 %v2066, 16
        %v2235 = vrot.slane %v2233, 1
        %v2236 = vsel %vm1235, %v2231, %v2235
        %v2238 = vshrl.u32 %v2003, 16
        %v2240 = vshll.u32 %v2003, 16
        %v2242 = vrot.slane %v2240, 1
        %v2243 = vor.u32 %v2238, %v2242
        %v2245 = vshll.u32 %v2067, 16
        %v2247 = vrot.slane %v2245, 1
        %v2248 = vsel %vm1235, %v2243, %v2247
        %v2250 = vshrl.u32 %v2004, 16
        %v2252 = vshll.u32 %v2004, 16
        %v2254 = vrot.slane %v2252, 1
        %v2255 = vor.u32 %v2250, %v2254
        %v2257 = vshll.u32 %v2068, 16
        %v2259 = vrot.slane %v2257, 1
        %v2260 = vsel %vm1235, %v2255, %v2259
        %v2277 = vrot.slane %v1989, 1
        %v2278 = vrot.slane %v2053, 1
        %v2279 = vsel %vm1444, %v2277, %v2278
        %v2280 = vrot.slane %v1990, 1
        %v2281 = vrot.slane %v2054, 1
        %v2282 = vsel %vm1444, %v2280, %v2281
        %v2283 = vrot.slane %v1991, 1
        %v2284 = vrot.slane %v2055, 1
        %v2285 = vsel %vm1444, %v2283, %v2284
        %v2286 = vrot.slane %v1992, 1
        %v2287 = vrot.slane %v2056, 1
        %v2288 = vsel %vm1444, %v2286, %v2287
        %v2289 = vrot.slane %v1993, 1
        %v2290 = vrot.slane %v2057, 1
        %v2291 = vsel %vm1444, %v2289, %v2290
        %v2292 = vrot.slane %v1994, 1
        %v2293 = vrot.slane %v2058, 1
        %v2294 = vsel %vm1444, %v2292, %v2293
        %v2295 = vrot.slane %v1995, 1
        %v2296 = vrot.slane %v2059, 1
        %v2297 = vsel %vm1444, %v2295, %v2296
        %v2298 = vrot.slane %v1996, 1
        %v2299 = vrot.slane %v2060, 1
        %v2300 = vsel %vm1444, %v2298, %v2299
        %v2301 = vrot.slane %v1997, 1
        %v2302 = vrot.slane %v2061, 1
        %v2303 = vsel %vm1444, %v2301, %v2302
        %v2304 = vrot.slane %v1998, 1
        %v2305 = vrot.slane %v2062, 1
        %v2306 = vsel %vm1444, %v2304, %v2305
        %v2307 = vrot.slane %v1999, 1
        %v2308 = vrot.slane %v2063, 1
        %v2309 = vsel %vm1444, %v2307, %v2308
        %v2310 = vrot.slane %v2000, 1
        %v2311 = vrot.slane %v2064, 1
        %v2312 = vsel %vm1444, %v2310, %v2311
        %v2313 = vrot.slane %v2001, 1
        %v2314 = vrot.slane %v2065, 1
        %v2315 = vsel %vm1444, %v2313, %v2314
        %v2316 = vrot.slane %v2002, 1
        %v2317 = vrot.slane %v2066, 1
        %v2318 = vsel %vm1444, %v2316, %v2317
        %v2319 = vrot.slane %v2003, 1
        %v2320 = vrot.slane %v2067, 1
        %v2321 = vsel %vm1444, %v2319, %v2320
        %v2322 = vrot.slane %v2004, 1
        %v2323 = vrot.slane %v2068, 1
        %v2324 = vsel %vm1444, %v2322, %v2323
        %v2341 = vld [vmem:[#allocation6] sm:$0xf]
        %v2342 = vld [vmem:[#allocation6 + $0x4] sm:$0xf]
        %v2343 = vld [vmem:[#allocation6 + $0x8] sm:$0xf]
        %v2344 = vld [vmem:[#allocation6 + $0xc] sm:$0xf]
        %v2345 = vld [vmem:[#allocation6 + $0x10] sm:$0xf]
        %v2346 = vld [vmem:[#allocation6 + $0x14] sm:$0xf]
        %v2347 = vld [vmem:[#allocation6 + $0x18] sm:$0xf]
        %v2348 = vld [vmem:[#allocation6 + $0x1c] sm:$0xf]
        %v2349 = vld [vmem:[#allocation6 + $0x20] sm:$0xf]
        %v2350 = vld [vmem:[#allocation6 + $0x24] sm:$0xf]
        %v2351 = vld [vmem:[#allocation6 + $0x28] sm:$0xf]
        %v2352 = vld [vmem:[#allocation6 + $0x2c] sm:$0xf]
        %v2353 = vld [vmem:[#allocation6 + $0x30] sm:$0xf]
        %v2354 = vld [vmem:[#allocation6 + $0x34] sm:$0xf]
        %v2355 = vld [vmem:[#allocation6 + $0x38] sm:$0xf]
        %v2356 = vld [vmem:[#allocation6 + $0x3c] sm:$0xf]
        %v2357 = vld [vmem:[#allocation6 + $0x40] sm:$0xf]
        %v2358 = vld [vmem:[#allocation6 + $0x44] sm:$0xf]
        %v2359 = vld [vmem:[#allocation6 + $0x48] sm:$0xf]
        %v2360 = vld [vmem:[#allocation6 + $0x4c] sm:$0xf]
        %v2361 = vld [vmem:[#allocation6 + $0x50] sm:$0xf]
        %v2362 = vld [vmem:[#allocation6 + $0x54] sm:$0xf]
        %v2363 = vld [vmem:[#allocation6 + $0x58] sm:$0xf]
        %v2364 = vld [vmem:[#allocation6 + $0x5c] sm:$0xf]
        %v2365 = vld [vmem:[#allocation6 + $0x60] sm:$0xf]
        %v2366 = vld [vmem:[#allocation6 + $0x64] sm:$0xf]
        %v2367 = vld [vmem:[#allocation6 + $0x68] sm:$0xf]
        %v2368 = vld [vmem:[#allocation6 + $0x6c] sm:$0xf]
        %v2369 = vld [vmem:[#allocation6 + $0x70] sm:$0xf]
        %v2370 = vld [vmem:[#allocation6 + $0x74] sm:$0xf]
        %v2371 = vld [vmem:[#allocation6 + $0x78] sm:$0xf]
        %v2372 = vld [vmem:[#allocation6 + $0x7c] sm:$0xf]
        %v2373 = vld [vmem:[#allocation6 + $0x80] sm:$0xf]
        %v2374 = vld [vmem:[#allocation6 + $0x84] sm:$0xf]
        %v2375 = vld [vmem:[#allocation6 + $0x88] sm:$0xf]
        %v2376 = vld [vmem:[#allocation6 + $0x8c] sm:$0xf]
        %v2377 = vld [vmem:[#allocation6 + $0x90] sm:$0xf]
        %v2378 = vld [vmem:[#allocation6 + $0x94] sm:$0xf]
        %v2379 = vld [vmem:[#allocation6 + $0x98] sm:$0xf]
        %v2380 = vld [vmem:[#allocation6 + $0x9c] sm:$0xf]
        %v2381 = vld [vmem:[#allocation6 + $0xa0] sm:$0xf]
        %v2382 = vld [vmem:[#allocation6 + $0xa4] sm:$0xf]
        %v2383 = vld [vmem:[#allocation6 + $0xa8] sm:$0xf]
        %v2384 = vld [vmem:[#allocation6 + $0xac] sm:$0xf]
        %v2385 = vld [vmem:[#allocation6 + $0xb0] sm:$0xf]
        %v2386 = vld [vmem:[#allocation6 + $0xb4] sm:$0xf]
        %v2387 = vld [vmem:[#allocation6 + $0xb8] sm:$0xf]
        %v2388 = vld [vmem:[#allocation6 + $0xbc] sm:$0xf]
        %v2389 = vld [vmem:[#allocation6 + $0xc0] sm:$0xf]
        %v2390 = vld [vmem:[#allocation6 + $0xc4] sm:$0xf]
        %v2391 = vld [vmem:[#allocation6 + $0xc8] sm:$0xf]
        %v2392 = vld [vmem:[#allocation6 + $0xcc] sm:$0xf]
        %v2393 = vld [vmem:[#allocation6 + $0xd0] sm:$0xf]
        %v2394 = vld [vmem:[#allocation6 + $0xd4] sm:$0xf]
        %v2395 = vld [vmem:[#allocation6 + $0xd8] sm:$0xf]
        %v2396 = vld [vmem:[#allocation6 + $0xdc] sm:$0xf]
        %v2397 = vld [vmem:[#allocation6 + $0xe0] sm:$0xf]
        %v2398 = vld [vmem:[#allocation6 + $0xe4] sm:$0xf]
        %v2399 = vld [vmem:[#allocation6 + $0xe8] sm:$0xf]
        %v2400 = vld [vmem:[#allocation6 + $0xec] sm:$0xf]
        %v2401 = vld [vmem:[#allocation6 + $0xf0] sm:$0xf]
        %v2402 = vld [vmem:[#allocation6 + $0xf4] sm:$0xf]
        %v2403 = vld [vmem:[#allocation6 + $0xf8] sm:$0xf]
        %v2404 = vld [vmem:[#allocation6 + $0xfc] sm:$0xf]
        %v2405 = vld [vmem:[#allocation6 + $0x100] sm:$0xf]
        %v2406 = vld [vmem:[#allocation6 + $0x104] sm:$0xf]
        %v2407 = vld [vmem:[#allocation6 + $0x108] sm:$0xf]
        %v2408 = vld [vmem:[#allocation6 + $0x10c] sm:$0xf]
        %v2409 = vld [vmem:[#allocation6 + $0x110] sm:$0xf]
        %v2410 = vld [vmem:[#allocation6 + $0x114] sm:$0xf]
        %v2411 = vld [vmem:[#allocation6 + $0x118] sm:$0xf]
        %v2412 = vld [vmem:[#allocation6 + $0x11c] sm:$0xf]
        %v2413 = vld [vmem:[#allocation6 + $0x120] sm:$0xf]
        %v2414 = vld [vmem:[#allocation6 + $0x124] sm:$0xf]
        %v2415 = vld [vmem:[#allocation6 + $0x128] sm:$0xf]
        %v2416 = vld [vmem:[#allocation6 + $0x12c] sm:$0xf]
        %v2417 = vld [vmem:[#allocation6 + $0x130] sm:$0xf]
        %v2418 = vld [vmem:[#allocation6 + $0x134] sm:$0xf]
        %v2419 = vld [vmem:[#allocation6 + $0x138] sm:$0xf]
        %v2420 = vld [vmem:[#allocation6 + $0x13c] sm:$0xf]
        %v2421 = vld [vmem:[#allocation6 + $0x140] sm:$0xf]
        %v2422 = vld [vmem:[#allocation6 + $0x144] sm:$0xf]
        %v2423 = vld [vmem:[#allocation6 + $0x148] sm:$0xf]
        %v2424 = vld [vmem:[#allocation6 + $0x14c] sm:$0xf]
        %v2425 = vld [vmem:[#allocation6 + $0x150] sm:$0xf]
        %v2426 = vld [vmem:[#allocation6 + $0x154] sm:$0xf]
        %v2427 = vld [vmem:[#allocation6 + $0x158] sm:$0xf]
        %v2428 = vld [vmem:[#allocation6 + $0x15c] sm:$0xf]
        %v2429 = vld [vmem:[#allocation6 + $0x160] sm:$0xf]
        %v2430 = vld [vmem:[#allocation6 + $0x164] sm:$0xf]
        %v2431 = vld [vmem:[#allocation6 + $0x168] sm:$0xf]
        %v2432 = vld [vmem:[#allocation6 + $0x16c] sm:$0xf]
        %v2433 = vld [vmem:[#allocation6 + $0x170] sm:$0xf]
        %v2434 = vld [vmem:[#allocation6 + $0x174] sm:$0xf]
        %v2435 = vld [vmem:[#allocation6 + $0x178] sm:$0xf]
        %v2436 = vld [vmem:[#allocation6 + $0x17c] sm:$0xf]
        %v2437 = vld [vmem:[#allocation6 + $0x180] sm:$0xf]
        %v2438 = vld [vmem:[#allocation6 + $0x184] sm:$0xf]
        %v2439 = vld [vmem:[#allocation6 + $0x188] sm:$0xf]
        %v2440 = vld [vmem:[#allocation6 + $0x18c] sm:$0xf]
        %v2441 = vld [vmem:[#allocation6 + $0x190] sm:$0xf]
        %v2442 = vld [vmem:[#allocation6 + $0x194] sm:$0xf]
        %v2443 = vld [vmem:[#allocation6 + $0x198] sm:$0xf]
        %v2444 = vld [vmem:[#allocation6 + $0x19c] sm:$0xf]
        %v2445 = vld [vmem:[#allocation6 + $0x1a0] sm:$0xf]
        %v2446 = vld [vmem:[#allocation6 + $0x1a4] sm:$0xf]
        %v2447 = vld [vmem:[#allocation6 + $0x1a8] sm:$0xf]
        %v2448 = vld [vmem:[#allocation6 + $0x1ac] sm:$0xf]
        %v2449 = vld [vmem:[#allocation6 + $0x1b0] sm:$0xf]
        %v2450 = vld [vmem:[#allocation6 + $0x1b4] sm:$0xf]
        %v2451 = vld [vmem:[#allocation6 + $0x1b8] sm:$0xf]
        %v2452 = vld [vmem:[#allocation6 + $0x1bc] sm:$0xf]
        %v2453 = vld [vmem:[#allocation6 + $0x1c0] sm:$0xf]
        %v2454 = vld [vmem:[#allocation6 + $0x1c4] sm:$0xf]
        %v2455 = vld [vmem:[#allocation6 + $0x1c8] sm:$0xf]
        %v2456 = vld [vmem:[#allocation6 + $0x1cc] sm:$0xf]
        %v2457 = vld [vmem:[#allocation6 + $0x1d0] sm:$0xf]
        %v2458 = vld [vmem:[#allocation6 + $0x1d4] sm:$0xf]
        %v2459 = vld [vmem:[#allocation6 + $0x1d8] sm:$0xf]
        %v2460 = vld [vmem:[#allocation6 + $0x1dc] sm:$0xf]
        %v2461 = vld [vmem:[#allocation6 + $0x1e0] sm:$0xf]
        %v2462 = vld [vmem:[#allocation6 + $0x1e4] sm:$0xf]
        %v2463 = vld [vmem:[#allocation6 + $0x1e8] sm:$0xf]
        %v2464 = vld [vmem:[#allocation6 + $0x1ec] sm:$0xf]
        %v2465 = vld [vmem:[#allocation6 + $0x1f0] sm:$0xf]
        %v2466 = vld [vmem:[#allocation6 + $0x1f4] sm:$0xf]
        %v2467 = vld [vmem:[#allocation6 + $0x1f8] sm:$0xf]
        %v2468 = vld [vmem:[#allocation6 + $0x1fc] sm:$0xf]
        %v2469 = vld [vmem:[#allocation6 + $0x200] sm:$0xf]
        %v2470 = vld [vmem:[#allocation6 + $0x204] sm:$0xf]
        %v2471 = vld [vmem:[#allocation6 + $0x208] sm:$0xf]
        %v2472 = vld [vmem:[#allocation6 + $0x20c] sm:$0xf]
        %v2473 = vld [vmem:[#allocation6 + $0x210] sm:$0xf]
        %v2474 = vld [vmem:[#allocation6 + $0x214] sm:$0xf]
        %v2475 = vld [vmem:[#allocation6 + $0x218] sm:$0xf]
        %v2476 = vld [vmem:[#allocation6 + $0x21c] sm:$0xf]
        %v2477 = vld [vmem:[#allocation6 + $0x220] sm:$0xf]
        %v2478 = vld [vmem:[#allocation6 + $0x224] sm:$0xf]
        %v2479 = vld [vmem:[#allocation6 + $0x228] sm:$0xf]
        %v2480 = vld [vmem:[#allocation6 + $0x22c] sm:$0xf]
        %v2481 = vld [vmem:[#allocation6 + $0x230] sm:$0xf]
        %v2482 = vld [vmem:[#allocation6 + $0x234] sm:$0xf]
        %v2483 = vld [vmem:[#allocation6 + $0x238] sm:$0xf]
        %v2484 = vld [vmem:[#allocation6 + $0x23c] sm:$0xf]
        %v2629 = vunpack.c.l.b16 %v2341
        %v2630 = vunpack.c.l.b16 %v2342
        %v2631 = vunpack.c.l.b16 %v2343
        %v2632 = vunpack.c.l.b16 %v2344
        %v2633 = vunpack.c.l.b16 %v2345
        %v2634 = vunpack.c.l.b16 %v2346
        %v2635 = vunpack.c.l.b16 %v2347
        %v2636 = vunpack.c.l.b16 %v2348
        %v2637 = vunpack.c.l.b16 %v2349
        %v2638 = vunpack.c.l.b16 %v2350
        %v2639 = vunpack.c.l.b16 %v2351
        %v2640 = vunpack.c.l.b16 %v2352
        %v2641 = vunpack.c.l.b16 %v2353
        %v2642 = vunpack.c.l.b16 %v2354
        %v2643 = vunpack.c.l.b16 %v2355
        %v2644 = vunpack.c.l.b16 %v2356
        %v2645 = vunpack.c.l.b16 %v2357
        %v2646 = vunpack.c.l.b16 %v2358
        %v2647 = vunpack.c.l.b16 %v2359
        %v2648 = vunpack.c.l.b16 %v2360
        %v2649 = vunpack.c.l.b16 %v2361
        %v2650 = vunpack.c.l.b16 %v2362
        %v2651 = vunpack.c.l.b16 %v2363
        %v2652 = vunpack.c.l.b16 %v2364
        %v2653 = vunpack.c.l.b16 %v2365
        %v2654 = vunpack.c.l.b16 %v2366
        %v2655 = vunpack.c.l.b16 %v2367
        %v2656 = vunpack.c.l.b16 %v2368
        %v2657 = vunpack.c.l.b16 %v2369
        %v2658 = vunpack.c.l.b16 %v2370
        %v2659 = vunpack.c.l.b16 %v2371
        %v2660 = vunpack.c.l.b16 %v2372
        %v2661 = vunpack.c.l.b16 %v2373
        %v2662 = vunpack.c.l.b16 %v2374
        %v2663 = vunpack.c.l.b16 %v2375
        %v2664 = vunpack.c.l.b16 %v2376
        %v2665 = vunpack.c.l.b16 %v2377
        %v2666 = vunpack.c.l.b16 %v2378
        %v2667 = vunpack.c.l.b16 %v2379
        %v2668 = vunpack.c.l.b16 %v2380
        %v2669 = vunpack.c.l.b16 %v2381
        %v2670 = vunpack.c.l.b16 %v2382
        %v2671 = vunpack.c.l.b16 %v2383
        %v2672 = vunpack.c.l.b16 %v2384
        %v2673 = vunpack.c.l.b16 %v2385
        %v2674 = vunpack.c.l.b16 %v2386
        %v2675 = vunpack.c.l.b16 %v2387
        %v2676 = vunpack.c.l.b16 %v2388
        %v2677 = vunpack.c.l.b16 %v2389
        %v2678 = vunpack.c.l.b16 %v2390
        %v2679 = vunpack.c.l.b16 %v2391
        %v2680 = vunpack.c.l.b16 %v2392
        %v2681 = vunpack.c.l.b16 %v2393
        %v2682 = vunpack.c.l.b16 %v2394
        %v2683 = vunpack.c.l.b16 %v2395
        %v2684 = vunpack.c.l.b16 %v2396
        %v2685 = vunpack.c.l.b16 %v2397
        %v2686 = vunpack.c.l.b16 %v2398
        %v2687 = vunpack.c.l.b16 %v2399
        %v2688 = vunpack.c.l.b16 %v2400
        %v2689 = vunpack.c.l.b16 %v2401
        %v2690 = vunpack.c.l.b16 %v2402
        %v2691 = vunpack.c.l.b16 %v2403
        %v2692 = vunpack.c.l.b16 %v2404
        %v2693 = vunpack.c.l.b16 %v2405
        %v2694 = vunpack.c.l.b16 %v2406
        %v2695 = vunpack.c.l.b16 %v2407
        %v2696 = vunpack.c.l.b16 %v2408
        %v2697 = vunpack.c.l.b16 %v2409
        %v2698 = vunpack.c.l.b16 %v2410
        %v2699 = vunpack.c.l.b16 %v2411
        %v2700 = vunpack.c.l.b16 %v2412
        %v2701 = vunpack.c.l.b16 %v2413
        %v2702 = vunpack.c.l.b16 %v2414
        %v2703 = vunpack.c.l.b16 %v2415
        %v2704 = vunpack.c.l.b16 %v2416
        %v2705 = vunpack.c.l.b16 %v2417
        %v2706 = vunpack.c.l.b16 %v2418
        %v2707 = vunpack.c.l.b16 %v2419
        %v2708 = vunpack.c.l.b16 %v2420
        %v2709 = vunpack.c.l.b16 %v2421
        %v2710 = vunpack.c.l.b16 %v2422
        %v2711 = vunpack.c.l.b16 %v2423
        %v2712 = vunpack.c.l.b16 %v2424
        %v2713 = vunpack.c.l.b16 %v2425
        %v2714 = vunpack.c.l.b16 %v2426
        %v2715 = vunpack.c.l.b16 %v2427
        %v2716 = vunpack.c.l.b16 %v2428
        %v2717 = vunpack.c.l.b16 %v2429
        %v2718 = vunpack.c.l.b16 %v2430
        %v2719 = vunpack.c.l.b16 %v2431
        %v2720 = vunpack.c.l.b16 %v2432
        %v2721 = vunpack.c.l.b16 %v2433
        %v2722 = vunpack.c.l.b16 %v2434
        %v2723 = vunpack.c.l.b16 %v2435
        %v2724 = vunpack.c.l.b16 %v2436
        %v2725 = vunpack.c.l.b16 %v2437
        %v2726 = vunpack.c.l.b16 %v2438
        %v2727 = vunpack.c.l.b16 %v2439
        %v2728 = vunpack.c.l.b16 %v2440
        %v2729 = vunpack.c.l.b16 %v2441
        %v2730 = vunpack.c.l.b16 %v2442
        %v2731 = vunpack.c.l.b16 %v2443
        %v2732 = vunpack.c.l.b16 %v2444
        %v2733 = vunpack.c.l.b16 %v2445
        %v2734 = vunpack.c.l.b16 %v2446
        %v2735 = vunpack.c.l.b16 %v2447
        %v2736 = vunpack.c.l.b16 %v2448
        %v2737 = vunpack.c.l.b16 %v2449
        %v2738 = vunpack.c.l.b16 %v2450
        %v2739 = vunpack.c.l.b16 %v2451
        %v2740 = vunpack.c.l.b16 %v2452
        %v2741 = vunpack.c.l.b16 %v2453
        %v2742 = vunpack.c.l.b16 %v2454
        %v2743 = vunpack.c.l.b16 %v2455
        %v2744 = vunpack.c.l.b16 %v2456
        %v2745 = vunpack.c.l.b16 %v2457
        %v2746 = vunpack.c.l.b16 %v2458
        %v2747 = vunpack.c.l.b16 %v2459
        %v2748 = vunpack.c.l.b16 %v2460
        %v2749 = vunpack.c.l.b16 %v2461
        %v2750 = vunpack.c.l.b16 %v2462
        %v2751 = vunpack.c.l.b16 %v2463
        %v2752 = vunpack.c.l.b16 %v2464
        %v2753 = vunpack.c.l.b16 %v2465
        %v2754 = vunpack.c.l.b16 %v2466
        %v2755 = vunpack.c.l.b16 %v2467
        %v2756 = vunpack.c.l.b16 %v2468
        %v2757 = vunpack.c.l.b16 %v2469
        %v2758 = vunpack.c.l.b16 %v2470
        %v2759 = vunpack.c.l.b16 %v2471
        %v2760 = vunpack.c.l.b16 %v2472
        %v2761 = vunpack.c.l.b16 %v2473
        %v2762 = vunpack.c.l.b16 %v2474
        %v2763 = vunpack.c.l.b16 %v2475
        %v2764 = vunpack.c.l.b16 %v2476
        %v2765 = vunpack.c.l.b16 %v2477
        %v2766 = vunpack.c.l.b16 %v2478
        %v2767 = vunpack.c.l.b16 %v2479
        %v2768 = vunpack.c.l.b16 %v2480
        %v2769 = vunpack.c.l.b16 %v2481
        %v2770 = vunpack.c.l.b16 %v2482
        %v2771 = vunpack.c.l.b16 %v2483
        %v2772 = vunpack.c.l.b16 %v2484
        %v2773 = vpack.c.b16 %v2630, %v2629
        %v2774 = vpack.c.b16 %v2632, %v2631
        %v2775 = vpack.c.b16 %v2634, %v2633
        %v2776 = vpack.c.b16 %v2636, %v2635
        %v2777 = vpack.c.b16 %v2638, %v2637
        %v2778 = vpack.c.b16 %v2640, %v2639
        %v2779 = vpack.c.b16 %v2642, %v2641
        %v2780 = vpack.c.b16 %v2644, %v2643
        %v2781 = vpack.c.b16 %v2646, %v2645
        %v2782 = vpack.c.b16 %v2648, %v2647
        %v2783 = vpack.c.b16 %v2650, %v2649
        %v2784 = vpack.c.b16 %v2652, %v2651
        %v2785 = vpack.c.b16 %v2654, %v2653
        %v2786 = vpack.c.b16 %v2656, %v2655
        %v2787 = vpack.c.b16 %v2658, %v2657
        %v2788 = vpack.c.b16 %v2660, %v2659
        %v2789 = vpack.c.b16 %v2662, %v2661
        %v2790 = vpack.c.b16 %v2664, %v2663
        %v2791 = vpack.c.b16 %v2666, %v2665
        %v2792 = vpack.c.b16 %v2668, %v2667
        %v2793 = vpack.c.b16 %v2670, %v2669
        %v2794 = vpack.c.b16 %v2672, %v2671
        %v2795 = vpack.c.b16 %v2674, %v2673
        %v2796 = vpack.c.b16 %v2676, %v2675
        %v2797 = vpack.c.b16 %v2678, %v2677
        %v2798 = vpack.c.b16 %v2680, %v2679
        %v2799 = vpack.c.b16 %v2682, %v2681
        %v2800 = vpack.c.b16 %v2684, %v2683
        %v2801 = vpack.c.b16 %v2686, %v2685
        %v2802 = vpack.c.b16 %v2688, %v2687
        %v2803 = vpack.c.b16 %v2690, %v2689
        %v2804 = vpack.c.b16 %v2692, %v2691
        %v2805 = vpack.c.b16 %v2694, %v2693
        %v2806 = vpack.c.b16 %v2696, %v2695
        %v2807 = vpack.c.b16 %v2698, %v2697
        %v2808 = vpack.c.b16 %v2700, %v2699
        %v2809 = vpack.c.b16 %v2702, %v2701
        %v2810 = vpack.c.b16 %v2704, %v2703
        %v2811 = vpack.c.b16 %v2706, %v2705
        %v2812 = vpack.c.b16 %v2708, %v2707
        %v2813 = vpack.c.b16 %v2710, %v2709
        %v2814 = vpack.c.b16 %v2712, %v2711
        %v2815 = vpack.c.b16 %v2714, %v2713
        %v2816 = vpack.c.b16 %v2716, %v2715
        %v2817 = vpack.c.b16 %v2718, %v2717
        %v2818 = vpack.c.b16 %v2720, %v2719
        %v2819 = vpack.c.b16 %v2722, %v2721
        %v2820 = vpack.c.b16 %v2724, %v2723
        %v2821 = vpack.c.b16 %v2726, %v2725
        %v2822 = vpack.c.b16 %v2728, %v2727
        %v2823 = vpack.c.b16 %v2730, %v2729
        %v2824 = vpack.c.b16 %v2732, %v2731
        %v2825 = vpack.c.b16 %v2734, %v2733
        %v2826 = vpack.c.b16 %v2736, %v2735
        %v2827 = vpack.c.b16 %v2738, %v2737
        %v2828 = vpack.c.b16 %v2740, %v2739
        %v2829 = vpack.c.b16 %v2742, %v2741
        %v2830 = vpack.c.b16 %v2744, %v2743
        %v2831 = vpack.c.b16 %v2746, %v2745
        %v2832 = vpack.c.b16 %v2748, %v2747
        %v2833 = vpack.c.b16 %v2750, %v2749
        %v2834 = vpack.c.b16 %v2752, %v2751
        %v2835 = vpack.c.b16 %v2754, %v2753
        %v2836 = vpack.c.b16 %v2756, %v2755
        %v2837 = vpack.c.b16 %v2758, %v2757
        %v2838 = vpack.c.b16 %v2760, %v2759
        %v2839 = vpack.c.b16 %v2762, %v2761
        %v2840 = vpack.c.b16 %v2764, %v2763
        %v2841 = vpack.c.b16 %v2766, %v2765
        %v2842 = vpack.c.b16 %v2768, %v2767
        %v2843 = vpack.c.b16 %v2770, %v2769
        %v2844 = vpack.c.b16 %v2772, %v2771
        %2917 = vmatprep.subr.bf16.mxu0 0
        %2918 = vmatpush1.bf16.msra.mxu0 %v2773
        %2919 = vmatprep.subr.bf16.mxu0 0
        %2920 = vmatpush1.bf16.msra.mxu0 %v2774
        %2921 = vmatprep.subr.bf16.mxu0 0
        %2922 = vmatpush1.bf16.msra.mxu0 %v2775
        %2923 = vmatprep.subr.bf16.mxu0 0
        %2924 = vmatpush1.bf16.msra.mxu0 %v2776
        %2925 = vmatprep.subr.bf16.mxu0 0
        %2926 = vmatpush1.bf16.msra.mxu0 %v2777
        %2927 = vmatprep.subr.bf16.mxu0 0
        %2928 = vmatpush1.bf16.msra.mxu0 %v2778
        %2929 = vmatprep.subr.bf16.mxu0 0
        %2930 = vmatpush1.bf16.msra.mxu0 %v2779
        %2931 = vmatprep.subr.bf16.mxu0 0
        %2932 = vmatpush1.bf16.msra.mxu0 %v2780
        %2933 = vmatprep.subr.bf16.mxu0 0
        %2934 = vmatpush1.bf16.msra.mxu0 %v2781
        %2935 = vmatprep.subr.bf16.mxu0 0
        %2936 = vmatpush1.bf16.msra.mxu0 %v2782
        %2937 = vmatprep.subr.bf16.mxu0 0
        %2938 = vmatpush1.bf16.msra.mxu0 %v2783
        %2939 = vmatprep.subr.bf16.mxu0 0
        %2940 = vmatpush1.bf16.msra.mxu0 %v2784
        %2941 = vmatprep.subr.bf16.mxu0 0
        %2942 = vmatpush1.bf16.msra.mxu0 %v2785
        %2943 = vmatprep.subr.bf16.mxu0 0
        %2944 = vmatpush1.bf16.msra.mxu0 %v2786
        %2945 = vmatprep.subr.bf16.mxu0 0
        %2946 = vmatpush1.bf16.msra.mxu0 %v2787
        %2947 = vmatprep.subr.bf16.mxu0 0
        %2948 = vmatpush1.bf16.msra.mxu0 %v2788
        %2949 = vmatprep.mubr.bf16.mxu0 %v1247
        %2950 = vmatmul.mubr.bf16.gmra.mrb[0].mxu0 %v1155
        %v2951 = vpop.f32.mrb[0].mxu0
        %v2952 = vadd.f32 0.0, %v2951
        %v2953 = vpop.f32.mrb[0].mxu0
        %v2954 = vpop.f32.mrb[0].mxu0
        %v2955 = vadd.f32 0.0, %v2954
        %v2956 = vpop.f32.mrb[0].mxu0
        %2957 = vmatprep.mubr.bf16.mxu0 %v1259
        %2958 = vmatmul.mubr.bf16.gmra.mrb[0].mxu0 %v1156
        %v2959 = vpop.f32.mrb[0].mxu0
        %v2960 = vadd.f32 0.0, %v2959
        %v2961 = vpop.f32.mrb[0].mxu0
        %v2962 = vpop.f32.mrb[0].mxu0
        %v2963 = vadd.f32 0.0, %v2962
        %v2964 = vpop.f32.mrb[0].mxu0
        %2965 = vmatprep.mubr.bf16.mxu0 %v1271
        %2966 = vmatmul.mubr.bf16.gmra.mrb[0].mxu0 %v1157
        %v2967 = vpop.f32.mrb[0].mxu0
        %v2968 = vadd.f32 0.0, %v2967
        %v2969 = vpop.f32.mrb[0].mxu0
        %v2970 = vpop.f32.mrb[0].mxu0
        %v2971 = vadd.f32 0.0, %v2970
        %v2972 = vpop.f32.mrb[0].mxu0
        %2973 = vmatprep.mubr.bf16.mxu0 %v1283
        %2974 = vmatmul.mubr.bf16.gmra.mrb[0].mxu0 %v1158
        %v2975 = vpop.f32.mrb[0].mxu0
        %v2976 = vadd.f32 0.0, %v2975
        %v2977 = vpop.f32.mrb[0].mxu0
        %v2978 = vpop.f32.mrb[0].mxu0
        %v2979 = vadd.f32 0.0, %v2978
        %v2980 = vpop.f32.mrb[0].mxu0
        %2981 = vmatprep.mubr.bf16.mxu0 %v1295
        %2982 = vmatmul.mubr.bf16.gmra.mrb[0].mxu0 %v1159
        %v2983 = vpop.f32.mrb[0].mxu0
        %v2984 = vadd.f32 0.0, %v2983
        %v2985 = vpop.f32.mrb[0].mxu0
        %v2986 = vpop.f32.mrb[0].mxu0
        %v2987 = vadd.f32 0.0, %v2986
        %v2988 = vpop.f32.mrb[0].mxu0
        %2989 = vmatprep.mubr.bf16.mxu0 %v1307
        %2990 = vmatmul.mubr.bf16.gmra.mrb[0].mxu0 %v1160
        %v2991 = vpop.f32.mrb[0].mxu0
        %v2992 = vadd.f32 0.0, %v2991
        %v2993 = vpop.f32.mrb[0].mxu0
        %v2994 = vpop.f32.mrb[0].mxu0
        %v2995 = vadd.f32 0.0, %v2994
        %v2996 = vpop.f32.mrb[0].mxu0
        %2997 = vmatprep.mubr.bf16.mxu0 %v1319
        %2998 = vmatmul.mubr.bf16.gmra.mrb[0].mxu0 %v1161
        %v2999 = vpop.f32.mrb[0].mxu0
        %v3000 = vadd.f32 0.0, %v2999
        %v3001 = vpop.f32.mrb[0].mxu0
        %v3002 = vpop.f32.mrb[0].mxu0
        %v3003 = vadd.f32 0.0, %v3002
        %v3004 = vpop.f32.mrb[0].mxu0
        %3005 = vmatprep.mubr.bf16.mxu0 %v1331
        %3006 = vmatmul.mubr.bf16.gmra.mrb[0].mxu0 %v1162
        %v3007 = vpop.f32.mrb[0].mxu0
        %v3008 = vadd.f32 0.0, %v3007
        %v3009 = vpop.f32.mrb[0].mxu0
        %v3010 = vpop.f32.mrb[0].mxu0
        %v3011 = vadd.f32 0.0, %v3010
        %v3012 = vpop.f32.mrb[0].mxu0
        %3013 = vmatprep.mubr.bf16.mxu0 %v1343
        %3014 = vmatmul.mubr.bf16.gmra.mrb[0].mxu0 %v1163
        %v3015 = vpop.f32.mrb[0].mxu0
        %v3016 = vadd.f32 0.0, %v3015
        %v3017 = vpop.f32.mrb[0].mxu0
        %v3018 = vpop.f32.mrb[0].mxu0
        %v3019 = vadd.f32 0.0, %v3018
        %v3020 = vpop.f32.mrb[0].mxu0
        %3021 = vmatprep.mubr.bf16.mxu0 %v1355
        %3022 = vmatmul.mubr.bf16.gmra.mrb[0].mxu0 %v1164
        %v3023 = vpop.f32.mrb[0].mxu0
        %v3024 = vadd.f32 0.0, %v3023
        %v3025 = vpop.f32.mrb[0].mxu0
        %v3026 = vpop.f32.mrb[0].mxu0
        %v3027 = vadd.f32 0.0, %v3026
        %v3028 = vpop.f32.mrb[0].mxu0
        %3029 = vmatprep.mubr.bf16.mxu0 %v1367
        %3030 = vmatmul.mubr.bf16.gmra.mrb[0].mxu0 %v1165
        %v3031 = vpop.f32.mrb[0].mxu0
        %v3032 = vadd.f32 0.0, %v3031
        %v3033 = vpop.f32.mrb[0].mxu0
        %v3034 = vpop.f32.mrb[0].mxu0
        %v3035 = vadd.f32 0.0, %v3034
        %v3036 = vpop.f32.mrb[0].mxu0
        %3037 = vmatprep.mubr.bf16.mxu0 %v1379
        %3038 = vmatmul.mubr.bf16.gmra.mrb[0].mxu0 %v1166
        %v3039 = vpop.f32.mrb[0].mxu0
        %v3040 = vadd.f32 0.0, %v3039
        %v3041 = vpop.f32.mrb[0].mxu0
        %v3042 = vpop.f32.mrb[0].mxu0
        %v3043 = vadd.f32 0.0, %v3042
        %v3044 = vpop.f32.mrb[0].mxu0
        %3045 = vmatprep.mubr.bf16.mxu0 %v1391
        %3046 = vmatmul.mubr.bf16.gmra.mrb[0].mxu0 %v1167
        %v3047 = vpop.f32.mrb[0].mxu0
        %v3048 = vadd.f32 0.0, %v3047
        %v3049 = vpop.f32.mrb[0].mxu0
        %v3050 = vpop.f32.mrb[0].mxu0
        %v3051 = vadd.f32 0.0, %v3050
        %v3052 = vpop.f32.mrb[0].mxu0
        %3053 = vmatprep.mubr.bf16.mxu0 %v1403
        %3054 = vmatmul.mubr.bf16.gmra.mrb[0].mxu0 %v1168
        %v3055 = vpop.f32.mrb[0].mxu0
        %v3056 = vadd.f32 0.0, %v3055
        %v3057 = vpop.f32.mrb[0].mxu0
        %v3058 = vpop.f32.mrb[0].mxu0
        %v3059 = vadd.f32 0.0, %v3058
        %v3060 = vpop.f32.mrb[0].mxu0
        %3061 = vmatprep.mubr.bf16.mxu0 %v1415
        %3062 = vmatmul.mubr.bf16.gmra.mrb[0].mxu0 %v1169
        %v3063 = vpop.f32.mrb[0].mxu0
        %v3064 = vadd.f32 0.0, %v3063
        %v3065 = vpop.f32.mrb[0].mxu0
        %v3066 = vpop.f32.mrb[0].mxu0
        %v3067 = vadd.f32 0.0, %v3066
        %v3068 = vpop.f32.mrb[0].mxu0
        %3069 = vmatprep.mubr.bf16.mxu0 %v1427
        %3070 = vmatmul.mubr.bf16.gmra.mrb[0].mxu0 %v1170
        %v3071 = vpop.f32.mrb[0].mxu0
        %v3072 = vadd.f32 0.0, %v3071
        %v3073 = vpop.f32.mrb[0].mxu0
        %v3074 = vpop.f32.mrb[0].mxu0
        %v3075 = vadd.f32 0.0, %v3074
        %v3076 = vpop.f32.mrb[0].mxu0
        %3077 = vdwg.mxu0
        %3078 = vmatprep.subr.bf16.mxu0 0
        %3079 = vmatpush1.bf16.msra.mxu0 %v2789
        %3080 = vmatprep.subr.bf16.mxu0 0
        %3081 = vmatpush1.bf16.msra.mxu0 %v2790
        %3082 = vmatprep.subr.bf16.mxu0 0
        %3083 = vmatpush1.bf16.msra.mxu0 %v2791
        %3084 = vmatprep.subr.bf16.mxu0 0
        %3085 = vmatpush1.bf16.msra.mxu0 %v2792
        %3086 = vmatprep.subr.bf16.mxu0 0
        %3087 = vmatpush1.bf16.msra.mxu0 %v2793
        %3088 = vmatprep.subr.bf16.mxu0 0
        %3089 = vmatpush1.bf16.msra.mxu0 %v2794
        %3090 = vmatprep.subr.bf16.mxu0 0
        %3091 = vmatpush1.bf16.msra.mxu0 %v2795
        %3092 = vmatprep.subr.bf16.mxu0 0
        %3093 = vmatpush1.bf16.msra.mxu0 %v2796
        %3094 = vmatprep.subr.bf16.mxu0 0
        %3095 = vmatpush1.bf16.msra.mxu0 %v2797
        %3096 = vmatprep.subr.bf16.mxu0 0
        %3097 = vmatpush1.bf16.msra.mxu0 %v2798
        %3098 = vmatprep.subr.bf16.mxu0 0
        %3099 = vmatpush1.bf16.msra.mxu0 %v2799
        %3100 = vmatprep.subr.bf16.mxu0 0
        %3101 = vmatpush1.bf16.msra.mxu0 %v2800
        %3102 = vmatprep.subr.bf16.mxu0 0
        %3103 = vmatpush1.bf16.msra.mxu0 %v2801
        %3104 = vmatprep.subr.bf16.mxu0 0
        %3105 = vmatpush1.bf16.msra.mxu0 %v2802
        %3106 = vmatprep.subr.bf16.mxu0 0
        %3107 = vmatpush1.bf16.msra.mxu0 %v2803
        %3108 = vmatprep.subr.bf16.mxu0 0
        %3109 = vmatpush1.bf16.msra.mxu0 %v2804
        %3110 = vmatprep.mubr.bf16.mxu0 %v1573
        %3111 = vmatmul.mubr.bf16.gmra.mrb[0].mxu0 %v1447
        %v3112 = vpop.f32.mrb[0].mxu0
        %v3113 = vadd.f32 %v2952, %v3112
        %v3114 = vpop.f32.mrb[0].mxu0
        %v3115 = vpop.f32.mrb[0].mxu0
        %v3116 = vadd.f32 %v2955, %v3115
        %v3117 = vpop.f32.mrb[0].mxu0
        %3118 = vmatprep.mubr.bf16.mxu0 %v1574
        %3119 = vmatmul.mubr.bf16.gmra.mrb[0].mxu0 %v1450
        %v3120 = vpop.f32.mrb[0].mxu0
        %v3121 = vadd.f32 %v2960, %v3120
        %v3122 = vpop.f32.mrb[0].mxu0
        %v3123 = vpop.f32.mrb[0].mxu0
        %v3124 = vadd.f32 %v2963, %v3123
        %v3125 = vpop.f32.mrb[0].mxu0
        %3126 = vmatprep.mubr.bf16.mxu0 %v1575
        %3127 = vmatmul.mubr.bf16.gmra.mrb[0].mxu0 %v1453
        %v3128 = vpop.f32.mrb[0].mxu0
        %v3129 = vadd.f32 %v2968, %v3128
        %v3130 = vpop.f32.mrb[0].mxu0
        %v3131 = vpop.f32.mrb[0].mxu0
        %v3132 = vadd.f32 %v2971, %v3131
        %v3133 = vpop.f32.mrb[0].mxu0
        %3134 = vmatprep.mubr.bf16.mxu0 %v1576
        %3135 = vmatmul.mubr.bf16.gmra.mrb[0].mxu0 %v1456
        %v3136 = vpop.f32.mrb[0].mxu0
        %v3137 = vadd.f32 %v2976, %v3136
        %v3138 = vpop.f32.mrb[0].mxu0
        %v3139 = vpop.f32.mrb[0].mxu0
        %v3140 = vadd.f32 %v2979, %v3139
        %v3141 = vpop.f32.mrb[0].mxu0
        %3142 = vmatprep.mubr.bf16.mxu0 %v1577
        %3143 = vmatmul.mubr.bf16.gmra.mrb[0].mxu0 %v1459
        %v3144 = vpop.f32.mrb[0].mxu0
        %v3145 = vadd.f32 %v2984, %v3144
        %v3146 = vpop.f32.mrb[0].mxu0
        %v3147 = vpop.f32.mrb[0].mxu0
        %v3148 = vadd.f32 %v2987, %v3147
        %v3149 = vpop.f32.mrb[0].mxu0
        %3150 = vmatprep.mubr.bf16.mxu0 %v1578
        %3151 = vmatmul.mubr.bf16.gmra.mrb[0].mxu0 %v1462
        %v3152 = vpop.f32.mrb[0].mxu0
        %v3153 = vadd.f32 %v2992, %v3152
        %v3154 = vpop.f32.mrb[0].mxu0
        %v3155 = vpop.f32.mrb[0].mxu0
        %v3156 = vadd.f32 %v2995, %v3155
        %v3157 = vpop.f32.mrb[0].mxu0
        %3158 = vmatprep.mubr.bf16.mxu0 %v1579
        %3159 = vmatmul.mubr.bf16.gmra.mrb[0].mxu0 %v1465
        %v3160 = vpop.f32.mrb[0].mxu0
        %v3161 = vadd.f32 %v3000, %v3160
        %v3162 = vpop.f32.mrb[0].mxu0
        %v3163 = vpop.f32.mrb[0].mxu0
        %v3164 = vadd.f32 %v3003, %v3163
        %v3165 = vpop.f32.mrb[0].mxu0
        %3166 = vmatprep.mubr.bf16.mxu0 %v1580
        %3167 = vmatmul.mubr.bf16.gmra.mrb[0].mxu0 %v1468
        %v3168 = vpop.f32.mrb[0].mxu0
        %v3169 = vadd.f32 %v3008, %v3168
        %v3170 = vpop.f32.mrb[0].mxu0
        %v3171 = vpop.f32.mrb[0].mxu0
        %v3172 = vadd.f32 %v3011, %v3171
        %v3173 = vpop.f32.mrb[0].mxu0
        %3174 = vmatprep.mubr.bf16.mxu0 %v1581
        %3175 = vmatmul.mubr.bf16.gmra.mrb[0].mxu0 %v1471
        %v3176 = vpop.f32.mrb[0].mxu0
        %v3177 = vadd.f32 %v3016, %v3176
        %v3178 = vpop.f32.mrb[0].mxu0
        %v3179 = vpop.f32.mrb[0].mxu0
        %v3180 = vadd.f32 %v3019, %v3179
        %v3181 = vpop.f32.mrb[0].mxu0
        %3182 = vmatprep.mubr.bf16.mxu0 %v1582
        %3183 = vmatmul.mubr.bf16.gmra.mrb[0].mxu0 %v1474
        %v3184 = vpop.f32.mrb[0].mxu0
        %v3185 = vadd.f32 %v3024, %v3184
        %v3186 = vpop.f32.mrb[0].mxu0
        %v3187 = vpop.f32.mrb[0].mxu0
        %v3188 = vadd.f32 %v3027, %v3187
        %v3189 = vpop.f32.mrb[0].mxu0
        %3190 = vmatprep.mubr.bf16.mxu0 %v1583
        %3191 = vmatmul.mubr.bf16.gmra.mrb[0].mxu0 %v1477
        %v3192 = vpop.f32.mrb[0].mxu0
        %v3193 = vadd.f32 %v3032, %v3192
        %v3194 = vpop.f32.mrb[0].mxu0
        %v3195 = vpop.f32.mrb[0].mxu0
        %v3196 = vadd.f32 %v3035, %v3195
        %v3197 = vpop.f32.mrb[0].mxu0
        %3198 = vmatprep.mubr.bf16.mxu0 %v1584
        %3199 = vmatmul.mubr.bf16.gmra.mrb[0].mxu0 %v1480
        %v3200 = vpop.f32.mrb[0].mxu0
        %v3201 = vadd.f32 %v3040, %v3200
        %v3202 = vpop.f32.mrb[0].mxu0
        %v3203 = vpop.f32.mrb[0].mxu0
        %v3204 = vadd.f32 %v3043, %v3203
        %v3205 = vpop.f32.mrb[0].mxu0
        %3206 = vmatprep.mubr.bf16.mxu0 %v1585
        %3207 = vmatmul.mubr.bf16.gmra.mrb[0].mxu0 %v1483
        %v3208 = vpop.f32.mrb[0].mxu0
        %v3209 = vadd.f32 %v3048, %v3208
        %v3210 = vpop.f32.mrb[0].mxu0
        %v3211 = vpop.f32.mrb[0].mxu0
        %v3212 = vadd.f32 %v3051, %v3211
        %v3213 = vpop.f32.mrb[0].mxu0
        %3214 = vmatprep.mubr.bf16.mxu0 %v1586
        %3215 = vmatmul.mubr.bf16.gmra.mrb[0].mxu0 %v1486
        %v3216 = vpop.f32.mrb[0].mxu0
        %v3217 = vadd.f32 %v3056, %v3216
        %v3218 = vpop.f32.mrb[0].mxu0
        %v3219 = vpop.f32.mrb[0].mxu0
        %v3220 = vadd.f32 %v3059, %v3219
        %v3221 = vpop.f32.mrb[0].mxu0
        %3222 = vmatprep.mubr.bf16.mxu0 %v1587
        %3223 = vmatmul.mubr.bf16.gmra.mrb[0].mxu0 %v1489
        %v3224 = vpop.f32.mrb[0].mxu0
        %v3225 = vadd.f32 %v3064, %v3224
        %v3226 = vpop.f32.mrb[0].mxu0
        %v3227 = vpop.f32.mrb[0].mxu0
        %v3228 = vadd.f32 %v3067, %v3227
        %v3229 = vpop.f32.mrb[0].mxu0
        %3230 = vmatprep.mubr.bf16.mxu0 %v1588
        %3231 = vmatmul.mubr.bf16.gmra.mrb[0].mxu0 %v1492
        %v3232 = vpop.f32.mrb[0].mxu0
        %v3233 = vadd.f32 %v3072, %v3232
        %v3234 = vpop.f32.mrb[0].mxu0
        %v3235 = vpop.f32.mrb[0].mxu0
        %v3236 = vadd.f32 %v3075, %v3235
        %v3237 = vpop.f32.mrb[0].mxu0
        %3238 = vdwg.mxu0
        %3239 = vmatprep.subr.bf16.mxu0 0
        %3240 = vmatpush1.bf16.msra.mxu0 %v2805
        %3241 = vmatprep.subr.bf16.mxu0 0
        %3242 = vmatpush1.bf16.msra.mxu0 %v2806
        %3243 = vmatprep.subr.bf16.mxu0 0
        %3244 = vmatpush1.bf16.msra.mxu0 %v2807
        %3245 = vmatprep.subr.bf16.mxu0 0
        %3246 = vmatpush1.bf16.msra.mxu0 %v2808
        %3247 = vmatprep.subr.bf16.mxu0 0
        %3248 = vmatpush1.bf16.msra.mxu0 %v2809
        %3249 = vmatprep.subr.bf16.mxu0 0
        %3250 = vmatpush1.bf16.msra.mxu0 %v2810
        %3251 = vmatprep.subr.bf16.mxu0 0
        %3252 = vmatpush1.bf16.msra.mxu0 %v2811
        %3253 = vmatprep.subr.bf16.mxu0 0
        %3254 = vmatpush1.bf16.msra.mxu0 %v2812
        %3255 = vmatprep.subr.bf16.mxu0 0
        %3256 = vmatpush1.bf16.msra.mxu0 %v2813
        %3257 = vmatprep.subr.bf16.mxu0 0
        %3258 = vmatpush1.bf16.msra.mxu0 %v2814
        %3259 = vmatprep.subr.bf16.mxu0 0
        %3260 = vmatpush1.bf16.msra.mxu0 %v2815
        %3261 = vmatprep.subr.bf16.mxu0 0
        %3262 = vmatpush1.bf16.msra.mxu0 %v2816
        %3263 = vmatprep.subr.bf16.mxu0 0
        %3264 = vmatpush1.bf16.msra.mxu0 %v2817
        %3265 = vmatprep.subr.bf16.mxu0 0
        %3266 = vmatpush1.bf16.msra.mxu0 %v2818
        %3267 = vmatprep.subr.bf16.mxu0 0
        %3268 = vmatpush1.bf16.msra.mxu0 %v2819
        %3269 = vmatprep.subr.bf16.mxu0 0
        %3270 = vmatpush1.bf16.msra.mxu0 %v2820
        %3271 = vmatprep.mubr.bf16.mxu0 %v1863
        %3272 = vmatmul.mubr.bf16.gmra.mrb[0].mxu0 %v1664
        %v3273 = vpop.f32.mrb[0].mxu0
        %v3274 = vadd.f32 %v3113, %v3273
        %v3275 = vpop.f32.mrb[0].mxu0
        %v3276 = vpop.f32.mrb[0].mxu0
        %v3277 = vadd.f32 %v3116, %v3276
        %v3278 = vpop.f32.mrb[0].mxu0
        %3279 = vmatprep.mubr.bf16.mxu0 %v1866
        %3280 = vmatmul.mubr.bf16.gmra.mrb[0].mxu0 %v1676
        %v3281 = vpop.f32.mrb[0].mxu0
        %v3282 = vadd.f32 %v3121, %v3281
        %v3283 = vpop.f32.mrb[0].mxu0
        %v3284 = vpop.f32.mrb[0].mxu0
        %v3285 = vadd.f32 %v3124, %v3284
        %v3286 = vpop.f32.mrb[0].mxu0
        %3287 = vmatprep.mubr.bf16.mxu0 %v1869
        %3288 = vmatmul.mubr.bf16.gmra.mrb[0].mxu0 %v1688
        %v3289 = vpop.f32.mrb[0].mxu0
        %v3290 = vadd.f32 %v3129, %v3289
        %v3291 = vpop.f32.mrb[0].mxu0
        %v3292 = vpop.f32.mrb[0].mxu0
        %v3293 = vadd.f32 %v3132, %v3292
        %v3294 = vpop.f32.mrb[0].mxu0
        %3295 = vmatprep.mubr.bf16.mxu0 %v1872
        %3296 = vmatmul.mubr.bf16.gmra.mrb[0].mxu0 %v1700
        %v3297 = vpop.f32.mrb[0].mxu0
        %v3298 = vadd.f32 %v3137, %v3297
        %v3299 = vpop.f32.mrb[0].mxu0
        %v3300 = vpop.f32.mrb[0].mxu0
        %v3301 = vadd.f32 %v3140, %v3300
        %v3302 = vpop.f32.mrb[0].mxu0
        %3303 = vmatprep.mubr.bf16.mxu0 %v1875
        %3304 = vmatmul.mubr.bf16.gmra.mrb[0].mxu0 %v1712
        %v3305 = vpop.f32.mrb[0].mxu0
        %v3306 = vadd.f32 %v3145, %v3305
        %v3307 = vpop.f32.mrb[0].mxu0
        %v3308 = vpop.f32.mrb[0].mxu0
        %v3309 = vadd.f32 %v3148, %v3308
        %v3310 = vpop.f32.mrb[0].mxu0
        %3311 = vmatprep.mubr.bf16.mxu0 %v1878
        %3312 = vmatmul.mubr.bf16.gmra.mrb[0].mxu0 %v1724
        %v3313 = vpop.f32.mrb[0].mxu0
        %v3314 = vadd.f32 %v3153, %v3313
        %v3315 = vpop.f32.mrb[0].mxu0
        %v3316 = vpop.f32.mrb[0].mxu0
        %v3317 = vadd.f32 %v3156, %v3316
        %v3318 = vpop.f32.mrb[0].mxu0
        %3319 = vmatprep.mubr.bf16.mxu0 %v1881
        %3320 = vmatmul.mubr.bf16.gmra.mrb[0].mxu0 %v1736
        %v3321 = vpop.f32.mrb[0].mxu0
        %v3322 = vadd.f32 %v3161, %v3321
        %v3323 = vpop.f32.mrb[0].mxu0
        %v3324 = vpop.f32.mrb[0].mxu0
        %v3325 = vadd.f32 %v3164, %v3324
        %v3326 = vpop.f32.mrb[0].mxu0
        %3327 = vmatprep.mubr.bf16.mxu0 %v1884
        %3328 = vmatmul.mubr.bf16.gmra.mrb[0].mxu0 %v1748
        %v3329 = vpop.f32.mrb[0].mxu0
        %v3330 = vadd.f32 %v3169, %v3329
        %v3331 = vpop.f32.mrb[0].mxu0
        %v3332 = vpop.f32.mrb[0].mxu0
        %v3333 = vadd.f32 %v3172, %v3332
        %v3334 = vpop.f32.mrb[0].mxu0
        %3335 = vmatprep.mubr.bf16.mxu0 %v1887
        %3336 = vmatmul.mubr.bf16.gmra.mrb[0].mxu0 %v1760
        %v3337 = vpop.f32.mrb[0].mxu0
        %v3338 = vadd.f32 %v3177, %v3337
        %v3339 = vpop.f32.mrb[0].mxu0
        %v3340 = vpop.f32.mrb[0].mxu0
        %v3341 = vadd.f32 %v3180, %v3340
        %v3342 = vpop.f32.mrb[0].mxu0
        %3343 = vmatprep.mubr.bf16.mxu0 %v1890
        %3344 = vmatmul.mubr.bf16.gmra.mrb[0].mxu0 %v1772
        %v3345 = vpop.f32.mrb[0].mxu0
        %v3346 = vadd.f32 %v3185, %v3345
        %v3347 = vpop.f32.mrb[0].mxu0
        %v3348 = vpop.f32.mrb[0].mxu0
        %v3349 = vadd.f32 %v3188, %v3348
        %v3350 = vpop.f32.mrb[0].mxu0
        %3351 = vmatprep.mubr.bf16.mxu0 %v1893
        %3352 = vmatmul.mubr.bf16.gmra.mrb[0].mxu0 %v1784
        %v3353 = vpop.f32.mrb[0].mxu0
        %v3354 = vadd.f32 %v3193, %v3353
        %v3355 = vpop.f32.mrb[0].mxu0
        %v3356 = vpop.f32.mrb[0].mxu0
        %v3357 = vadd.f32 %v3196, %v3356
        %v3358 = vpop.f32.mrb[0].mxu0
        %3359 = vmatprep.mubr.bf16.mxu0 %v1896
        %3360 = vmatmul.mubr.bf16.gmra.mrb[0].mxu0 %v1796
        %v3361 = vpop.f32.mrb[0].mxu0
        %v3362 = vadd.f32 %v3201, %v3361
        %v3363 = vpop.f32.mrb[0].mxu0
        %v3364 = vpop.f32.mrb[0].mxu0
        %v3365 = vadd.f32 %v3204, %v3364
        %v3366 = vpop.f32.mrb[0].mxu0
        %3367 = vmatprep.mubr.bf16.mxu0 %v1899
        %3368 = vmatmul.mubr.bf16.gmra.mrb[0].mxu0 %v1808
        %v3369 = vpop.f32.mrb[0].mxu0
        %v3370 = vadd.f32 %v3209, %v3369
        %v3371 = vpop.f32.mrb[0].mxu0
        %v3372 = vpop.f32.mrb[0].mxu0
        %v3373 = vadd.f32 %v3212, %v3372
        %v3374 = vpop.f32.mrb[0].mxu0
        %3375 = vmatprep.mubr.bf16.mxu0 %v1902
        %3376 = vmatmul.mubr.bf16.gmra.mrb[0].mxu0 %v1820
        %v3377 = vpop.f32.mrb[0].mxu0
        %v3378 = vadd.f32 %v3217, %v3377
        %v3379 = vpop.f32.mrb[0].mxu0
        %v3380 = vpop.f32.mrb[0].mxu0
        %v3381 = vadd.f32 %v3220, %v3380
        %v3382 = vpop.f32.mrb[0].mxu0
        %3383 = vmatprep.mubr.bf16.mxu0 %v1905
        %3384 = vmatmul.mubr.bf16.gmra.mrb[0].mxu0 %v1832
        %v3385 = vpop.f32.mrb[0].mxu0
        %v3386 = vadd.f32 %v3225, %v3385
        %v3387 = vpop.f32.mrb[0].mxu0
        %v3388 = vpop.f32.mrb[0].mxu0
        %v3389 = vadd.f32 %v3228, %v3388
        %v3390 = vpop.f32.mrb[0].mxu0
        %3391 = vmatprep.mubr.bf16.mxu0 %v1908
        %3392 = vmatmul.mubr.bf16.gmra.mrb[0].mxu0 %v1844
        %v3393 = vpop.f32.mrb[0].mxu0
        %v3394 = vadd.f32 %v3233, %v3393
        %v3395 = vpop.f32.mrb[0].mxu0
        %v3396 = vpop.f32.mrb[0].mxu0
        %v3397 = vadd.f32 %v3236, %v3396
        %v3398 = vpop.f32.mrb[0].mxu0
        %3399 = vdwg.mxu0
        %3400 = vmatprep.subr.bf16.mxu0 0
        %3401 = vmatpush1.bf16.msra.mxu0 %v2821
        %3402 = vmatprep.subr.bf16.mxu0 0
        %3403 = vmatpush1.bf16.msra.mxu0 %v2822
        %3404 = vmatprep.subr.bf16.mxu0 0
        %3405 = vmatpush1.bf16.msra.mxu0 %v2823
        %3406 = vmatprep.subr.bf16.mxu0 0
        %3407 = vmatpush1.bf16.msra.mxu0 %v2824
        %3408 = vmatprep.subr.bf16.mxu0 0
        %3409 = vmatpush1.bf16.msra.mxu0 %v2825
        %3410 = vmatprep.subr.bf16.mxu0 0
        %3411 = vmatpush1.bf16.msra.mxu0 %v2826
        %3412 = vmatprep.subr.bf16.mxu0 0
        %3413 = vmatpush1.bf16.msra.mxu0 %v2827
        %3414 = vmatprep.subr.bf16.mxu0 0
        %3415 = vmatpush1.bf16.msra.mxu0 %v2828
        %3416 = vmatprep.subr.bf16.mxu0 0
        %3417 = vmatpush1.bf16.msra.mxu0 %v2829
        %3418 = vmatprep.subr.bf16.mxu0 0
        %3419 = vmatpush1.bf16.msra.mxu0 %v2830
        %3420 = vmatprep.subr.bf16.mxu0 0
        %3421 = vmatpush1.bf16.msra.mxu0 %v2831
        %3422 = vmatprep.subr.bf16.mxu0 0
        %3423 = vmatpush1.bf16.msra.mxu0 %v2832
        %3424 = vmatprep.subr.bf16.mxu0 0
        %3425 = vmatpush1.bf16.msra.mxu0 %v2833
        %3426 = vmatprep.subr.bf16.mxu0 0
        %3427 = vmatpush1.bf16.msra.mxu0 %v2834
        %3428 = vmatprep.subr.bf16.mxu0 0
        %3429 = vmatpush1.bf16.msra.mxu0 %v2835
        %3430 = vmatprep.subr.bf16.mxu0 0
        %3431 = vmatpush1.bf16.msra.mxu0 %v2836
        %3432 = vmatprep.mubr.bf16.mxu0 %v2080
        %3433 = vmatmul.mubr.bf16.gmra.mrb[0].mxu0 %v1989
        %v3434 = vpop.f32.mrb[0].mxu0
        %v3435 = vadd.f32 %v3274, %v3434
        %v3436 = vpop.f32.mrb[0].mxu0
        %v3437 = vpop.f32.mrb[0].mxu0
        %v3438 = vadd.f32 %v3277, %v3437
        %v3439 = vpop.f32.mrb[0].mxu0
        %3440 = vmatprep.mubr.bf16.mxu0 %v2092
        %3441 = vmatmul.mubr.bf16.gmra.mrb[0].mxu0 %v1990
        %v3442 = vpop.f32.mrb[0].mxu0
        %v3443 = vadd.f32 %v3282, %v3442
        %v3444 = vpop.f32.mrb[0].mxu0
        %v3445 = vpop.f32.mrb[0].mxu0
        %v3446 = vadd.f32 %v3285, %v3445
        %v3447 = vpop.f32.mrb[0].mxu0
        %3448 = vmatprep.mubr.bf16.mxu0 %v2104
        %3449 = vmatmul.mubr.bf16.gmra.mrb[0].mxu0 %v1991
        %v3450 = vpop.f32.mrb[0].mxu0
        %v3451 = vadd.f32 %v3290, %v3450
        %v3452 = vpop.f32.mrb[0].mxu0
        %v3453 = vpop.f32.mrb[0].mxu0
        %v3454 = vadd.f32 %v3293, %v3453
        %v3455 = vpop.f32.mrb[0].mxu0
        %3456 = vmatprep.mubr.bf16.mxu0 %v2116
        %3457 = vmatmul.mubr.bf16.gmra.mrb[0].mxu0 %v1992
        %v3458 = vpop.f32.mrb[0].mxu0
        %v3459 = vadd.f32 %v3298, %v3458
        %v3460 = vpop.f32.mrb[0].mxu0
        %v3461 = vpop.f32.mrb[0].mxu0
        %v3462 = vadd.f32 %v3301, %v3461
        %v3463 = vpop.f32.mrb[0].mxu0
        %3464 = vmatprep.mubr.bf16.mxu0 %v2128
        %3465 = vmatmul.mubr.bf16.gmra.mrb[0].mxu0 %v1993
        %v3466 = vpop.f32.mrb[0].mxu0
        %v3467 = vadd.f32 %v3306, %v3466
        %v3468 = vpop.f32.mrb[0].mxu0
        %v3469 = vpop.f32.mrb[0].mxu0
        %v3470 = vadd.f32 %v3309, %v3469
        %v3471 = vpop.f32.mrb[0].mxu0
        %3472 = vmatprep.mubr.bf16.mxu0 %v2140
        %3473 = vmatmul.mubr.bf16.gmra.mrb[0].mxu0 %v1994
        %v3474 = vpop.f32.mrb[0].mxu0
        %v3475 = vadd.f32 %v3314, %v3474
        %v3476 = vpop.f32.mrb[0].mxu0
        %v3477 = vpop.f32.mrb[0].mxu0
        %v3478 = vadd.f32 %v3317, %v3477
        %v3479 = vpop.f32.mrb[0].mxu0
        %3480 = vmatprep.mubr.bf16.mxu0 %v2152
        %3481 = vmatmul.mubr.bf16.gmra.mrb[0].mxu0 %v1995
        %v3482 = vpop.f32.mrb[0].mxu0
        %v3483 = vadd.f32 %v3322, %v3482
        %v3484 = vpop.f32.mrb[0].mxu0
        %v3485 = vpop.f32.mrb[0].mxu0
        %v3486 = vadd.f32 %v3325, %v3485
        %v3487 = vpop.f32.mrb[0].mxu0
        %3488 = vmatprep.mubr.bf16.mxu0 %v2164
        %3489 = vmatmul.mubr.bf16.gmra.mrb[0].mxu0 %v1996
        %v3490 = vpop.f32.mrb[0].mxu0
        %v3491 = vadd.f32 %v3330, %v3490
        %v3492 = vpop.f32.mrb[0].mxu0
        %v3493 = vpop.f32.mrb[0].mxu0
        %v3494 = vadd.f32 %v3333, %v3493
        %v3495 = vpop.f32.mrb[0].mxu0
        %3496 = vmatprep.mubr.bf16.mxu0 %v2176
        %3497 = vmatmul.mubr.bf16.gmra.mrb[0].mxu0 %v1997
        %v3498 = vpop.f32.mrb[0].mxu0
        %v3499 = vadd.f32 %v3338, %v3498
        %v3500 = vpop.f32.mrb[0].mxu0
        %v3501 = vpop.f32.mrb[0].mxu0
        %v3502 = vadd.f32 %v3341, %v3501
        %v3503 = vpop.f32.mrb[0].mxu0
        %3504 = vmatprep.mubr.bf16.mxu0 %v2188
        %3505 = vmatmul.mubr.bf16.gmra.mrb[0].mxu0 %v1998
        %v3506 = vpop.f32.mrb[0].mxu0
        %v3507 = vadd.f32 %v3346, %v3506
        %v3508 = vpop.f32.mrb[0].mxu0
        %v3509 = vpop.f32.mrb[0].mxu0
        %v3510 = vadd.f32 %v3349, %v3509
        %v3511 = vpop.f32.mrb[0].mxu0
        %3512 = vmatprep.mubr.bf16.mxu0 %v2200
        %3513 = vmatmul.mubr.bf16.gmra.mrb[0].mxu0 %v1999
        %v3514 = vpop.f32.mrb[0].mxu0
        %v3515 = vadd.f32 %v3354, %v3514
        %v3516 = vpop.f32.mrb[0].mxu0
        %v3517 = vpop.f32.mrb[0].mxu0
        %v3518 = vadd.f32 %v3357, %v3517
        %v3519 = vpop.f32.mrb[0].mxu0
        %3520 = vmatprep.mubr.bf16.mxu0 %v2212
        %3521 = vmatmul.mubr.bf16.gmra.mrb[0].mxu0 %v2000
        %v3522 = vpop.f32.mrb[0].mxu0
        %v3523 = vadd.f32 %v3362, %v3522
        %v3524 = vpop.f32.mrb[0].mxu0
        %v3525 = vpop.f32.mrb[0].mxu0
        %v3526 = vadd.f32 %v3365, %v3525
        %v3527 = vpop.f32.mrb[0].mxu0
        %3528 = vmatprep.mubr.bf16.mxu0 %v2224
        %3529 = vmatmul.mubr.bf16.gmra.mrb[0].mxu0 %v2001
        %v3530 = vpop.f32.mrb[0].mxu0
        %v3531 = vadd.f32 %v3370, %v3530
        %v3532 = vpop.f32.mrb[0].mxu0
        %v3533 = vpop.f32.mrb[0].mxu0
        %v3534 = vadd.f32 %v3373, %v3533
        %v3535 = vpop.f32.mrb[0].mxu0
        %3536 = vmatprep.mubr.bf16.mxu0 %v2236
        %3537 = vmatmul.mubr.bf16.gmra.mrb[0].mxu0 %v2002
        %v3538 = vpop.f32.mrb[0].mxu0
        %v3539 = vadd.f32 %v3378, %v3538
        %v3540 = vpop.f32.mrb[0].mxu0
        %v3541 = vpop.f32.mrb[0].mxu0
        %v3542 = vadd.f32 %v3381, %v3541
        %v3543 = vpop.f32.mrb[0].mxu0
        %3544 = vmatprep.mubr.bf16.mxu0 %v2248
        %3545 = vmatmul.mubr.bf16.gmra.mrb[0].mxu0 %v2003
        %v3546 = vpop.f32.mrb[0].mxu0
        %v3547 = vadd.f32 %v3386, %v3546
        %v3548 = vpop.f32.mrb[0].mxu0
        %v3549 = vpop.f32.mrb[0].mxu0
        %v3550 = vadd.f32 %v3389, %v3549
        %v3551 = vpop.f32.mrb[0].mxu0
        %3552 = vmatprep.mubr.bf16.mxu0 %v2260
        %3553 = vmatmul.mubr.bf16.gmra.mrb[0].mxu0 %v2004
        %v3554 = vpop.f32.mrb[0].mxu0
        %v3555 = vadd.f32 %v3394, %v3554
        %v3556 = vpop.f32.mrb[0].mxu0
        %v3557 = vpop.f32.mrb[0].mxu0
        %v3558 = vadd.f32 %v3397, %v3557
        %v3559 = vpop.f32.mrb[0].mxu0
        %3560 = vdwg.mxu0
        %3561 = vmatprep.subr.bf16.mxu0 0
        %3562 = vmatpush1.bf16.msra.mxu0 %v2837
        %3563 = vmatprep.subr.bf16.mxu0 0
        %3564 = vmatpush1.bf16.msra.mxu0 %v2838
        %3565 = vmatprep.subr.bf16.mxu0 0
        %3566 = vmatpush1.bf16.msra.mxu0 %v2839
        %3567 = vmatprep.subr.bf16.mxu0 0
        %3568 = vmatpush1.bf16.msra.mxu0 %v2840
        %3569 = vmatprep.subr.bf16.mxu0 0
        %3570 = vmatpush1.bf16.msra.mxu0 %v2841
        %3571 = vmatprep.subr.bf16.mxu0 0
        %3572 = vmatpush1.bf16.msra.mxu0 %v2842
        %3573 = vmatprep.subr.bf16.mxu0 0
        %3574 = vmatpush1.bf16.msra.mxu0 %v2843
        %3575 = vmatprep.subr.bf16.mxu0 0
        %3576 = vmatpush1.bf16.msra.mxu0 %v2844
        %3577 = vmatprep.subr.bf16.mxu0 0
        %3578 = vmatpush1.bf16.msra.mxu0 0
        %3579 = vmatprep.subr.bf16.mxu0 0
        %3580 = vmatpush1.bf16.msra.mxu0 0
        %3581 = vmatprep.subr.bf16.mxu0 0
        %3582 = vmatpush1.bf16.msra.mxu0 0
        %3583 = vmatprep.subr.bf16.mxu0 0
        %3584 = vmatpush1.bf16.msra.mxu0 0
        %3585 = vmatprep.subr.bf16.mxu0 0
        %3586 = vmatpush1.bf16.msra.mxu0 0
        %3587 = vmatprep.subr.bf16.mxu0 0
        %3588 = vmatpush1.bf16.msra.mxu0 0
        %3589 = vmatprep.subr.bf16.mxu0 0
        %3590 = vmatpush1.bf16.msra.mxu0 0
        %3591 = vmatprep.subr.bf16.mxu0 0
        %3592 = vmatpush1.bf16.msra.mxu0 0
        %3593 = vmatprep.mubr.bf16.mxu0 0
        %3594 = vmatmul.mubr.bf16.gmra.mrb[0].mxu0 %v2279
        %v3595 = vpop.f32.mrb[0].mxu0
        %v3596 = vadd.f32 %v3435, %v3595
        %v3597 = vpop.f32.mrb[0].mxu0
        %v3598 = vpop.f32.mrb[0].mxu0
        %v3599 = vadd.f32 %v3438, %v3598
        %v3600 = vpop.f32.mrb[0].mxu0
        %3601 = vmatprep.mubr.bf16.mxu0 0
        %3602 = vmatmul.mubr.bf16.gmra.mrb[0].mxu0 %v2282
        %v3603 = vpop.f32.mrb[0].mxu0
        %v3604 = vadd.f32 %v3443, %v3603
        %v3605 = vpop.f32.mrb[0].mxu0
        %v3606 = vpop.f32.mrb[0].mxu0
        %v3607 = vadd.f32 %v3446, %v3606
        %v3608 = vpop.f32.mrb[0].mxu0
        %3609 = vmatprep.mubr.bf16.mxu0 0
        %3610 = vmatmul.mubr.bf16.gmra.mrb[0].mxu0 %v2285
        %v3611 = vpop.f32.mrb[0].mxu0
        %v3612 = vadd.f32 %v3451, %v3611
        %v3613 = vpop.f32.mrb[0].mxu0
        %v3614 = vpop.f32.mrb[0].mxu0
        %v3615 = vadd.f32 %v3454, %v3614
        %v3616 = vpop.f32.mrb[0].mxu0
        %3617 = vmatprep.mubr.bf16.mxu0 0
        %3618 = vmatmul.mubr.bf16.gmra.mrb[0].mxu0 %v2288
        %v3619 = vpop.f32.mrb[0].mxu0
        %v3620 = vadd.f32 %v3459, %v3619
        %v3621 = vpop.f32.mrb[0].mxu0
        %v3622 = vpop.f32.mrb[0].mxu0
        %v3623 = vadd.f32 %v3462, %v3622
        %v3624 = vpop.f32.mrb[0].mxu0
        %3625 = vmatprep.mubr.bf16.mxu0 0
        %3626 = vmatmul.mubr.bf16.gmra.mrb[0].mxu0 %v2291
        %v3627 = vpop.f32.mrb[0].mxu0
        %v3628 = vadd.f32 %v3467, %v3627
        %v3629 = vpop.f32.mrb[0].mxu0
        %v3630 = vpop.f32.mrb[0].mxu0
        %v3631 = vadd.f32 %v3470, %v3630
        %v3632 = vpop.f32.mrb[0].mxu0
        %3633 = vmatprep.mubr.bf16.mxu0 0
        %3634 = vmatmul.mubr.bf16.gmra.mrb[0].mxu0 %v2294
        %v3635 = vpop.f32.mrb[0].mxu0
        %v3636 = vadd.f32 %v3475, %v3635
        %v3637 = vpop.f32.mrb[0].mxu0
        %v3638 = vpop.f32.mrb[0].mxu0
        %v3639 = vadd.f32 %v3478, %v3638
        %v3640 = vpop.f32.mrb[0].mxu0
        %3641 = vmatprep.mubr.bf16.mxu0 0
        %3642 = vmatmul.mubr.bf16.gmra.mrb[0].mxu0 %v2297
        %v3643 = vpop.f32.mrb[0].mxu0
        %v3644 = vadd.f32 %v3483, %v3643
        %v3645 = vpop.f32.mrb[0].mxu0
        %v3646 = vpop.f32.mrb[0].mxu0
        %v3647 = vadd.f32 %v3486, %v3646
        %v3648 = vpop.f32.mrb[0].mxu0
        %3649 = vmatprep.mubr.bf16.mxu0 0
        %3650 = vmatmul.mubr.bf16.gmra.mrb[0].mxu0 %v2300
        %v3651 = vpop.f32.mrb[0].mxu0
        %v3652 = vadd.f32 %v3491, %v3651
        %v3653 = vpop.f32.mrb[0].mxu0
        %v3654 = vpop.f32.mrb[0].mxu0
        %v3655 = vadd.f32 %v3494, %v3654
        %v3656 = vpop.f32.mrb[0].mxu0
        %3657 = vmatprep.mubr.bf16.mxu0 0
        %3658 = vmatmul.mubr.bf16.gmra.mrb[0].mxu0 %v2303
        %v3659 = vpop.f32.mrb[0].mxu0
        %v3660 = vadd.f32 %v3499, %v3659
        %v3661 = vpop.f32.mrb[0].mxu0
        %v3662 = vpop.f32.mrb[0].mxu0
        %v3663 = vadd.f32 %v3502, %v3662
        %v3664 = vpop.f32.mrb[0].mxu0
        %3665 = vmatprep.mubr.bf16.mxu0 0
        %3666 = vmatmul.mubr.bf16.gmra.mrb[0].mxu0 %v2306
        %v3667 = vpop.f32.mrb[0].mxu0
        %v3668 = vadd.f32 %v3507, %v3667
        %v3669 = vpop.f32.mrb[0].mxu0
        %v3670 = vpop.f32.mrb[0].mxu0
        %v3671 = vadd.f32 %v3510, %v3670
        %v3672 = vpop.f32.mrb[0].mxu0
        %3673 = vmatprep.mubr.bf16.mxu0 0
        %3674 = vmatmul.mubr.bf16.gmra.mrb[0].mxu0 %v2309
        %v3675 = vpop.f32.mrb[0].mxu0
        %v3676 = vadd.f32 %v3515, %v3675
        %v3677 = vpop.f32.mrb[0].mxu0
        %v3678 = vpop.f32.mrb[0].mxu0
        %v3679 = vadd.f32 %v3518, %v3678
        %v3680 = vpop.f32.mrb[0].mxu0
        %3681 = vmatprep.mubr.bf16.mxu0 0
        %3682 = vmatmul.mubr.bf16.gmra.mrb[0].mxu0 %v2312
        %v3683 = vpop.f32.mrb[0].mxu0
        %v3684 = vadd.f32 %v3523, %v3683
        %v3685 = vpop.f32.mrb[0].mxu0
        %v3686 = vpop.f32.mrb[0].mxu0
        %v3687 = vadd.f32 %v3526, %v3686
        %v3688 = vpop.f32.mrb[0].mxu0
        %3689 = vmatprep.mubr.bf16.mxu0 0
        %3690 = vmatmul.mubr.bf16.gmra.mrb[0].mxu0 %v2315
        %v3691 = vpop.f32.mrb[0].mxu0
        %v3692 = vadd.f32 %v3531, %v3691
        %v3693 = vpop.f32.mrb[0].mxu0
        %v3694 = vpop.f32.mrb[0].mxu0
        %v3695 = vadd.f32 %v3534, %v3694
        %v3696 = vpop.f32.mrb[0].mxu0
        %3697 = vmatprep.mubr.bf16.mxu0 0
        %3698 = vmatmul.mubr.bf16.gmra.mrb[0].mxu0 %v2318
        %v3699 = vpop.f32.mrb[0].mxu0
        %v3700 = vadd.f32 %v3539, %v3699
        %v3701 = vpop.f32.mrb[0].mxu0
        %v3702 = vpop.f32.mrb[0].mxu0
        %v3703 = vadd.f32 %v3542, %v3702
        %v3704 = vpop.f32.mrb[0].mxu0
        %3705 = vmatprep.mubr.bf16.mxu0 0
        %3706 = vmatmul.mubr.bf16.gmra.mrb[0].mxu0 %v2321
        %v3707 = vpop.f32.mrb[0].mxu0
        %v3708 = vadd.f32 %v3547, %v3707
        %v3709 = vpop.f32.mrb[0].mxu0
        %v3710 = vpop.f32.mrb[0].mxu0
        %v3711 = vadd.f32 %v3550, %v3710
        %v3712 = vpop.f32.mrb[0].mxu0
        %3713 = vmatprep.mubr.bf16.mxu0 0
        %3714 = vmatmul.mubr.bf16.gmra.mrb[0].mxu0 %v2324
        %v3715 = vpop.f32.mrb[0].mxu0
        %v3716 = vadd.f32 %v3555, %v3715
        %v3717 = vpop.f32.mrb[0].mxu0
        %v3718 = vpop.f32.mrb[0].mxu0
        %v3719 = vadd.f32 %v3558, %v3718
        %v3720 = vpop.f32.mrb[0].mxu0
        %3721 = vdwg.mxu0
        %v3722 = vlaneseq
        %v3723 = vshrl.u32 %v3722, 7
        %v3724 = vsub.s32 2, %v3723
        %v3725 = vrot.slane %v336, %v3724
        %v3726 = vmul.f32 %v3596, %v3725
        %v3727 = vmul.f32 %v3599, %v3725
        %v3728 = vmul.f32 %v3604, %v3725
        %v3729 = vmul.f32 %v3607, %v3725
        %v3730 = vmul.f32 %v3612, %v3725
        %v3731 = vmul.f32 %v3615, %v3725
        %v3732 = vmul.f32 %v3620, %v3725
        %v3733 = vmul.f32 %v3623, %v3725
        %v3734 = vmul.f32 %v3628, %v3725
        %v3735 = vmul.f32 %v3631, %v3725
        %v3736 = vmul.f32 %v3636, %v3725
        %v3737 = vmul.f32 %v3639, %v3725
        %v3738 = vmul.f32 %v3644, %v3725
        %v3739 = vmul.f32 %v3647, %v3725
        %v3740 = vmul.f32 %v3652, %v3725
        %v3741 = vmul.f32 %v3655, %v3725
        %v3742 = vmul.f32 %v3660, %v3725
        %v3743 = vmul.f32 %v3663, %v3725
        %v3744 = vmul.f32 %v3668, %v3725
        %v3745 = vmul.f32 %v3671, %v3725
        %v3746 = vmul.f32 %v3676, %v3725
        %v3747 = vmul.f32 %v3679, %v3725
        %v3748 = vmul.f32 %v3684, %v3725
        %v3749 = vmul.f32 %v3687, %v3725
        %v3750 = vmul.f32 %v3692, %v3725
        %v3751 = vmul.f32 %v3695, %v3725
        %v3752 = vmul.f32 %v3700, %v3725
        %v3753 = vmul.f32 %v3703, %v3725
        %v3754 = vmul.f32 %v3708, %v3725
        %v3755 = vmul.f32 %v3711, %v3725
        %v3756 = vmul.f32 %v3716, %v3725
        %v3757 = vmul.f32 %v3719, %v3725
        %v3758 = vlaneseq
        %v3759 = vshrl.u32 %v3758, 7
        %v3760 = vsub.s32 3, %v3759
        %v3761 = vrot.slane %v336, %v3760
        %v3762 = vadd.f32 %v3726, %v3761
        %v3763 = vadd.f32 %v3727, %v3761
        %v3764 = vadd.f32 %v3728, %v3761
        %v3765 = vadd.f32 %v3729, %v3761
        %v3766 = vadd.f32 %v3730, %v3761
        %v3767 = vadd.f32 %v3731, %v3761
        %v3768 = vadd.f32 %v3732, %v3761
        %v3769 = vadd.f32 %v3733, %v3761
        %v3770 = vadd.f32 %v3734, %v3761
        %v3771 = vadd.f32 %v3735, %v3761
        %v3772 = vadd.f32 %v3736, %v3761
        %v3773 = vadd.f32 %v3737, %v3761
        %v3774 = vadd.f32 %v3738, %v3761
        %v3775 = vadd.f32 %v3739, %v3761
        %v3776 = vadd.f32 %v3740, %v3761
        %v3777 = vadd.f32 %v3741, %v3761
        %v3778 = vadd.f32 %v3742, %v3761
        %v3779 = vadd.f32 %v3743, %v3761
        %v3780 = vadd.f32 %v3744, %v3761
        %v3781 = vadd.f32 %v3745, %v3761
        %v3782 = vadd.f32 %v3746, %v3761
        %v3783 = vadd.f32 %v3747, %v3761
        %v3784 = vadd.f32 %v3748, %v3761
        %v3785 = vadd.f32 %v3749, %v3761
        %v3786 = vadd.f32 %v3750, %v3761
        %v3787 = vadd.f32 %v3751, %v3761
        %v3788 = vadd.f32 %v3752, %v3761
        %v3789 = vadd.f32 %v3753, %v3761
        %v3790 = vadd.f32 %v3754, %v3761
        %v3791 = vadd.f32 %v3755, %v3761
        %v3792 = vadd.f32 %v3756, %v3761
        %v3793 = vadd.f32 %v3757, %v3761
        %vm3794 = vcmp.ge.f32.partialorder %v3762, 0.0
        %vm3795 = vcmp.ge.f32.partialorder %v3763, 0.0
        %vm3796 = vcmp.ge.f32.partialorder %v3764, 0.0
        %vm3797 = vcmp.ge.f32.partialorder %v3765, 0.0
        %vm3798 = vcmp.ge.f32.partialorder %v3766, 0.0
        %vm3799 = vcmp.ge.f32.partialorder %v3767, 0.0
        %vm3800 = vcmp.ge.f32.partialorder %v3768, 0.0
        %vm3801 = vcmp.ge.f32.partialorder %v3769, 0.0
        %vm3802 = vcmp.ge.f32.partialorder %v3770, 0.0
        %vm3803 = vcmp.ge.f32.partialorder %v3771, 0.0
        %vm3804 = vcmp.ge.f32.partialorder %v3772, 0.0
        %vm3805 = vcmp.ge.f32.partialorder %v3773, 0.0
        %vm3806 = vcmp.ge.f32.partialorder %v3774, 0.0
        %vm3807 = vcmp.ge.f32.partialorder %v3775, 0.0
        %vm3808 = vcmp.ge.f32.partialorder %v3776, 0.0
        %vm3809 = vcmp.ge.f32.partialorder %v3777, 0.0
        %vm3810 = vcmp.ge.f32.partialorder %v3778, 0.0
        %vm3811 = vcmp.ge.f32.partialorder %v3779, 0.0
        %vm3812 = vcmp.ge.f32.partialorder %v3780, 0.0
        %vm3813 = vcmp.ge.f32.partialorder %v3781, 0.0
        %vm3814 = vcmp.ge.f32.partialorder %v3782, 0.0
        %vm3815 = vcmp.ge.f32.partialorder %v3783, 0.0
        %vm3816 = vcmp.ge.f32.partialorder %v3784, 0.0
        %vm3817 = vcmp.ge.f32.partialorder %v3785, 0.0
        %vm3818 = vcmp.ge.f32.partialorder %v3786, 0.0
        %vm3819 = vcmp.ge.f32.partialorder %v3787, 0.0
        %vm3820 = vcmp.ge.f32.partialorder %v3788, 0.0
        %vm3821 = vcmp.ge.f32.partialorder %v3789, 0.0
        %vm3822 = vcmp.ge.f32.partialorder %v3790, 0.0
        %vm3823 = vcmp.ge.f32.partialorder %v3791, 0.0
        %vm3824 = vcmp.ge.f32.partialorder %v3792, 0.0
        %vm3825 = vcmp.ge.f32.partialorder %v3793, 0.0
        %v3826 = vlaneseq
        %v3827 = vshrl.u32 %v3826, 7
        %v3828 = vsub.s32 4, %v3827
        %v3829 = vrot.slane %v336, %v3828
        %v3830 = vmul.f32 %v3829, %v3762
        %v3831 = vmul.f32 %v3829, %v3763
        %v3832 = vmul.f32 %v3829, %v3764
        %v3833 = vmul.f32 %v3829, %v3765
        %v3834 = vmul.f32 %v3829, %v3766
        %v3835 = vmul.f32 %v3829, %v3767
        %v3836 = vmul.f32 %v3829, %v3768
        %v3837 = vmul.f32 %v3829, %v3769
        %v3838 = vmul.f32 %v3829, %v3770
        %v3839 = vmul.f32 %v3829, %v3771
        %v3840 = vmul.f32 %v3829, %v3772
        %v3841 = vmul.f32 %v3829, %v3773
        %v3842 = vmul.f32 %v3829, %v3774
        %v3843 = vmul.f32 %v3829, %v3775
        %v3844 = vmul.f32 %v3829, %v3776
        %v3845 = vmul.f32 %v3829, %v3777
        %v3846 = vmul.f32 %v3829, %v3778
        %v3847 = vmul.f32 %v3829, %v3779
        %v3848 = vmul.f32 %v3829, %v3780
        %v3849 = vmul.f32 %v3829, %v3781
        %v3850 = vmul.f32 %v3829, %v3782
        %v3851 = vmul.f32 %v3829, %v3783
        %v3852 = vmul.f32 %v3829, %v3784
        %v3853 = vmul.f32 %v3829, %v3785
        %v3854 = vmul.f32 %v3829, %v3786
        %v3855 = vmul.f32 %v3829, %v3787
        %v3856 = vmul.f32 %v3829, %v3788
        %v3857 = vmul.f32 %v3829, %v3789
        %v3858 = vmul.f32 %v3829, %v3790
        %v3859 = vmul.f32 %v3829, %v3791
        %v3860 = vmul.f32 %v3829, %v3792
        %v3861 = vmul.f32 %v3829, %v3793
        %v3862 = vsel %vm3794, %v3762, %v3830
        %v3863 = vsel %vm3795, %v3763, %v3831
        %v3864 = vsel %vm3796, %v3764, %v3832
        %v3865 = vsel %vm3797, %v3765, %v3833
        %v3866 = vsel %vm3798, %v3766, %v3834
        %v3867 = vsel %vm3799, %v3767, %v3835
        %v3868 = vsel %vm3800, %v3768, %v3836
        %v3869 = vsel %vm3801, %v3769, %v3837
        %v3870 = vsel %vm3802, %v3770, %v3838
        %v3871 = vsel %vm3803, %v3771, %v3839
        %v3872 = vsel %vm3804, %v3772, %v3840
        %v3873 = vsel %vm3805, %v3773, %v3841
        %v3874 = vsel %vm3806, %v3774, %v3842
        %v3875 = vsel %vm3807, %v3775, %v3843
        %v3876 = vsel %vm3808, %v3776, %v3844
        %v3877 = vsel %vm3809, %v3777, %v3845
        %v3878 = vsel %vm3810, %v3778, %v3846
        %v3879 = vsel %vm3811, %v3779, %v3847
        %v3880 = vsel %vm3812, %v3780, %v3848
        %v3881 = vsel %vm3813, %v3781, %v3849
        %v3882 = vsel %vm3814, %v3782, %v3850
        %v3883 = vsel %vm3815, %v3783, %v3851
        %v3884 = vsel %vm3816, %v3784, %v3852
        %v3885 = vsel %vm3817, %v3785, %v3853
        %v3886 = vsel %vm3818, %v3786, %v3854
        %v3887 = vsel %vm3819, %v3787, %v3855
        %v3888 = vsel %vm3820, %v3788, %v3856
        %v3889 = vsel %vm3821, %v3789, %v3857
        %v3890 = vsel %vm3822, %v3790, %v3858
        %v3891 = vsel %vm3823, %v3791, %v3859
        %v3892 = vsel %vm3824, %v3792, %v3860
        %v3893 = vsel %vm3825, %v3793, %v3861
        %v3894 = vpack.c.bf16 %v3863, %v3862
        %v3895 = vpack.c.bf16 %v3865, %v3864
        %v3896 = vpack.c.bf16 %v3867, %v3866
        %v3897 = vpack.c.bf16 %v3869, %v3868
        %v3898 = vpack.c.bf16 %v3871, %v3870
        %v3899 = vpack.c.bf16 %v3873, %v3872
        %v3900 = vpack.c.bf16 %v3875, %v3874
        %v3901 = vpack.c.bf16 %v3877, %v3876
        %v3902 = vpack.c.bf16 %v3879, %v3878
        %v3903 = vpack.c.bf16 %v3881, %v3880
        %v3904 = vpack.c.bf16 %v3883, %v3882
        %v3905 = vpack.c.bf16 %v3885, %v3884
        %v3906 = vpack.c.bf16 %v3887, %v3886
        %v3907 = vpack.c.bf16 %v3889, %v3888
        %v3908 = vpack.c.bf16 %v3891, %v3890
        %v3909 = vpack.c.bf16 %v3893, %v3892
        %v3926 = vunpack.c.l.b16 %v3894
        %v3927 = vunpack.c.h.b16 %v3894
        %v3928 = vunpack.c.l.b16 %v3895
        %v3929 = vunpack.c.h.b16 %v3895
        %v3930 = vunpack.c.l.b16 %v3896
        %v3931 = vunpack.c.h.b16 %v3896
        %v3932 = vunpack.c.l.b16 %v3897
        %v3933 = vunpack.c.h.b16 %v3897
        %v3934 = vunpack.c.l.b16 %v3898
        %v3935 = vunpack.c.h.b16 %v3898
        %v3936 = vunpack.c.l.b16 %v3899
        %v3937 = vunpack.c.h.b16 %v3899
        %v3938 = vunpack.c.l.b16 %v3900
        %v3939 = vunpack.c.h.b16 %v3900
        %v3940 = vunpack.c.l.b16 %v3901
        %v3941 = vunpack.c.h.b16 %v3901
        %v3942 = vunpack.c.l.b16 %v3902
        %v3943 = vunpack.c.h.b16 %v3902
        %v3944 = vunpack.c.l.b16 %v3903
        %v3945 = vunpack.c.h.b16 %v3903
        %v3946 = vunpack.c.l.b16 %v3904
        %v3947 = vunpack.c.h.b16 %v3904
        %v3948 = vunpack.c.l.b16 %v3905
        %v3949 = vunpack.c.h.b16 %v3905
        %v3950 = vunpack.c.l.b16 %v3906
        %v3951 = vunpack.c.h.b16 %v3906
        %v3952 = vunpack.c.l.b16 %v3907
        %v3953 = vunpack.c.h.b16 %v3907
        %v3954 = vunpack.c.l.b16 %v3908
        %v3955 = vunpack.c.h.b16 %v3908
        %v3956 = vunpack.c.l.b16 %v3909
        %v3957 = vunpack.c.h.b16 %v3909
        %v3958 = vpack.c.b16 %v3926, %v3926
        %v3959 = vpack.c.b16 %v3927, %v3927
        %v3960 = vpack.c.b16 %v3928, %v3928
        %v3961 = vpack.c.b16 %v3929, %v3929
        %v3962 = vpack.c.b16 %v3930, %v3930
        %v3963 = vpack.c.b16 %v3931, %v3931
        %v3964 = vpack.c.b16 %v3932, %v3932
        %v3965 = vpack.c.b16 %v3933, %v3933
        %v3966 = vpack.c.b16 %v3934, %v3934
        %v3967 = vpack.c.b16 %v3935, %v3935
        %v3968 = vpack.c.b16 %v3936, %v3936
        %v3969 = vpack.c.b16 %v3937, %v3937
        %v3970 = vpack.c.b16 %v3938, %v3938
        %v3971 = vpack.c.b16 %v3939, %v3939
        %v3972 = vpack.c.b16 %v3940, %v3940
        %v3973 = vpack.c.b16 %v3941, %v3941
        %v3974 = vpack.c.b16 %v3942, %v3942
        %v3975 = vpack.c.b16 %v3943, %v3943
        %v3976 = vpack.c.b16 %v3944, %v3944
        %v3977 = vpack.c.b16 %v3945, %v3945
        %v3978 = vpack.c.b16 %v3946, %v3946
        %v3979 = vpack.c.b16 %v3947, %v3947
        %v3980 = vpack.c.b16 %v3948, %v3948
        %v3981 = vpack.c.b16 %v3949, %v3949
        %v3982 = vpack.c.b16 %v3950, %v3950
        %v3983 = vpack.c.b16 %v3951, %v3951
        %v3984 = vpack.c.b16 %v3952, %v3952
        %v3985 = vpack.c.b16 %v3953, %v3953
        %v3986 = vpack.c.b16 %v3954, %v3954
        %v3987 = vpack.c.b16 %v3955, %v3955
        %v3988 = vpack.c.b16 %v3956, %v3956
        %v3989 = vpack.c.b16 %v3957, %v3957
        %v3991 = vshrl.u32 %v3958, 16
        %v3993 = vrot.slane %v3991, 7
        %v3994 = vshll.u32 %v3958, 16
        %v3996 = vor.u32 %v3993, %v3994
        %v3997 = vrot.slane %v3993, 4
        %v3999 = vshrl.u32 %v3959, 16
        %v4001 = vrot.slane %v3999, 7
        %v4002 = vshll.u32 %v3959, 16
        %v4004 = vor.u32 %v4001, %v4002
        %v4005 = vsel %vm507, %v3997, %v4004
        %v4006 = vrot.slane %v4001, 4
        %v4008 = vshrl.u32 %v3960, 16
        %v4010 = vrot.slane %v4008, 7
        %v4011 = vshll.u32 %v3960, 16
        %v4013 = vor.u32 %v4010, %v4011
        %v4014 = vrot.slane %v4010, 4
        %v4016 = vshrl.u32 %v3961, 16
        %v4018 = vrot.slane %v4016, 7
        %v4019 = vshll.u32 %v3961, 16
        %v4021 = vor.u32 %v4018, %v4019
        %v4022 = vsel %vm507, %v4014, %v4021
        %v4023 = vrot.slane %v4018, 4
        %v4025 = vshrl.u32 %v3962, 16
        %v4027 = vrot.slane %v4025, 7
        %v4028 = vshll.u32 %v3962, 16
        %v4030 = vor.u32 %v4027, %v4028
        %v4031 = vrot.slane %v4027, 4
        %v4033 = vshrl.u32 %v3963, 16
        %v4035 = vrot.slane %v4033, 7
        %v4036 = vshll.u32 %v3963, 16
        %v4038 = vor.u32 %v4035, %v4036
        %v4039 = vsel %vm507, %v4031, %v4038
        %v4040 = vrot.slane %v4035, 4
        %v4042 = vshrl.u32 %v3964, 16
        %v4044 = vrot.slane %v4042, 7
        %v4045 = vshll.u32 %v3964, 16
        %v4047 = vor.u32 %v4044, %v4045
        %v4048 = vrot.slane %v4044, 4
        %v4050 = vshrl.u32 %v3965, 16
        %v4052 = vrot.slane %v4050, 7
        %v4053 = vshll.u32 %v3965, 16
        %v4055 = vor.u32 %v4052, %v4053
        %v4056 = vsel %vm507, %v4048, %v4055
        %v4057 = vrot.slane %v4052, 4
        %v4059 = vshrl.u32 %v3966, 16
        %v4061 = vrot.slane %v4059, 7
        %v4062 = vshll.u32 %v3966, 16
        %v4064 = vor.u32 %v4061, %v4062
        %v4065 = vrot.slane %v4061, 4
        %v4067 = vshrl.u32 %v3967, 16
        %v4069 = vrot.slane %v4067, 7
        %v4070 = vshll.u32 %v3967, 16
        %v4072 = vor.u32 %v4069, %v4070
        %v4073 = vsel %vm507, %v4065, %v4072
        %v4074 = vrot.slane %v4069, 4
        %v4076 = vshrl.u32 %v3968, 16
        %v4078 = vrot.slane %v4076, 7
        %v4079 = vshll.u32 %v3968, 16
        %v4081 = vor.u32 %v4078, %v4079
        %v4082 = vrot.slane %v4078, 4
        %v4084 = vshrl.u32 %v3969, 16
        %v4086 = vrot.slane %v4084, 7
        %v4087 = vshll.u32 %v3969, 16
        %v4089 = vor.u32 %v4086, %v4087
        %v4090 = vsel %vm507, %v4082, %v4089
        %v4091 = vrot.slane %v4086, 4
        %v4093 = vshrl.u32 %v3970, 16
        %v4095 = vrot.slane %v4093, 7
        %v4096 = vshll.u32 %v3970, 16
        %v4098 = vor.u32 %v4095, %v4096
        %v4099 = vrot.slane %v4095, 4
        %v4101 = vshrl.u32 %v3971, 16
        %v4103 = vrot.slane %v4101, 7
        %v4104 = vshll.u32 %v3971, 16
        %v4106 = vor.u32 %v4103, %v4104
        %v4107 = vsel %vm507, %v4099, %v4106
        %v4108 = vrot.slane %v4103, 4
        %v4110 = vshrl.u32 %v3972, 16
        %v4112 = vrot.slane %v4110, 7
        %v4113 = vshll.u32 %v3972, 16
        %v4115 = vor.u32 %v4112, %v4113
        %v4116 = vrot.slane %v4112, 4
        %v4118 = vshrl.u32 %v3973, 16
        %v4120 = vrot.slane %v4118, 7
        %v4121 = vshll.u32 %v3973, 16
        %v4123 = vor.u32 %v4120, %v4121
        %v4124 = vsel %vm507, %v4116, %v4123
        %v4125 = vrot.slane %v4120, 4
        %v4127 = vshrl.u32 %v3974, 16
        %v4129 = vrot.slane %v4127, 7
        %v4130 = vshll.u32 %v3974, 16
        %v4132 = vor.u32 %v4129, %v4130
        %v4133 = vrot.slane %v4129, 4
        %v4135 = vshrl.u32 %v3975, 16
        %v4137 = vrot.slane %v4135, 7
        %v4138 = vshll.u32 %v3975, 16
        %v4140 = vor.u32 %v4137, %v4138
        %v4141 = vsel %vm507, %v4133, %v4140
        %v4142 = vrot.slane %v4137, 4
        %v4144 = vshrl.u32 %v3976, 16
        %v4146 = vrot.slane %v4144, 7
        %v4147 = vshll.u32 %v3976, 16
        %v4149 = vor.u32 %v4146, %v4147
        %v4150 = vrot.slane %v4146, 4
        %v4152 = vshrl.u32 %v3977, 16
        %v4154 = vrot.slane %v4152, 7
        %v4155 = vshll.u32 %v3977, 16
        %v4157 = vor.u32 %v4154, %v4155
        %v4158 = vsel %vm507, %v4150, %v4157
        %v4159 = vrot.slane %v4154, 4
        %v4161 = vshrl.u32 %v3978, 16
        %v4163 = vrot.slane %v4161, 7
        %v4164 = vshll.u32 %v3978, 16
        %v4166 = vor.u32 %v4163, %v4164
        %v4167 = vrot.slane %v4163, 4
        %v4169 = vshrl.u32 %v3979, 16
        %v4171 = vrot.slane %v4169, 7
        %v4172 = vshll.u32 %v3979, 16
        %v4174 = vor.u32 %v4171, %v4172
        %v4175 = vsel %vm507, %v4167, %v4174
        %v4176 = vrot.slane %v4171, 4
        %v4178 = vshrl.u32 %v3980, 16
        %v4180 = vrot.slane %v4178, 7
        %v4181 = vshll.u32 %v3980, 16
        %v4183 = vor.u32 %v4180, %v4181
        %v4184 = vrot.slane %v4180, 4
        %v4186 = vshrl.u32 %v3981, 16
        %v4188 = vrot.slane %v4186, 7
        %v4189 = vshll.u32 %v3981, 16
        %v4191 = vor.u32 %v4188, %v4189
        %v4192 = vsel %vm507, %v4184, %v4191
        %v4193 = vrot.slane %v4188, 4
        %v4195 = vshrl.u32 %v3982, 16
        %v4197 = vrot.slane %v4195, 7
        %v4198 = vshll.u32 %v3982, 16
        %v4200 = vor.u32 %v4197, %v4198
        %v4201 = vrot.slane %v4197, 4
        %v4203 = vshrl.u32 %v3983, 16
        %v4205 = vrot.slane %v4203, 7
        %v4206 = vshll.u32 %v3983, 16
        %v4208 = vor.u32 %v4205, %v4206
        %v4209 = vsel %vm507, %v4201, %v4208
        %v4210 = vrot.slane %v4205, 4
        %v4212 = vshrl.u32 %v3984, 16
        %v4214 = vrot.slane %v4212, 7
        %v4215 = vshll.u32 %v3984, 16
        %v4217 = vor.u32 %v4214, %v4215
        %v4218 = vrot.slane %v4214, 4
        %v4220 = vshrl.u32 %v3985, 16
        %v4222 = vrot.slane %v4220, 7
        %v4223 = vshll.u32 %v3985, 16
        %v4225 = vor.u32 %v4222, %v4223
        %v4226 = vsel %vm507, %v4218, %v4225
        %v4227 = vrot.slane %v4222, 4
        %v4229 = vshrl.u32 %v3986, 16
        %v4231 = vrot.slane %v4229, 7
        %v4232 = vshll.u32 %v3986, 16
        %v4234 = vor.u32 %v4231, %v4232
        %v4235 = vrot.slane %v4231, 4
        %v4237 = vshrl.u32 %v3987, 16
        %v4239 = vrot.slane %v4237, 7
        %v4240 = vshll.u32 %v3987, 16
        %v4242 = vor.u32 %v4239, %v4240
        %v4243 = vsel %vm507, %v4235, %v4242
        %v4244 = vrot.slane %v4239, 4
        %v4246 = vshrl.u32 %v3988, 16
        %v4248 = vrot.slane %v4246, 7
        %v4249 = vshll.u32 %v3988, 16
        %v4251 = vor.u32 %v4248, %v4249
        %v4252 = vrot.slane %v4248, 4
        %v4254 = vshrl.u32 %v3989, 16
        %v4256 = vrot.slane %v4254, 7
        %v4257 = vshll.u32 %v3989, 16
        %v4259 = vor.u32 %v4256, %v4257
        %v4260 = vsel %vm507, %v4252, %v4259
        %v4261 = vrot.slane %v4256, 4
        %v4310 = vsel %vm831, %v3996, %v994
        %4311 = vst [vmem:[%s828] sm:$0xf] %v4310
        %4312 = vst [vmem:[%s828 + $0x4] sm:$0xf] %v4005
        %v4313 = vld [vmem:[%s828 + $0x8] sm:$0x1]
        %v4314 = vsel %vm837, %v4006, %v4313
        %4315 = vst [vmem:[%s828 + $0x8] sm:$0x1] %v4314
        %v4316 = vld [vmem:[%s828 + $0xc] sm:$0xf]
        %v4317 = vsel %vm831, %v4013, %v4316
        %4318 = vst [vmem:[%s828 + $0xc] sm:$0xf] %v4317
        %4319 = vst [vmem:[%s828 + $0x10] sm:$0xf] %v4022
        %v4320 = vld [vmem:[%s828 + $0x14] sm:$0x1]
        %v4321 = vsel %vm837, %v4023, %v4320
        %4322 = vst [vmem:[%s828 + $0x14] sm:$0x1] %v4321
        %v4323 = vld [vmem:[%s828 + $0x18] sm:$0xf]
        %v4324 = vsel %vm831, %v4030, %v4323
        %4325 = vst [vmem:[%s828 + $0x18] sm:$0xf] %v4324
        %4326 = vst [vmem:[%s828 + $0x1c] sm:$0xf] %v4039
        %v4327 = vld [vmem:[%s828 + $0x20] sm:$0x1]
        %v4328 = vsel %vm837, %v4040, %v4327
        %4329 = vst [vmem:[%s828 + $0x20] sm:$0x1] %v4328
        %v4330 = vld [vmem:[%s828 + $0x24] sm:$0xf]
        %v4331 = vsel %vm831, %v4047, %v4330
        %4332 = vst [vmem:[%s828 + $0x24] sm:$0xf] %v4331
        %4333 = vst [vmem:[%s828 + $0x28] sm:$0xf] %v4056
        %v4334 = vld [vmem:[%s828 + $0x2c] sm:$0x1]
        %v4335 = vsel %vm837, %v4057, %v4334
        %4336 = vst [vmem:[%s828 + $0x2c] sm:$0x1] %v4335
        %v4337 = vld [vmem:[%s828 + $0x30] sm:$0xf]
        %v4338 = vsel %vm831, %v4064, %v4337
        %4339 = vst [vmem:[%s828 + $0x30] sm:$0xf] %v4338
        %4340 = vst [vmem:[%s828 + $0x34] sm:$0xf] %v4073
        %v4341 = vld [vmem:[%s828 + $0x38] sm:$0x1]
        %v4342 = vsel %vm837, %v4074, %v4341
        %4343 = vst [vmem:[%s828 + $0x38] sm:$0x1] %v4342
        %v4344 = vld [vmem:[%s828 + $0x3c] sm:$0xf]
        %v4345 = vsel %vm831, %v4081, %v4344
        %4346 = vst [vmem:[%s828 + $0x3c] sm:$0xf] %v4345
        %4347 = vst [vmem:[%s828 + $0x40] sm:$0xf] %v4090
        %v4348 = vld [vmem:[%s828 + $0x44] sm:$0x1]
        %v4349 = vsel %vm837, %v4091, %v4348
        %4350 = vst [vmem:[%s828 + $0x44] sm:$0x1] %v4349
        %v4351 = vld [vmem:[%s828 + $0x48] sm:$0xf]
        %v4352 = vsel %vm831, %v4098, %v4351
        %4353 = vst [vmem:[%s828 + $0x48] sm:$0xf] %v4352
        %4354 = vst [vmem:[%s828 + $0x4c] sm:$0xf] %v4107
        %v4355 = vld [vmem:[%s828 + $0x50] sm:$0x1]
        %v4356 = vsel %vm837, %v4108, %v4355
        %4357 = vst [vmem:[%s828 + $0x50] sm:$0x1] %v4356
        %v4358 = vld [vmem:[%s828 + $0x54] sm:$0xf]
        %v4359 = vsel %vm831, %v4115, %v4358
        %4360 = vst [vmem:[%s828 + $0x54] sm:$0xf] %v4359
        %4361 = vst [vmem:[%s828 + $0x58] sm:$0xf] %v4124
        %v4362 = vld [vmem:[%s828 + $0x5c] sm:$0x1]
        %v4363 = vsel %vm837, %v4125, %v4362
        %4364 = vst [vmem:[%s828 + $0x5c] sm:$0x1] %v4363
        %v4365 = vld [vmem:[%s828 + $0x60] sm:$0xf]
        %v4366 = vsel %vm831, %v4132, %v4365
        %4367 = vst [vmem:[%s828 + $0x60] sm:$0xf] %v4366
        %4368 = vst [vmem:[%s828 + $0x64] sm:$0xf] %v4141
        %v4369 = vld [vmem:[%s828 + $0x68] sm:$0x1]
        %v4370 = vsel %vm837, %v4142, %v4369
        %4371 = vst [vmem:[%s828 + $0x68] sm:$0x1] %v4370
        %v4372 = vld [vmem:[%s828 + $0x6c] sm:$0xf]
        %v4373 = vsel %vm831, %v4149, %v4372
        %4374 = vst [vmem:[%s828 + $0x6c] sm:$0xf] %v4373
        %4375 = vst [vmem:[%s828 + $0x70] sm:$0xf] %v4158
        %v4376 = vld [vmem:[%s828 + $0x74] sm:$0x1]
        %v4377 = vsel %vm837, %v4159, %v4376
        %4378 = vst [vmem:[%s828 + $0x74] sm:$0x1] %v4377
        %v4379 = vld [vmem:[%s828 + $0x78] sm:$0xf]
        %v4380 = vsel %vm831, %v4166, %v4379
        %4381 = vst [vmem:[%s828 + $0x78] sm:$0xf] %v4380
        %4382 = vst [vmem:[%s828 + $0x7c] sm:$0xf] %v4175
        %v4383 = vld [vmem:[%s828 + $0x80] sm:$0x1]
        %v4384 = vsel %vm837, %v4176, %v4383
        %4385 = vst [vmem:[%s828 + $0x80] sm:$0x1] %v4384
        %v4386 = vld [vmem:[%s828 + $0x84] sm:$0xf]
        %v4387 = vsel %vm831, %v4183, %v4386
        %4388 = vst [vmem:[%s828 + $0x84] sm:$0xf] %v4387
        %4389 = vst [vmem:[%s828 + $0x88] sm:$0xf] %v4192
        %v4390 = vld [vmem:[%s828 + $0x8c] sm:$0x1]
        %v4391 = vsel %vm837, %v4193, %v4390
        %4392 = vst [vmem:[%s828 + $0x8c] sm:$0x1] %v4391
        %v4393 = vld [vmem:[%s828 + $0x90] sm:$0xf]
        %v4394 = vsel %vm831, %v4200, %v4393
        %4395 = vst [vmem:[%s828 + $0x90] sm:$0xf] %v4394
        %4396 = vst [vmem:[%s828 + $0x94] sm:$0xf] %v4209
        %v4397 = vld [vmem:[%s828 + $0x98] sm:$0x1]
        %v4398 = vsel %vm837, %v4210, %v4397
        %4399 = vst [vmem:[%s828 + $0x98] sm:$0x1] %v4398
        %v4400 = vld [vmem:[%s828 + $0x9c] sm:$0xf]
        %v4401 = vsel %vm831, %v4217, %v4400
        %4402 = vst [vmem:[%s828 + $0x9c] sm:$0xf] %v4401
        %4403 = vst [vmem:[%s828 + $0xa0] sm:$0xf] %v4226
        %v4404 = vld [vmem:[%s828 + $0xa4] sm:$0x1]
        %v4405 = vsel %vm837, %v4227, %v4404
        %4406 = vst [vmem:[%s828 + $0xa4] sm:$0x1] %v4405
        %v4407 = vld [vmem:[%s828 + $0xa8] sm:$0xf]
        %v4408 = vsel %vm831, %v4234, %v4407
        %4409 = vst [vmem:[%s828 + $0xa8] sm:$0xf] %v4408
        %4410 = vst [vmem:[%s828 + $0xac] sm:$0xf] %v4243
        %v4411 = vld [vmem:[%s828 + $0xb0] sm:$0x1]
        %v4412 = vsel %vm837, %v4244, %v4411
        %4413 = vst [vmem:[%s828 + $0xb0] sm:$0x1] %v4412
        %v4414 = vld [vmem:[%s828 + $0xb4] sm:$0xf]
        %v4415 = vsel %vm831, %v4251, %v4414
        %4416 = vst [vmem:[%s828 + $0xb4] sm:$0xf] %v4415
        %4417 = vst [vmem:[%s828 + $0xb8] sm:$0xf] %v4260
        %v4418 = vld [vmem:[%s828 + $0xbc] sm:$0x1]
        %v4419 = vsel %vm837, %v4261, %v4418
        %4420 = vst [vmem:[%s828 + $0xbc] sm:$0x1] %v4419
        %v4421 = vld [vmem:[#allocation2] sm:$0xf]
        %v4422 = vld [vmem:[#allocation2 + $0x4] sm:$0xf]
        %v4423 = vld [vmem:[#allocation2 + $0x8] sm:$0x1]
        %v4424 = vld [vmem:[#allocation2 + $0xc] sm:$0xf]
        %v4425 = vld [vmem:[#allocation2 + $0x10] sm:$0xf]
        %v4426 = vld [vmem:[#allocation2 + $0x14] sm:$0x1]
        %v4427 = vld [vmem:[#allocation2 + $0x18] sm:$0xf]
        %v4428 = vld [vmem:[#allocation2 + $0x1c] sm:$0xf]
        %v4429 = vld [vmem:[#allocation2 + $0x20] sm:$0x1]
        %v4430 = vld [vmem:[#allocation2 + $0x24] sm:$0xf]
        %v4431 = vld [vmem:[#allocation2 + $0x28] sm:$0xf]
        %v4432 = vld [vmem:[#allocation2 + $0x2c] sm:$0x1]
        %v4433 = vld [vmem:[#allocation2 + $0x30] sm:$0xf]
        %v4434 = vld [vmem:[#allocation2 + $0x34] sm:$0xf]
        %v4435 = vld [vmem:[#allocation2 + $0x38] sm:$0x1]
        %v4436 = vld [vmem:[#allocation2 + $0x3c] sm:$0xf]
        %v4437 = vld [vmem:[#allocation2 + $0x40] sm:$0xf]
        %v4438 = vld [vmem:[#allocation2 + $0x44] sm:$0x1]
        %v4439 = vld [vmem:[#allocation2 + $0x48] sm:$0xf]
        %v4440 = vld [vmem:[#allocation2 + $0x4c] sm:$0xf]
        %v4441 = vld [vmem:[#allocation2 + $0x50] sm:$0x1]
        %v4442 = vld [vmem:[#allocation2 + $0x54] sm:$0xf]
        %v4443 = vld [vmem:[#allocation2 + $0x58] sm:$0xf]
        %v4444 = vld [vmem:[#allocation2 + $0x5c] sm:$0x1]
        %v4445 = vld [vmem:[#allocation2 + $0x60] sm:$0xf]
        %v4446 = vld [vmem:[#allocation2 + $0x64] sm:$0xf]
        %v4447 = vld [vmem:[#allocation2 + $0x68] sm:$0x1]
        %v4448 = vld [vmem:[#allocation2 + $0x6c] sm:$0xf]
        %v4449 = vld [vmem:[#allocation2 + $0x70] sm:$0xf]
        %v4450 = vld [vmem:[#allocation2 + $0x74] sm:$0x1]
        %v4451 = vld [vmem:[#allocation2 + $0x78] sm:$0xf]
        %v4452 = vld [vmem:[#allocation2 + $0x7c] sm:$0xf]
        %v4453 = vld [vmem:[#allocation2 + $0x80] sm:$0x1]
        %v4454 = vld [vmem:[#allocation2 + $0x84] sm:$0xf]
        %v4455 = vld [vmem:[#allocation2 + $0x88] sm:$0xf]
        %v4456 = vld [vmem:[#allocation2 + $0x8c] sm:$0x1]
        %v4457 = vld [vmem:[#allocation2 + $0x90] sm:$0xf]
        %v4458 = vld [vmem:[#allocation2 + $0x94] sm:$0xf]
        %v4459 = vld [vmem:[#allocation2 + $0x98] sm:$0x1]
        %v4460 = vld [vmem:[#allocation2 + $0x9c] sm:$0xf]
        %v4461 = vld [vmem:[#allocation2 + $0xa0] sm:$0xf]
        %v4462 = vld [vmem:[#allocation2 + $0xa4] sm:$0x1]
        %v4463 = vld [vmem:[#allocation2 + $0xa8] sm:$0xf]
        %v4464 = vld [vmem:[#allocation2 + $0xac] sm:$0xf]
        %v4465 = vld [vmem:[#allocation2 + $0xb0] sm:$0x1]
        %v4466 = vld [vmem:[#allocation2 + $0xb4] sm:$0xf]
        %v4467 = vld [vmem:[#allocation2 + $0xb8] sm:$0xf]
        %v4468 = vld [vmem:[#allocation2 + $0xbc] sm:$0x1]
        %v4469 = vld [vmem:[%s828] sm:$0xf]
        %v4470 = vld [vmem:[%s828 + $0x4] sm:$0xf]
        %v4471 = vld [vmem:[%s828 + $0x8] sm:$0x1]
        %v4472 = vld [vmem:[%s828 + $0xc] sm:$0xf]
        %v4473 = vld [vmem:[%s828 + $0x10] sm:$0xf]
        %v4474 = vld [vmem:[%s828 + $0x14] sm:$0x1]
        %v4475 = vld [vmem:[%s828 + $0x18] sm:$0xf]
        %v4476 = vld [vmem:[%s828 + $0x1c] sm:$0xf]
        %v4477 = vld [vmem:[%s828 + $0x20] sm:$0x1]
        %v4478 = vld [vmem:[%s828 + $0x24] sm:$0xf]
        %v4479 = vld [vmem:[%s828 + $0x28] sm:$0xf]
        %v4480 = vld [vmem:[%s828 + $0x2c] sm:$0x1]
        %v4481 = vld [vmem:[%s828 + $0x30] sm:$0xf]
        %v4482 = vld [vmem:[%s828 + $0x34] sm:$0xf]
        %v4483 = vld [vmem:[%s828 + $0x38] sm:$0x1]
        %v4484 = vld [vmem:[%s828 + $0x3c] sm:$0xf]
        %v4485 = vld [vmem:[%s828 + $0x40] sm:$0xf]
        %v4486 = vld [vmem:[%s828 + $0x44] sm:$0x1]
        %v4487 = vld [vmem:[%s828 + $0x48] sm:$0xf]
        %v4488 = vld [vmem:[%s828 + $0x4c] sm:$0xf]
        %v4489 = vld [vmem:[%s828 + $0x50] sm:$0x1]
        %v4490 = vld [vmem:[%s828 + $0x54] sm:$0xf]
        %v4491 = vld [vmem:[%s828 + $0x58] sm:$0xf]
        %v4492 = vld [vmem:[%s828 + $0x5c] sm:$0x1]
        %v4493 = vld [vmem:[%s828 + $0x60] sm:$0xf]
        %v4494 = vld [vmem:[%s828 + $0x64] sm:$0xf]
        %v4495 = vld [vmem:[%s828 + $0x68] sm:$0x1]
        %v4496 = vld [vmem:[%s828 + $0x6c] sm:$0xf]
        %v4497 = vld [vmem:[%s828 + $0x70] sm:$0xf]
        %v4498 = vld [vmem:[%s828 + $0x74] sm:$0x1]
        %v4499 = vld [vmem:[%s828 + $0x78] sm:$0xf]
        %v4500 = vld [vmem:[%s828 + $0x7c] sm:$0xf]
        %v4501 = vld [vmem:[%s828 + $0x80] sm:$0x1]
        %v4502 = vld [vmem:[%s828 + $0x84] sm:$0xf]
        %v4503 = vld [vmem:[%s828 + $0x88] sm:$0xf]
        %v4504 = vld [vmem:[%s828 + $0x8c] sm:$0x1]
        %v4505 = vld [vmem:[%s828 + $0x90] sm:$0xf]
        %v4506 = vld [vmem:[%s828 + $0x94] sm:$0xf]
        %v4507 = vld [vmem:[%s828 + $0x98] sm:$0x1]
        %v4508 = vld [vmem:[%s828 + $0x9c] sm:$0xf]
        %v4509 = vld [vmem:[%s828 + $0xa0] sm:$0xf]
        %v4510 = vld [vmem:[%s828 + $0xa4] sm:$0x1]
        %v4511 = vld [vmem:[%s828 + $0xa8] sm:$0xf]
        %v4512 = vld [vmem:[%s828 + $0xac] sm:$0xf]
        %v4513 = vld [vmem:[%s828 + $0xb0] sm:$0x1]
        %v4514 = vld [vmem:[%s828 + $0xb4] sm:$0xf]
        %v4515 = vld [vmem:[%s828 + $0xb8] sm:$0xf]
        %v4516 = vld [vmem:[%s828 + $0xbc] sm:$0x1]
        %v4517 = vld [vmem:[%s1042] sm:$0xf]
        %v4518 = vld [vmem:[%s1042 + $0x4] sm:$0xf]
        %v4519 = vld [vmem:[%s1042 + $0x8] sm:$0x1]
        %v4520 = vld [vmem:[%s1042 + $0xc] sm:$0xf]
        %v4521 = vld [vmem:[%s1042 + $0x10] sm:$0xf]
        %v4522 = vld [vmem:[%s1042 + $0x14] sm:$0x1]
        %v4523 = vld [vmem:[%s1042 + $0x18] sm:$0xf]
        %v4524 = vld [vmem:[%s1042 + $0x1c] sm:$0xf]
        %v4525 = vld [vmem:[%s1042 + $0x20] sm:$0x1]
        %v4526 = vld [vmem:[%s1042 + $0x24] sm:$0xf]
        %v4527 = vld [vmem:[%s1042 + $0x28] sm:$0xf]
        %v4528 = vld [vmem:[%s1042 + $0x2c] sm:$0x1]
        %v4529 = vld [vmem:[%s1042 + $0x30] sm:$0xf]
        %v4530 = vld [vmem:[%s1042 + $0x34] sm:$0xf]
        %v4531 = vld [vmem:[%s1042 + $0x38] sm:$0x1]
        %v4532 = vld [vmem:[%s1042 + $0x3c] sm:$0xf]
        %v4533 = vld [vmem:[%s1042 + $0x40] sm:$0xf]
        %v4534 = vld [vmem:[%s1042 + $0x44] sm:$0x1]
        %v4535 = vld [vmem:[%s1042 + $0x48] sm:$0xf]
        %v4536 = vld [vmem:[%s1042 + $0x4c] sm:$0xf]
        %v4537 = vld [vmem:[%s1042 + $0x50] sm:$0x1]
        %v4538 = vld [vmem:[%s1042 + $0x54] sm:$0xf]
        %v4539 = vld [vmem:[%s1042 + $0x58] sm:$0xf]
        %v4540 = vld [vmem:[%s1042 + $0x5c] sm:$0x1]
        %v4541 = vld [vmem:[%s1042 + $0x60] sm:$0xf]
        %v4542 = vld [vmem:[%s1042 + $0x64] sm:$0xf]
        %v4543 = vld [vmem:[%s1042 + $0x68] sm:$0x1]
        %v4544 = vld [vmem:[%s1042 + $0x6c] sm:$0xf]
        %v4545 = vld [vmem:[%s1042 + $0x70] sm:$0xf]
        %v4546 = vld [vmem:[%s1042 + $0x74] sm:$0x1]
        %v4547 = vld [vmem:[%s1042 + $0x78] sm:$0xf]
        %v4548 = vld [vmem:[%s1042 + $0x7c] sm:$0xf]
        %v4549 = vld [vmem:[%s1042 + $0x80] sm:$0x1]
        %v4550 = vld [vmem:[%s1042 + $0x84] sm:$0xf]
        %v4551 = vld [vmem:[%s1042 + $0x88] sm:$0xf]
        %v4552 = vld [vmem:[%s1042 + $0x8c] sm:$0x1]
        %v4553 = vld [vmem:[%s1042 + $0x90] sm:$0xf]
        %v4554 = vld [vmem:[%s1042 + $0x94] sm:$0xf]
        %v4555 = vld [vmem:[%s1042 + $0x98] sm:$0x1]
        %v4556 = vld [vmem:[%s1042 + $0x9c] sm:$0xf]
        %v4557 = vld [vmem:[%s1042 + $0xa0] sm:$0xf]
        %v4558 = vld [vmem:[%s1042 + $0xa4] sm:$0x1]
        %v4559 = vld [vmem:[%s1042 + $0xa8] sm:$0xf]
        %v4560 = vld [vmem:[%s1042 + $0xac] sm:$0xf]
        %v4561 = vld [vmem:[%s1042 + $0xb0] sm:$0x1]
        %v4562 = vld [vmem:[%s1042 + $0xb4] sm:$0xf]
        %v4563 = vld [vmem:[%s1042 + $0xb8] sm:$0xf]
        %v4564 = vld [vmem:[%s1042 + $0xbc] sm:$0x1]
        %v4597 = vunpack.c.l.b16 %v4421
        %v4598 = vunpack.c.l.b16 %v4422
        %v4599 = vunpack.c.l.b16 %v4424
        %v4600 = vunpack.c.l.b16 %v4425
        %v4601 = vunpack.c.l.b16 %v4427
        %v4602 = vunpack.c.l.b16 %v4428
        %v4603 = vunpack.c.l.b16 %v4430
        %v4604 = vunpack.c.l.b16 %v4431
        %v4605 = vunpack.c.l.b16 %v4433
        %v4606 = vunpack.c.l.b16 %v4434
        %v4607 = vunpack.c.l.b16 %v4436
        %v4608 = vunpack.c.l.b16 %v4437
        %v4609 = vunpack.c.l.b16 %v4439
        %v4610 = vunpack.c.l.b16 %v4440
        %v4611 = vunpack.c.l.b16 %v4442
        %v4612 = vunpack.c.l.b16 %v4443
        %v4613 = vunpack.c.l.b16 %v4445
        %v4614 = vunpack.c.l.b16 %v4446
        %v4615 = vunpack.c.l.b16 %v4448
        %v4616 = vunpack.c.l.b16 %v4449
        %v4617 = vunpack.c.l.b16 %v4451
        %v4618 = vunpack.c.l.b16 %v4452
        %v4619 = vunpack.c.l.b16 %v4454
        %v4620 = vunpack.c.l.b16 %v4455
        %v4621 = vunpack.c.l.b16 %v4457
        %v4622 = vunpack.c.l.b16 %v4458
        %v4623 = vunpack.c.l.b16 %v4460
        %v4624 = vunpack.c.l.b16 %v4461
        %v4625 = vunpack.c.l.b16 %v4463
        %v4626 = vunpack.c.l.b16 %v4464
        %v4627 = vunpack.c.l.b16 %v4466
        %v4628 = vunpack.c.l.b16 %v4467
        %v4629 = vpack.c.b16 %v4598, %v4597
        %v4630 = vpack.c.b16 %v4600, %v4599
        %v4631 = vpack.c.b16 %v4602, %v4601
        %v4632 = vpack.c.b16 %v4604, %v4603
        %v4633 = vpack.c.b16 %v4606, %v4605
        %v4634 = vpack.c.b16 %v4608, %v4607
        %v4635 = vpack.c.b16 %v4610, %v4609
        %v4636 = vpack.c.b16 %v4612, %v4611
        %v4637 = vpack.c.b16 %v4614, %v4613
        %v4638 = vpack.c.b16 %v4616, %v4615
        %v4639 = vpack.c.b16 %v4618, %v4617
        %v4640 = vpack.c.b16 %v4620, %v4619
        %v4641 = vpack.c.b16 %v4622, %v4621
        %v4642 = vpack.c.b16 %v4624, %v4623
        %v4643 = vpack.c.b16 %v4626, %v4625
        %v4644 = vpack.c.b16 %v4628, %v4627
        %v4677 = vunpack.c.l.b16 %v4423
        %v4678 = vunpack.c.l.b16 %v4426
        %v4679 = vunpack.c.l.b16 %v4429
        %v4680 = vunpack.c.l.b16 %v4432
        %v4681 = vunpack.c.l.b16 %v4435
        %v4682 = vunpack.c.l.b16 %v4438
        %v4683 = vunpack.c.l.b16 %v4441
        %v4684 = vunpack.c.l.b16 %v4444
        %v4685 = vunpack.c.l.b16 %v4447
        %v4686 = vunpack.c.l.b16 %v4450
        %v4687 = vunpack.c.l.b16 %v4453
        %v4688 = vunpack.c.l.b16 %v4456
        %v4689 = vunpack.c.l.b16 %v4459
        %v4690 = vunpack.c.l.b16 %v4462
        %v4691 = vunpack.c.l.b16 %v4465
        %v4692 = vunpack.c.l.b16 %v4468
        %v4693 = vpack.c.b16 %v4677, %v4677
        %v4694 = vpack.c.b16 %v4678, %v4678
        %v4695 = vpack.c.b16 %v4679, %v4679
        %v4696 = vpack.c.b16 %v4680, %v4680
        %v4697 = vpack.c.b16 %v4681, %v4681
        %v4698 = vpack.c.b16 %v4682, %v4682
        %v4699 = vpack.c.b16 %v4683, %v4683
        %v4700 = vpack.c.b16 %v4684, %v4684
        %v4701 = vpack.c.b16 %v4685, %v4685
        %v4702 = vpack.c.b16 %v4686, %v4686
        %v4703 = vpack.c.b16 %v4687, %v4687
        %v4704 = vpack.c.b16 %v4688, %v4688
        %v4705 = vpack.c.b16 %v4689, %v4689
        %v4706 = vpack.c.b16 %v4690, %v4690
        %v4707 = vpack.c.b16 %v4691, %v4691
        %v4708 = vpack.c.b16 %v4692, %v4692
        %v4710 = vshrl.u32 %v4629, 16
        %v4712 = vshll.u32 %v4629, 16
        %v4714 = vrot.slane %v4712, 1
        %v4715 = vor.u32 %v4710, %v4714
        %v4717 = vshll.u32 %v4693, 16
        %v4719 = vrot.slane %v4717, 1
        %v4720 = vsel %vm1235, %v4715, %v4719
        %v4722 = vshrl.u32 %v4630, 16
        %v4724 = vshll.u32 %v4630, 16
        %v4726 = vrot.slane %v4724, 1
        %v4727 = vor.u32 %v4722, %v4726
        %v4729 = vshll.u32 %v4694, 16
        %v4731 = vrot.slane %v4729, 1
        %v4732 = vsel %vm1235, %v4727, %v4731
        %v4734 = vshrl.u32 %v4631, 16
        %v4736 = vshll.u32 %v4631, 16
        %v4738 = vrot.slane %v4736, 1
        %v4739 = vor.u32 %v4734, %v4738
        %v4741 = vshll.u32 %v4695, 16
        %v4743 = vrot.slane %v4741, 1
        %v4744 = vsel %vm1235, %v4739, %v4743
        %v4746 = vshrl.u32 %v4632, 16
        %v4748 = vshll.u32 %v4632, 16
        %v4750 = vrot.slane %v4748, 1
        %v4751 = vor.u32 %v4746, %v4750
        %v4753 = vshll.u32 %v4696, 16
        %v4755 = vrot.slane %v4753, 1
        %v4756 = vsel %vm1235, %v4751, %v4755
        %v4758 = vshrl.u32 %v4633, 16
        %v4760 = vshll.u32 %v4633, 16
        %v4762 = vrot.slane %v4760, 1
        %v4763 = vor.u32 %v4758, %v4762
        %v4765 = vshll.u32 %v4697, 16
        %v4767 = vrot.slane %v4765, 1
        %v4768 = vsel %vm1235, %v4763, %v4767
        %v4770 = vshrl.u32 %v4634, 16
        %v4772 = vshll.u32 %v4634, 16
        %v4774 = vrot.slane %v4772, 1
        %v4775 = vor.u32 %v4770, %v4774
        %v4777 = vshll.u32 %v4698, 16
        %v4779 = vrot.slane %v4777, 1
        %v4780 = vsel %vm1235, %v4775, %v4779
        %v4782 = vshrl.u32 %v4635, 16
        %v4784 = vshll.u32 %v4635, 16
        %v4786 = vrot.slane %v4784, 1
        %v4787 = vor.u32 %v4782, %v4786
        %v4789 = vshll.u32 %v4699, 16
        %v4791 = vrot.slane %v4789, 1
        %v4792 = vsel %vm1235, %v4787, %v4791
        %v4794 = vshrl.u32 %v4636, 16
        %v4796 = vshll.u32 %v4636, 16
        %v4798 = vrot.slane %v4796, 1
        %v4799 = vor.u32 %v4794, %v4798
        %v4801 = vshll.u32 %v4700, 16
        %v4803 = vrot.slane %v4801, 1
        %v4804 = vsel %vm1235, %v4799, %v4803
        %v4806 = vshrl.u32 %v4637, 16
        %v4808 = vshll.u32 %v4637, 16
        %v4810 = vrot.slane %v4808, 1
        %v4811 = vor.u32 %v4806, %v4810
        %v4813 = vshll.u32 %v4701, 16
        %v4815 = vrot.slane %v4813, 1
        %v4816 = vsel %vm1235, %v4811, %v4815
        %v4818 = vshrl.u32 %v4638, 16
        %v4820 = vshll.u32 %v4638, 16
        %v4822 = vrot.slane %v4820, 1
        %v4823 = vor.u32 %v4818, %v4822
        %v4825 = vshll.u32 %v4702, 16
        %v4827 = vrot.slane %v4825, 1
        %v4828 = vsel %vm1235, %v4823, %v4827
        %v4830 = vshrl.u32 %v4639, 16
        %v4832 = vshll.u32 %v4639, 16
        %v4834 = vrot.slane %v4832, 1
        %v4835 = vor.u32 %v4830, %v4834
        %v4837 = vshll.u32 %v4703, 16
        %v4839 = vrot.slane %v4837, 1
        %v4840 = vsel %vm1235, %v4835, %v4839
        %v4842 = vshrl.u32 %v4640, 16
        %v4844 = vshll.u32 %v4640, 16
        %v4846 = vrot.slane %v4844, 1
        %v4847 = vor.u32 %v4842, %v4846
        %v4849 = vshll.u32 %v4704, 16
        %v4851 = vrot.slane %v4849, 1
        %v4852 = vsel %vm1235, %v4847, %v4851
        %v4854 = vshrl.u32 %v4641, 16
        %v4856 = vshll.u32 %v4641, 16
        %v4858 = vrot.slane %v4856, 1
        %v4859 = vor.u32 %v4854, %v4858
        %v4861 = vshll.u32 %v4705, 16
        %v4863 = vrot.slane %v4861, 1
        %v4864 = vsel %vm1235, %v4859, %v4863
        %v4866 = vshrl.u32 %v4642, 16
        %v4868 = vshll.u32 %v4642, 16
        %v4870 = vrot.slane %v4868, 1
        %v4871 = vor.u32 %v4866, %v4870
        %v4873 = vshll.u32 %v4706, 16
        %v4875 = vrot.slane %v4873, 1
        %v4876 = vsel %vm1235, %v4871, %v4875
        %v4878 = vshrl.u32 %v4643, 16
        %v4880 = vshll.u32 %v4643, 16
        %v4882 = vrot.slane %v4880, 1
        %v4883 = vor.u32 %v4878, %v4882
        %v4885 = vshll.u32 %v4707, 16
        %v4887 = vrot.slane %v4885, 1
        %v4888 = vsel %vm1235, %v4883, %v4887
        %v4890 = vshrl.u32 %v4644, 16
        %v4892 = vshll.u32 %v4644, 16
        %v4894 = vrot.slane %v4892, 1
        %v4895 = vor.u32 %v4890, %v4894
        %v4897 = vshll.u32 %v4708, 16
        %v4899 = vrot.slane %v4897, 1
        %v4900 = vsel %vm1235, %v4895, %v4899
        %v4917 = vrot.slane %v4629, 1
        %v4918 = vrot.slane %v4693, 1
        %v4919 = vsel %vm1444, %v4917, %v4918
        %v4920 = vrot.slane %v4630, 1
        %v4921 = vrot.slane %v4694, 1
        %v4922 = vsel %vm1444, %v4920, %v4921
        %v4923 = vrot.slane %v4631, 1
        %v4924 = vrot.slane %v4695, 1
        %v4925 = vsel %vm1444, %v4923, %v4924
        %v4926 = vrot.slane %v4632, 1
        %v4927 = vrot.slane %v4696, 1
        %v4928 = vsel %vm1444, %v4926, %v4927
        %v4929 = vrot.slane %v4633, 1
        %v4930 = vrot.slane %v4697, 1
        %v4931 = vsel %vm1444, %v4929, %v4930
        %v4932 = vrot.slane %v4634, 1
        %v4933 = vrot.slane %v4698, 1
        %v4934 = vsel %vm1444, %v4932, %v4933
        %v4935 = vrot.slane %v4635, 1
        %v4936 = vrot.slane %v4699, 1
        %v4937 = vsel %vm1444, %v4935, %v4936
        %v4938 = vrot.slane %v4636, 1
        %v4939 = vrot.slane %v4700, 1
        %v4940 = vsel %vm1444, %v4938, %v4939
        %v4941 = vrot.slane %v4637, 1
        %v4942 = vrot.slane %v4701, 1
        %v4943 = vsel %vm1444, %v4941, %v4942
        %v4944 = vrot.slane %v4638, 1
        %v4945 = vrot.slane %v4702, 1
        %v4946 = vsel %vm1444, %v4944, %v4945
        %v4947 = vrot.slane %v4639, 1
        %v4948 = vrot.slane %v4703, 1
        %v4949 = vsel %vm1444, %v4947, %v4948
        %v4950 = vrot.slane %v4640, 1
        %v4951 = vrot.slane %v4704, 1
        %v4952 = vsel %vm1444, %v4950, %v4951
        %v4953 = vrot.slane %v4641, 1
        %v4954 = vrot.slane %v4705, 1
        %v4955 = vsel %vm1444, %v4953, %v4954
        %v4956 = vrot.slane %v4642, 1
        %v4957 = vrot.slane %v4706, 1
        %v4958 = vsel %vm1444, %v4956, %v4957
        %v4959 = vrot.slane %v4643, 1
        %v4960 = vrot.slane %v4707, 1
        %v4961 = vsel %vm1444, %v4959, %v4960
        %v4962 = vrot.slane %v4644, 1
        %v4963 = vrot.slane %v4708, 1
        %v4964 = vsel %vm1444, %v4962, %v4963
        %v5013 = vunpack.c.l.b16 %v4469
        %v5014 = vunpack.c.l.b16 %v4470
        %v5015 = vunpack.c.l.b16 %v4472
        %v5016 = vunpack.c.l.b16 %v4473
        %v5017 = vunpack.c.l.b16 %v4475
        %v5018 = vunpack.c.l.b16 %v4476
        %v5019 = vunpack.c.l.b16 %v4478
        %v5020 = vunpack.c.l.b16 %v4479
        %v5021 = vunpack.c.l.b16 %v4481
        %v5022 = vunpack.c.l.b16 %v4482
        %v5023 = vunpack.c.l.b16 %v4484
        %v5024 = vunpack.c.l.b16 %v4485
        %v5025 = vunpack.c.l.b16 %v4487
        %v5026 = vunpack.c.l.b16 %v4488
        %v5027 = vunpack.c.l.b16 %v4490
        %v5028 = vunpack.c.l.b16 %v4491
        %v5029 = vunpack.c.l.b16 %v4493
        %v5030 = vunpack.c.l.b16 %v4494
        %v5031 = vunpack.c.l.b16 %v4496
        %v5032 = vunpack.c.l.b16 %v4497
        %v5033 = vunpack.c.l.b16 %v4499
        %v5034 = vunpack.c.l.b16 %v4500
        %v5035 = vunpack.c.l.b16 %v4502
        %v5036 = vunpack.c.l.b16 %v4503
        %v5037 = vunpack.c.l.b16 %v4505
        %v5038 = vunpack.c.l.b16 %v4506
        %v5039 = vunpack.c.l.b16 %v4508
        %v5040 = vunpack.c.l.b16 %v4509
        %v5041 = vunpack.c.l.b16 %v4511
        %v5042 = vunpack.c.l.b16 %v4512
        %v5043 = vunpack.c.l.b16 %v4514
        %v5044 = vunpack.c.l.b16 %v4515
        %v5045 = vpack.c.b16 %v5014, %v5013
        %v5046 = vpack.c.b16 %v5016, %v5015
        %v5047 = vpack.c.b16 %v5018, %v5017
        %v5048 = vpack.c.b16 %v5020, %v5019
        %v5049 = vpack.c.b16 %v5022, %v5021
        %v5050 = vpack.c.b16 %v5024, %v5023
        %v5051 = vpack.c.b16 %v5026, %v5025
        %v5052 = vpack.c.b16 %v5028, %v5027
        %v5053 = vpack.c.b16 %v5030, %v5029
        %v5054 = vpack.c.b16 %v5032, %v5031
        %v5055 = vpack.c.b16 %v5034, %v5033
        %v5056 = vpack.c.b16 %v5036, %v5035
        %v5057 = vpack.c.b16 %v5038, %v5037
        %v5058 = vpack.c.b16 %v5040, %v5039
        %v5059 = vpack.c.b16 %v5042, %v5041
        %v5060 = vpack.c.b16 %v5044, %v5043
        %v5093 = vunpack.c.l.b16 %v4471
        %v5094 = vunpack.c.l.b16 %v4474
        %v5095 = vunpack.c.l.b16 %v4477
        %v5096 = vunpack.c.l.b16 %v4480
        %v5097 = vunpack.c.l.b16 %v4483
        %v5098 = vunpack.c.l.b16 %v4486
        %v5099 = vunpack.c.l.b16 %v4489
        %v5100 = vunpack.c.l.b16 %v4492
        %v5101 = vunpack.c.l.b16 %v4495
        %v5102 = vunpack.c.l.b16 %v4498
        %v5103 = vunpack.c.l.b16 %v4501
        %v5104 = vunpack.c.l.b16 %v4504
        %v5105 = vunpack.c.l.b16 %v4507
        %v5106 = vunpack.c.l.b16 %v4510
        %v5107 = vunpack.c.l.b16 %v4513
        %v5108 = vunpack.c.l.b16 %v4516
        %v5109 = vpack.c.b16 %v5093, %v5093
        %v5110 = vpack.c.b16 %v5094, %v5094
        %v5111 = vpack.c.b16 %v5095, %v5095
        %v5112 = vpack.c.b16 %v5096, %v5096
        %v5113 = vpack.c.b16 %v5097, %v5097
        %v5114 = vpack.c.b16 %v5098, %v5098
        %v5115 = vpack.c.b16 %v5099, %v5099
        %v5116 = vpack.c.b16 %v5100, %v5100
        %v5117 = vpack.c.b16 %v5101, %v5101
        %v5118 = vpack.c.b16 %v5102, %v5102
        %v5119 = vpack.c.b16 %v5103, %v5103
        %v5120 = vpack.c.b16 %v5104, %v5104
        %v5121 = vpack.c.b16 %v5105, %v5105
        %v5122 = vpack.c.b16 %v5106, %v5106
        %v5123 = vpack.c.b16 %v5107, %v5107
        %v5124 = vpack.c.b16 %v5108, %v5108
        %v5126 = vshrl.u32 %v5045, 16
        %v5128 = vshll.u32 %v5045, 16
        %v5130 = vrot.slane %v5128, 1
        %v5131 = vor.u32 %v5126, %v5130
        %v5133 = vshll.u32 %v5109, 16
        %v5135 = vrot.slane %v5133, 1
        %v5136 = vsel %vm1235, %v5131, %v5135
        %v5138 = vshrl.u32 %v5046, 16
        %v5140 = vshll.u32 %v5046, 16
        %v5142 = vrot.slane %v5140, 1
        %v5143 = vor.u32 %v5138, %v5142
        %v5145 = vshll.u32 %v5110, 16
        %v5147 = vrot.slane %v5145, 1
        %v5148 = vsel %vm1235, %v5143, %v5147
        %v5150 = vshrl.u32 %v5047, 16
        %v5152 = vshll.u32 %v5047, 16
        %v5154 = vrot.slane %v5152, 1
        %v5155 = vor.u32 %v5150, %v5154
        %v5157 = vshll.u32 %v5111, 16
        %v5159 = vrot.slane %v5157, 1
        %v5160 = vsel %vm1235, %v5155, %v5159
        %v5162 = vshrl.u32 %v5048, 16
        %v5164 = vshll.u32 %v5048, 16
        %v5166 = vrot.slane %v5164, 1
        %v5167 = vor.u32 %v5162, %v5166
        %v5169 = vshll.u32 %v5112, 16
        %v5171 = vrot.slane %v5169, 1
        %v5172 = vsel %vm1235, %v5167, %v5171
        %v5174 = vshrl.u32 %v5049, 16
        %v5176 = vshll.u32 %v5049, 16
        %v5178 = vrot.slane %v5176, 1
        %v5179 = vor.u32 %v5174, %v5178
        %v5181 = vshll.u32 %v5113, 16
        %v5183 = vrot.slane %v5181, 1
        %v5184 = vsel %vm1235, %v5179, %v5183
        %v5186 = vshrl.u32 %v5050, 16
        %v5188 = vshll.u32 %v5050, 16
        %v5190 = vrot.slane %v5188, 1
        %v5191 = vor.u32 %v5186, %v5190
        %v5193 = vshll.u32 %v5114, 16
        %v5195 = vrot.slane %v5193, 1
        %v5196 = vsel %vm1235, %v5191, %v5195
        %v5198 = vshrl.u32 %v5051, 16
        %v5200 = vshll.u32 %v5051, 16
        %v5202 = vrot.slane %v5200, 1
        %v5203 = vor.u32 %v5198, %v5202
        %v5205 = vshll.u32 %v5115, 16
        %v5207 = vrot.slane %v5205, 1
        %v5208 = vsel %vm1235, %v5203, %v5207
        %v5210 = vshrl.u32 %v5052, 16
        %v5212 = vshll.u32 %v5052, 16
        %v5214 = vrot.slane %v5212, 1
        %v5215 = vor.u32 %v5210, %v5214
        %v5217 = vshll.u32 %v5116, 16
        %v5219 = vrot.slane %v5217, 1
        %v5220 = vsel %vm1235, %v5215, %v5219
        %v5222 = vshrl.u32 %v5053, 16
        %v5224 = vshll.u32 %v5053, 16
        %v5226 = vrot.slane %v5224, 1
        %v5227 = vor.u32 %v5222, %v5226
        %v5229 = vshll.u32 %v5117, 16
        %v5231 = vrot.slane %v5229, 1
        %v5232 = vsel %vm1235, %v5227, %v5231
        %v5234 = vshrl.u32 %v5054, 16
        %v5236 = vshll.u32 %v5054, 16
        %v5238 = vrot.slane %v5236, 1
        %v5239 = vor.u32 %v5234, %v5238
        %v5241 = vshll.u32 %v5118, 16
        %v5243 = vrot.slane %v5241, 1
        %v5244 = vsel %vm1235, %v5239, %v5243
        %v5246 = vshrl.u32 %v5055, 16
        %v5248 = vshll.u32 %v5055, 16
        %v5250 = vrot.slane %v5248, 1
        %v5251 = vor.u32 %v5246, %v5250
        %v5253 = vshll.u32 %v5119, 16
        %v5255 = vrot.slane %v5253, 1
        %v5256 = vsel %vm1235, %v5251, %v5255
        %v5258 = vshrl.u32 %v5056, 16
        %v5260 = vshll.u32 %v5056, 16
        %v5262 = vrot.slane %v5260, 1
        %v5263 = vor.u32 %v5258, %v5262
        %v5265 = vshll.u32 %v5120, 16
        %v5267 = vrot.slane %v5265, 1
        %v5268 = vsel %vm1235, %v5263, %v5267
        %v5270 = vshrl.u32 %v5057, 16
        %v5272 = vshll.u32 %v5057, 16
        %v5274 = vrot.slane %v5272, 1
        %v5275 = vor.u32 %v5270, %v5274
        %v5277 = vshll.u32 %v5121, 16
        %v5279 = vrot.slane %v5277, 1
        %v5280 = vsel %vm1235, %v5275, %v5279
        %v5282 = vshrl.u32 %v5058, 16
        %v5284 = vshll.u32 %v5058, 16
        %v5286 = vrot.slane %v5284, 1
        %v5287 = vor.u32 %v5282, %v5286
        %v5289 = vshll.u32 %v5122, 16
        %v5291 = vrot.slane %v5289, 1
        %v5292 = vsel %vm1235, %v5287, %v5291
        %v5294 = vshrl.u32 %v5059, 16
        %v5296 = vshll.u32 %v5059, 16
        %v5298 = vrot.slane %v5296, 1
        %v5299 = vor.u32 %v5294, %v5298
        %v5301 = vshll.u32 %v5123, 16
        %v5303 = vrot.slane %v5301, 1
        %v5304 = vsel %vm1235, %v5299, %v5303
        %v5306 = vshrl.u32 %v5060, 16
        %v5308 = vshll.u32 %v5060, 16
        %v5310 = vrot.slane %v5308, 1
        %v5311 = vor.u32 %v5306, %v5310
        %v5313 = vshll.u32 %v5124, 16
        %v5315 = vrot.slane %v5313, 1
        %v5316 = vsel %vm1235, %v5311, %v5315
        %v5333 = vrot.slane %v5045, 1
        %v5334 = vrot.slane %v5109, 1
        %v5335 = vsel %vm1444, %v5333, %v5334
        %v5336 = vrot.slane %v5046, 1
        %v5337 = vrot.slane %v5110, 1
        %v5338 = vsel %vm1444, %v5336, %v5337
        %v5339 = vrot.slane %v5047, 1
        %v5340 = vrot.slane %v5111, 1
        %v5341 = vsel %vm1444, %v5339, %v5340
        %v5342 = vrot.slane %v5048, 1
        %v5343 = vrot.slane %v5112, 1
        %v5344 = vsel %vm1444, %v5342, %v5343
        %v5345 = vrot.slane %v5049, 1
        %v5346 = vrot.slane %v5113, 1
        %v5347 = vsel %vm1444, %v5345, %v5346
        %v5348 = vrot.slane %v5050, 1
        %v5349 = vrot.slane %v5114, 1
        %v5350 = vsel %vm1444, %v5348, %v5349
        %v5351 = vrot.slane %v5051, 1
        %v5352 = vrot.slane %v5115, 1
        %v5353 = vsel %vm1444, %v5351, %v5352
        %v5354 = vrot.slane %v5052, 1
        %v5355 = vrot.slane %v5116, 1
        %v5356 = vsel %vm1444, %v5354, %v5355
        %v5357 = vrot.slane %v5053, 1
        %v5358 = vrot.slane %v5117, 1
        %v5359 = vsel %vm1444, %v5357, %v5358
        %v5360 = vrot.slane %v5054, 1
        %v5361 = vrot.slane %v5118, 1
        %v5362 = vsel %vm1444, %v5360, %v5361
        %v5363 = vrot.slane %v5055, 1
        %v5364 = vrot.slane %v5119, 1
        %v5365 = vsel %vm1444, %v5363, %v5364
        %v5366 = vrot.slane %v5056, 1
        %v5367 = vrot.slane %v5120, 1
        %v5368 = vsel %vm1444, %v5366, %v5367
        %v5369 = vrot.slane %v5057, 1
        %v5370 = vrot.slane %v5121, 1
        %v5371 = vsel %vm1444, %v5369, %v5370
        %v5372 = vrot.slane %v5058, 1
        %v5373 = vrot.slane %v5122, 1
        %v5374 = vsel %vm1444, %v5372, %v5373
        %v5375 = vrot.slane %v5059, 1
        %v5376 = vrot.slane %v5123, 1
        %v5377 = vsel %vm1444, %v5375, %v5376
        %v5378 = vrot.slane %v5060, 1
        %v5379 = vrot.slane %v5124, 1
        %v5380 = vsel %vm1444, %v5378, %v5379
        %v5429 = vunpack.c.l.b16 %v4517
        %v5430 = vunpack.c.l.b16 %v4518
        %v5431 = vunpack.c.l.b16 %v4520
        %v5432 = vunpack.c.l.b16 %v4521
        %v5433 = vunpack.c.l.b16 %v4523
        %v5434 = vunpack.c.l.b16 %v4524
        %v5435 = vunpack.c.l.b16 %v4526
        %v5436 = vunpack.c.l.b16 %v4527
        %v5437 = vunpack.c.l.b16 %v4529
        %v5438 = vunpack.c.l.b16 %v4530
        %v5439 = vunpack.c.l.b16 %v4532
        %v5440 = vunpack.c.l.b16 %v4533
        %v5441 = vunpack.c.l.b16 %v4535
        %v5442 = vunpack.c.l.b16 %v4536
        %v5443 = vunpack.c.l.b16 %v4538
        %v5444 = vunpack.c.l.b16 %v4539
        %v5445 = vunpack.c.l.b16 %v4541
        %v5446 = vunpack.c.l.b16 %v4542
        %v5447 = vunpack.c.l.b16 %v4544
        %v5448 = vunpack.c.l.b16 %v4545
        %v5449 = vunpack.c.l.b16 %v4547
        %v5450 = vunpack.c.l.b16 %v4548
        %v5451 = vunpack.c.l.b16 %v4550
        %v5452 = vunpack.c.l.b16 %v4551
        %v5453 = vunpack.c.l.b16 %v4553
        %v5454 = vunpack.c.l.b16 %v4554
        %v5455 = vunpack.c.l.b16 %v4556
        %v5456 = vunpack.c.l.b16 %v4557
        %v5457 = vunpack.c.l.b16 %v4559
        %v5458 = vunpack.c.l.b16 %v4560
        %v5459 = vunpack.c.l.b16 %v4562
        %v5460 = vunpack.c.l.b16 %v4563
        %v5461 = vpack.c.b16 %v5430, %v5429
        %v5462 = vpack.c.b16 %v5432, %v5431
        %v5463 = vpack.c.b16 %v5434, %v5433
        %v5464 = vpack.c.b16 %v5436, %v5435
        %v5465 = vpack.c.b16 %v5438, %v5437
        %v5466 = vpack.c.b16 %v5440, %v5439
        %v5467 = vpack.c.b16 %v5442, %v5441
        %v5468 = vpack.c.b16 %v5444, %v5443
        %v5469 = vpack.c.b16 %v5446, %v5445
        %v5470 = vpack.c.b16 %v5448, %v5447
        %v5471 = vpack.c.b16 %v5450, %v5449
        %v5472 = vpack.c.b16 %v5452, %v5451
        %v5473 = vpack.c.b16 %v5454, %v5453
        %v5474 = vpack.c.b16 %v5456, %v5455
        %v5475 = vpack.c.b16 %v5458, %v5457
        %v5476 = vpack.c.b16 %v5460, %v5459
        %v5509 = vunpack.c.l.b16 %v4519
        %v5510 = vunpack.c.l.b16 %v4522
        %v5511 = vunpack.c.l.b16 %v4525
        %v5512 = vunpack.c.l.b16 %v4528
        %v5513 = vunpack.c.l.b16 %v4531
        %v5514 = vunpack.c.l.b16 %v4534
        %v5515 = vunpack.c.l.b16 %v4537
        %v5516 = vunpack.c.l.b16 %v4540
        %v5517 = vunpack.c.l.b16 %v4543
        %v5518 = vunpack.c.l.b16 %v4546
        %v5519 = vunpack.c.l.b16 %v4549
        %v5520 = vunpack.c.l.b16 %v4552
        %v5521 = vunpack.c.l.b16 %v4555
        %v5522 = vunpack.c.l.b16 %v4558
        %v5523 = vunpack.c.l.b16 %v4561
        %v5524 = vunpack.c.l.b16 %v4564
        %v5525 = vpack.c.b16 %v5509, %v5509
        %v5526 = vpack.c.b16 %v5510, %v5510
        %v5527 = vpack.c.b16 %v5511, %v5511
        %v5528 = vpack.c.b16 %v5512, %v5512
        %v5529 = vpack.c.b16 %v5513, %v5513
        %v5530 = vpack.c.b16 %v5514, %v5514
        %v5531 = vpack.c.b16 %v5515, %v5515
        %v5532 = vpack.c.b16 %v5516, %v5516
        %v5533 = vpack.c.b16 %v5517, %v5517
        %v5534 = vpack.c.b16 %v5518, %v5518
        %v5535 = vpack.c.b16 %v5519, %v5519
        %v5536 = vpack.c.b16 %v5520, %v5520
        %v5537 = vpack.c.b16 %v5521, %v5521
        %v5538 = vpack.c.b16 %v5522, %v5522
        %v5539 = vpack.c.b16 %v5523, %v5523
        %v5540 = vpack.c.b16 %v5524, %v5524
        %v5542 = vshrl.u32 %v5461, 16
        %v5544 = vshll.u32 %v5461, 16
        %v5546 = vrot.slane %v5544, 1
        %v5547 = vor.u32 %v5542, %v5546
        %v5549 = vshll.u32 %v5525, 16
        %v5551 = vrot.slane %v5549, 1
        %v5552 = vsel %vm1235, %v5547, %v5551
        %v5554 = vshrl.u32 %v5462, 16
        %v5556 = vshll.u32 %v5462, 16
        %v5558 = vrot.slane %v5556, 1
        %v5559 = vor.u32 %v5554, %v5558
        %v5561 = vshll.u32 %v5526, 16
        %v5563 = vrot.slane %v5561, 1
        %v5564 = vsel %vm1235, %v5559, %v5563
        %v5566 = vshrl.u32 %v5463, 16
        %v5568 = vshll.u32 %v5463, 16
        %v5570 = vrot.slane %v5568, 1
        %v5571 = vor.u32 %v5566, %v5570
        %v5573 = vshll.u32 %v5527, 16
        %v5575 = vrot.slane %v5573, 1
        %v5576 = vsel %vm1235, %v5571, %v5575
        %v5578 = vshrl.u32 %v5464, 16
        %v5580 = vshll.u32 %v5464, 16
        %v5582 = vrot.slane %v5580, 1
        %v5583 = vor.u32 %v5578, %v5582
        %v5585 = vshll.u32 %v5528, 16
        %v5587 = vrot.slane %v5585, 1
        %v5588 = vsel %vm1235, %v5583, %v5587
        %v5590 = vshrl.u32 %v5465, 16
        %v5592 = vshll.u32 %v5465, 16
        %v5594 = vrot.slane %v5592, 1
        %v5595 = vor.u32 %v5590, %v5594
        %v5597 = vshll.u32 %v5529, 16
        %v5599 = vrot.slane %v5597, 1
        %v5600 = vsel %vm1235, %v5595, %v5599
        %v5602 = vshrl.u32 %v5466, 16
        %v5604 = vshll.u32 %v5466, 16
        %v5606 = vrot.slane %v5604, 1
        %v5607 = vor.u32 %v5602, %v5606
        %v5609 = vshll.u32 %v5530, 16
        %v5611 = vrot.slane %v5609, 1
        %v5612 = vsel %vm1235, %v5607, %v5611
        %v5614 = vshrl.u32 %v5467, 16
        %v5616 = vshll.u32 %v5467, 16
        %v5618 = vrot.slane %v5616, 1
        %v5619 = vor.u32 %v5614, %v5618
        %v5621 = vshll.u32 %v5531, 16
        %v5623 = vrot.slane %v5621, 1
        %v5624 = vsel %vm1235, %v5619, %v5623
        %v5626 = vshrl.u32 %v5468, 16
        %v5628 = vshll.u32 %v5468, 16
        %v5630 = vrot.slane %v5628, 1
        %v5631 = vor.u32 %v5626, %v5630
        %v5633 = vshll.u32 %v5532, 16
        %v5635 = vrot.slane %v5633, 1
        %v5636 = vsel %vm1235, %v5631, %v5635
        %v5638 = vshrl.u32 %v5469, 16
        %v5640 = vshll.u32 %v5469, 16
        %v5642 = vrot.slane %v5640, 1
        %v5643 = vor.u32 %v5638, %v5642
        %v5645 = vshll.u32 %v5533, 16
        %v5647 = vrot.slane %v5645, 1
        %v5648 = vsel %vm1235, %v5643, %v5647
        %v5650 = vshrl.u32 %v5470, 16
        %v5652 = vshll.u32 %v5470, 16
        %v5654 = vrot.slane %v5652, 1
        %v5655 = vor.u32 %v5650, %v5654
        %v5657 = vshll.u32 %v5534, 16
        %v5659 = vrot.slane %v5657, 1
        %v5660 = vsel %vm1235, %v5655, %v5659
        %v5662 = vshrl.u32 %v5471, 16
        %v5664 = vshll.u32 %v5471, 16
        %v5666 = vrot.slane %v5664, 1
        %v5667 = vor.u32 %v5662, %v5666
        %v5669 = vshll.u32 %v5535, 16
        %v5671 = vrot.slane %v5669, 1
        %v5672 = vsel %vm1235, %v5667, %v5671
        %v5674 = vshrl.u32 %v5472, 16
        %v5676 = vshll.u32 %v5472, 16
        %v5678 = vrot.slane %v5676, 1
        %v5679 = vor.u32 %v5674, %v5678
        %v5681 = vshll.u32 %v5536, 16
        %v5683 = vrot.slane %v5681, 1
        %v5684 = vsel %vm1235, %v5679, %v5683
        %v5686 = vshrl.u32 %v5473, 16
        %v5688 = vshll.u32 %v5473, 16
        %v5690 = vrot.slane %v5688, 1
        %v5691 = vor.u32 %v5686, %v5690
        %v5693 = vshll.u32 %v5537, 16
        %v5695 = vrot.slane %v5693, 1
        %v5696 = vsel %vm1235, %v5691, %v5695
        %v5698 = vshrl.u32 %v5474, 16
        %v5700 = vshll.u32 %v5474, 16
        %v5702 = vrot.slane %v5700, 1
        %v5703 = vor.u32 %v5698, %v5702
        %v5705 = vshll.u32 %v5538, 16
        %v5707 = vrot.slane %v5705, 1
        %v5708 = vsel %vm1235, %v5703, %v5707
        %v5710 = vshrl.u32 %v5475, 16
        %v5712 = vshll.u32 %v5475, 16
        %v5714 = vrot.slane %v5712, 1
        %v5715 = vor.u32 %v5710, %v5714
        %v5717 = vshll.u32 %v5539, 16
        %v5719 = vrot.slane %v5717, 1
        %v5720 = vsel %vm1235, %v5715, %v5719
        %v5722 = vshrl.u32 %v5476, 16
        %v5724 = vshll.u32 %v5476, 16
        %v5726 = vrot.slane %v5724, 1
        %v5727 = vor.u32 %v5722, %v5726
        %v5729 = vshll.u32 %v5540, 16
        %v5731 = vrot.slane %v5729, 1
        %v5732 = vsel %vm1235, %v5727, %v5731
        %v5749 = vrot.slane %v5461, 1
        %v5750 = vrot.slane %v5525, 1
        %v5751 = vsel %vm1444, %v5749, %v5750
        %v5752 = vrot.slane %v5462, 1
        %v5753 = vrot.slane %v5526, 1
        %v5754 = vsel %vm1444, %v5752, %v5753
        %v5755 = vrot.slane %v5463, 1
        %v5756 = vrot.slane %v5527, 1
        %v5757 = vsel %vm1444, %v5755, %v5756
        %v5758 = vrot.slane %v5464, 1
        %v5759 = vrot.slane %v5528, 1
        %v5760 = vsel %vm1444, %v5758, %v5759
        %v5761 = vrot.slane %v5465, 1
        %v5762 = vrot.slane %v5529, 1
        %v5763 = vsel %vm1444, %v5761, %v5762
        %v5764 = vrot.slane %v5466, 1
        %v5765 = vrot.slane %v5530, 1
        %v5766 = vsel %vm1444, %v5764, %v5765
        %v5767 = vrot.slane %v5467, 1
        %v5768 = vrot.slane %v5531, 1
        %v5769 = vsel %vm1444, %v5767, %v5768
        %v5770 = vrot.slane %v5468, 1
        %v5771 = vrot.slane %v5532, 1
        %v5772 = vsel %vm1444, %v5770, %v5771
        %v5773 = vrot.slane %v5469, 1
        %v5774 = vrot.slane %v5533, 1
        %v5775 = vsel %vm1444, %v5773, %v5774
        %v5776 = vrot.slane %v5470, 1
        %v5777 = vrot.slane %v5534, 1
        %v5778 = vsel %vm1444, %v5776, %v5777
        %v5779 = vrot.slane %v5471, 1
        %v5780 = vrot.slane %v5535, 1
        %v5781 = vsel %vm1444, %v5779, %v5780
        %v5782 = vrot.slane %v5472, 1
        %v5783 = vrot.slane %v5536, 1
        %v5784 = vsel %vm1444, %v5782, %v5783
        %v5785 = vrot.slane %v5473, 1
        %v5786 = vrot.slane %v5537, 1
        %v5787 = vsel %vm1444, %v5785, %v5786
        %v5788 = vrot.slane %v5474, 1
        %v5789 = vrot.slane %v5538, 1
        %v5790 = vsel %vm1444, %v5788, %v5789
        %v5791 = vrot.slane %v5475, 1
        %v5792 = vrot.slane %v5539, 1
        %v5793 = vsel %vm1444, %v5791, %v5792
        %v5794 = vrot.slane %v5476, 1
        %v5795 = vrot.slane %v5540, 1
        %v5796 = vsel %vm1444, %v5794, %v5795
        %v5813 = vld [vmem:[#allocation8] sm:$0xf]
        %v5814 = vld [vmem:[#allocation8 + $0x4] sm:$0xf]
        %v5815 = vld [vmem:[#allocation8 + $0x8] sm:$0xf]
        %v5816 = vld [vmem:[#allocation8 + $0xc] sm:$0xf]
        %v5817 = vld [vmem:[#allocation8 + $0x10] sm:$0xf]
        %v5818 = vld [vmem:[#allocation8 + $0x14] sm:$0xf]
        %v5819 = vld [vmem:[#allocation8 + $0x18] sm:$0xf]
        %v5820 = vld [vmem:[#allocation8 + $0x1c] sm:$0xf]
        %v5821 = vld [vmem:[#allocation8 + $0x20] sm:$0xf]
        %v5822 = vld [vmem:[#allocation8 + $0x24] sm:$0xf]
        %v5823 = vld [vmem:[#allocation8 + $0x28] sm:$0xf]
        %v5824 = vld [vmem:[#allocation8 + $0x2c] sm:$0xf]
        %v5825 = vld [vmem:[#allocation8 + $0x30] sm:$0xf]
        %v5826 = vld [vmem:[#allocation8 + $0x34] sm:$0xf]
        %v5827 = vld [vmem:[#allocation8 + $0x38] sm:$0xf]
        %v5828 = vld [vmem:[#allocation8 + $0x3c] sm:$0xf]
        %v5829 = vld [vmem:[#allocation8 + $0x40] sm:$0xf]
        %v5830 = vld [vmem:[#allocation8 + $0x44] sm:$0xf]
        %v5831 = vld [vmem:[#allocation8 + $0x48] sm:$0xf]
        %v5832 = vld [vmem:[#allocation8 + $0x4c] sm:$0xf]
        %v5833 = vld [vmem:[#allocation8 + $0x50] sm:$0xf]
        %v5834 = vld [vmem:[#allocation8 + $0x54] sm:$0xf]
        %v5835 = vld [vmem:[#allocation8 + $0x58] sm:$0xf]
        %v5836 = vld [vmem:[#allocation8 + $0x5c] sm:$0xf]
        %v5837 = vld [vmem:[#allocation8 + $0x60] sm:$0xf]
        %v5838 = vld [vmem:[#allocation8 + $0x64] sm:$0xf]
        %v5839 = vld [vmem:[#allocation8 + $0x68] sm:$0xf]
        %v5840 = vld [vmem:[#allocation8 + $0x6c] sm:$0xf]
        %v5841 = vld [vmem:[#allocation8 + $0x70] sm:$0xf]
        %v5842 = vld [vmem:[#allocation8 + $0x74] sm:$0xf]
        %v5843 = vld [vmem:[#allocation8 + $0x78] sm:$0xf]
        %v5844 = vld [vmem:[#allocation8 + $0x7c] sm:$0xf]
        %v5845 = vld [vmem:[#allocation8 + $0x80] sm:$0xf]
        %v5846 = vld [vmem:[#allocation8 + $0x84] sm:$0xf]
        %v5847 = vld [vmem:[#allocation8 + $0x88] sm:$0xf]
        %v5848 = vld [vmem:[#allocation8 + $0x8c] sm:$0xf]
        %v5849 = vld [vmem:[#allocation8 + $0x90] sm:$0xf]
        %v5850 = vld [vmem:[#allocation8 + $0x94] sm:$0xf]
        %v5851 = vld [vmem:[#allocation8 + $0x98] sm:$0xf]
        %v5852 = vld [vmem:[#allocation8 + $0x9c] sm:$0xf]
        %v5853 = vld [vmem:[#allocation8 + $0xa0] sm:$0xf]
        %v5854 = vld [vmem:[#allocation8 + $0xa4] sm:$0xf]
        %v5855 = vld [vmem:[#allocation8 + $0xa8] sm:$0xf]
        %v5856 = vld [vmem:[#allocation8 + $0xac] sm:$0xf]
        %v5857 = vld [vmem:[#allocation8 + $0xb0] sm:$0xf]
        %v5858 = vld [vmem:[#allocation8 + $0xb4] sm:$0xf]
        %v5859 = vld [vmem:[#allocation8 + $0xb8] sm:$0xf]
        %v5860 = vld [vmem:[#allocation8 + $0xbc] sm:$0xf]
        %v5861 = vld [vmem:[#allocation8 + $0xc0] sm:$0xf]
        %v5862 = vld [vmem:[#allocation8 + $0xc4] sm:$0xf]
        %v5863 = vld [vmem:[#allocation8 + $0xc8] sm:$0xf]
        %v5864 = vld [vmem:[#allocation8 + $0xcc] sm:$0xf]
        %v5865 = vld [vmem:[#allocation8 + $0xd0] sm:$0xf]
        %v5866 = vld [vmem:[#allocation8 + $0xd4] sm:$0xf]
        %v5867 = vld [vmem:[#allocation8 + $0xd8] sm:$0xf]
        %v5868 = vld [vmem:[#allocation8 + $0xdc] sm:$0xf]
        %v5869 = vld [vmem:[#allocation8 + $0xe0] sm:$0xf]
        %v5870 = vld [vmem:[#allocation8 + $0xe4] sm:$0xf]
        %v5871 = vld [vmem:[#allocation8 + $0xe8] sm:$0xf]
        %v5872 = vld [vmem:[#allocation8 + $0xec] sm:$0xf]
        %v5873 = vld [vmem:[#allocation8 + $0xf0] sm:$0xf]
        %v5874 = vld [vmem:[#allocation8 + $0xf4] sm:$0xf]
        %v5875 = vld [vmem:[#allocation8 + $0xf8] sm:$0xf]
        %v5876 = vld [vmem:[#allocation8 + $0xfc] sm:$0xf]
        %v5877 = vld [vmem:[#allocation8 + $0x100] sm:$0xf]
        %v5878 = vld [vmem:[#allocation8 + $0x104] sm:$0xf]
        %v5879 = vld [vmem:[#allocation8 + $0x108] sm:$0xf]
        %v5880 = vld [vmem:[#allocation8 + $0x10c] sm:$0xf]
        %v5881 = vld [vmem:[#allocation8 + $0x110] sm:$0xf]
        %v5882 = vld [vmem:[#allocation8 + $0x114] sm:$0xf]
        %v5883 = vld [vmem:[#allocation8 + $0x118] sm:$0xf]
        %v5884 = vld [vmem:[#allocation8 + $0x11c] sm:$0xf]
        %v5885 = vld [vmem:[#allocation8 + $0x120] sm:$0xf]
        %v5886 = vld [vmem:[#allocation8 + $0x124] sm:$0xf]
        %v5887 = vld [vmem:[#allocation8 + $0x128] sm:$0xf]
        %v5888 = vld [vmem:[#allocation8 + $0x12c] sm:$0xf]
        %v5889 = vld [vmem:[#allocation8 + $0x130] sm:$0xf]
        %v5890 = vld [vmem:[#allocation8 + $0x134] sm:$0xf]
        %v5891 = vld [vmem:[#allocation8 + $0x138] sm:$0xf]
        %v5892 = vld [vmem:[#allocation8 + $0x13c] sm:$0xf]
        %v5893 = vld [vmem:[#allocation8 + $0x140] sm:$0xf]
        %v5894 = vld [vmem:[#allocation8 + $0x144] sm:$0xf]
        %v5895 = vld [vmem:[#allocation8 + $0x148] sm:$0xf]
        %v5896 = vld [vmem:[#allocation8 + $0x14c] sm:$0xf]
        %v5897 = vld [vmem:[#allocation8 + $0x150] sm:$0xf]
        %v5898 = vld [vmem:[#allocation8 + $0x154] sm:$0xf]
        %v5899 = vld [vmem:[#allocation8 + $0x158] sm:$0xf]
        %v5900 = vld [vmem:[#allocation8 + $0x15c] sm:$0xf]
        %v5901 = vld [vmem:[#allocation8 + $0x160] sm:$0xf]
        %v5902 = vld [vmem:[#allocation8 + $0x164] sm:$0xf]
        %v5903 = vld [vmem:[#allocation8 + $0x168] sm:$0xf]
        %v5904 = vld [vmem:[#allocation8 + $0x16c] sm:$0xf]
        %v5905 = vld [vmem:[#allocation8 + $0x170] sm:$0xf]
        %v5906 = vld [vmem:[#allocation8 + $0x174] sm:$0xf]
        %v5907 = vld [vmem:[#allocation8 + $0x178] sm:$0xf]
        %v5908 = vld [vmem:[#allocation8 + $0x17c] sm:$0xf]
        %v5909 = vld [vmem:[#allocation8 + $0x180] sm:$0xf]
        %v5910 = vld [vmem:[#allocation8 + $0x184] sm:$0xf]
        %v5911 = vld [vmem:[#allocation8 + $0x188] sm:$0xf]
        %v5912 = vld [vmem:[#allocation8 + $0x18c] sm:$0xf]
        %v5913 = vld [vmem:[#allocation8 + $0x190] sm:$0xf]
        %v5914 = vld [vmem:[#allocation8 + $0x194] sm:$0xf]
        %v5915 = vld [vmem:[#allocation8 + $0x198] sm:$0xf]
        %v5916 = vld [vmem:[#allocation8 + $0x19c] sm:$0xf]
        %v5917 = vld [vmem:[#allocation8 + $0x1a0] sm:$0xf]
        %v5918 = vld [vmem:[#allocation8 + $0x1a4] sm:$0xf]
        %v5919 = vld [vmem:[#allocation8 + $0x1a8] sm:$0xf]
        %v5920 = vld [vmem:[#allocation8 + $0x1ac] sm:$0xf]
        %v5921 = vld [vmem:[#allocation8 + $0x1b0] sm:$0xf]
        %v5922 = vld [vmem:[#allocation8 + $0x1b4] sm:$0xf]
        %v5923 = vld [vmem:[#allocation8 + $0x1b8] sm:$0xf]
        %v5924 = vld [vmem:[#allocation8 + $0x1bc] sm:$0xf]
        %v5925 = vld [vmem:[#allocation8 + $0x1c0] sm:$0xf]
        %v5926 = vld [vmem:[#allocation8 + $0x1c4] sm:$0xf]
        %v5927 = vld [vmem:[#allocation8 + $0x1c8] sm:$0xf]
        %v5928 = vld [vmem:[#allocation8 + $0x1cc] sm:$0xf]
        %v5929 = vld [vmem:[#allocation8 + $0x1d0] sm:$0xf]
        %v5930 = vld [vmem:[#allocation8 + $0x1d4] sm:$0xf]
        %v5931 = vld [vmem:[#allocation8 + $0x1d8] sm:$0xf]
        %v5932 = vld [vmem:[#allocation8 + $0x1dc] sm:$0xf]
        %v5933 = vld [vmem:[#allocation8 + $0x1e0] sm:$0xf]
        %v5934 = vld [vmem:[#allocation8 + $0x1e4] sm:$0xf]
        %v5935 = vld [vmem:[#allocation8 + $0x1e8] sm:$0xf]
        %v5936 = vld [vmem:[#allocation8 + $0x1ec] sm:$0xf]
        %v5937 = vld [vmem:[#allocation8 + $0x1f0] sm:$0xf]
        %v5938 = vld [vmem:[#allocation8 + $0x1f4] sm:$0xf]
        %v5939 = vld [vmem:[#allocation8 + $0x1f8] sm:$0xf]
        %v5940 = vld [vmem:[#allocation8 + $0x1fc] sm:$0xf]
        %v5941 = vld [vmem:[#allocation8 + $0x200] sm:$0xf]
        %v5942 = vld [vmem:[#allocation8 + $0x204] sm:$0xf]
        %v5943 = vld [vmem:[#allocation8 + $0x208] sm:$0xf]
        %v5944 = vld [vmem:[#allocation8 + $0x20c] sm:$0xf]
        %v5945 = vld [vmem:[#allocation8 + $0x210] sm:$0xf]
        %v5946 = vld [vmem:[#allocation8 + $0x214] sm:$0xf]
        %v5947 = vld [vmem:[#allocation8 + $0x218] sm:$0xf]
        %v5948 = vld [vmem:[#allocation8 + $0x21c] sm:$0xf]
        %v5949 = vld [vmem:[#allocation8 + $0x220] sm:$0xf]
        %v5950 = vld [vmem:[#allocation8 + $0x224] sm:$0xf]
        %v5951 = vld [vmem:[#allocation8 + $0x228] sm:$0xf]
        %v5952 = vld [vmem:[#allocation8 + $0x22c] sm:$0xf]
        %v5953 = vld [vmem:[#allocation8 + $0x230] sm:$0xf]
        %v5954 = vld [vmem:[#allocation8 + $0x234] sm:$0xf]
        %v5955 = vld [vmem:[#allocation8 + $0x238] sm:$0xf]
        %v5956 = vld [vmem:[#allocation8 + $0x23c] sm:$0xf]
        %v6101 = vunpack.c.l.b16 %v5813
        %v6102 = vunpack.c.l.b16 %v5814
        %v6103 = vunpack.c.l.b16 %v5815
        %v6104 = vunpack.c.l.b16 %v5816
        %v6105 = vunpack.c.l.b16 %v5817
        %v6106 = vunpack.c.l.b16 %v5818
        %v6107 = vunpack.c.l.b16 %v5819
        %v6108 = vunpack.c.l.b16 %v5820
        %v6109 = vunpack.c.l.b16 %v5821
        %v6110 = vunpack.c.l.b16 %v5822
        %v6111 = vunpack.c.l.b16 %v5823
        %v6112 = vunpack.c.l.b16 %v5824
        %v6113 = vunpack.c.l.b16 %v5825
        %v6114 = vunpack.c.l.b16 %v5826
        %v6115 = vunpack.c.l.b16 %v5827
        %v6116 = vunpack.c.l.b16 %v5828
        %v6117 = vunpack.c.l.b16 %v5829
        %v6118 = vunpack.c.l.b16 %v5830
        %v6119 = vunpack.c.l.b16 %v5831
        %v6120 = vunpack.c.l.b16 %v5832
        %v6121 = vunpack.c.l.b16 %v5833
        %v6122 = vunpack.c.l.b16 %v5834
        %v6123 = vunpack.c.l.b16 %v5835
        %v6124 = vunpack.c.l.b16 %v5836
        %v6125 = vunpack.c.l.b16 %v5837
        %v6126 = vunpack.c.l.b16 %v5838
        %v6127 = vunpack.c.l.b16 %v5839
        %v6128 = vunpack.c.l.b16 %v5840
        %v6129 = vunpack.c.l.b16 %v5841
        %v6130 = vunpack.c.l.b16 %v5842
        %v6131 = vunpack.c.l.b16 %v5843
        %v6132 = vunpack.c.l.b16 %v5844
        %v6133 = vunpack.c.l.b16 %v5845
        %v6134 = vunpack.c.l.b16 %v5846
        %v6135 = vunpack.c.l.b16 %v5847
        %v6136 = vunpack.c.l.b16 %v5848
        %v6137 = vunpack.c.l.b16 %v5849
        %v6138 = vunpack.c.l.b16 %v5850
        %v6139 = vunpack.c.l.b16 %v5851
        %v6140 = vunpack.c.l.b16 %v5852
        %v6141 = vunpack.c.l.b16 %v5853
        %v6142 = vunpack.c.l.b16 %v5854
        %v6143 = vunpack.c.l.b16 %v5855
        %v6144 = vunpack.c.l.b16 %v5856
        %v6145 = vunpack.c.l.b16 %v5857
        %v6146 = vunpack.c.l.b16 %v5858
        %v6147 = vunpack.c.l.b16 %v5859
        %v6148 = vunpack.c.l.b16 %v5860
        %v6149 = vunpack.c.l.b16 %v5861
        %v6150 = vunpack.c.l.b16 %v5862
        %v6151 = vunpack.c.l.b16 %v5863
        %v6152 = vunpack.c.l.b16 %v5864
        %v6153 = vunpack.c.l.b16 %v5865
        %v6154 = vunpack.c.l.b16 %v5866
        %v6155 = vunpack.c.l.b16 %v5867
        %v6156 = vunpack.c.l.b16 %v5868
        %v6157 = vunpack.c.l.b16 %v5869
        %v6158 = vunpack.c.l.b16 %v5870
        %v6159 = vunpack.c.l.b16 %v5871
        %v6160 = vunpack.c.l.b16 %v5872
        %v6161 = vunpack.c.l.b16 %v5873
        %v6162 = vunpack.c.l.b16 %v5874
        %v6163 = vunpack.c.l.b16 %v5875
        %v6164 = vunpack.c.l.b16 %v5876
        %v6165 = vunpack.c.l.b16 %v5877
        %v6166 = vunpack.c.l.b16 %v5878
        %v6167 = vunpack.c.l.b16 %v5879
        %v6168 = vunpack.c.l.b16 %v5880
        %v6169 = vunpack.c.l.b16 %v5881
        %v6170 = vunpack.c.l.b16 %v5882
        %v6171 = vunpack.c.l.b16 %v5883
        %v6172 = vunpack.c.l.b16 %v5884
        %v6173 = vunpack.c.l.b16 %v5885
        %v6174 = vunpack.c.l.b16 %v5886
        %v6175 = vunpack.c.l.b16 %v5887
        %v6176 = vunpack.c.l.b16 %v5888
        %v6177 = vunpack.c.l.b16 %v5889
        %v6178 = vunpack.c.l.b16 %v5890
        %v6179 = vunpack.c.l.b16 %v5891
        %v6180 = vunpack.c.l.b16 %v5892
        %v6181 = vunpack.c.l.b16 %v5893
        %v6182 = vunpack.c.l.b16 %v5894
        %v6183 = vunpack.c.l.b16 %v5895
        %v6184 = vunpack.c.l.b16 %v5896
        %v6185 = vunpack.c.l.b16 %v5897
        %v6186 = vunpack.c.l.b16 %v5898
        %v6187 = vunpack.c.l.b16 %v5899
        %v6188 = vunpack.c.l.b16 %v5900
        %v6189 = vunpack.c.l.b16 %v5901
        %v6190 = vunpack.c.l.b16 %v5902
        %v6191 = vunpack.c.l.b16 %v5903
        %v6192 = vunpack.c.l.b16 %v5904
        %v6193 = vunpack.c.l.b16 %v5905
        %v6194 = vunpack.c.l.b16 %v5906
        %v6195 = vunpack.c.l.b16 %v5907
        %v6196 = vunpack.c.l.b16 %v5908
        %v6197 = vunpack.c.l.b16 %v5909
        %v6198 = vunpack.c.l.b16 %v5910
        %v6199 = vunpack.c.l.b16 %v5911
        %v6200 = vunpack.c.l.b16 %v5912
        %v6201 = vunpack.c.l.b16 %v5913
        %v6202 = vunpack.c.l.b16 %v5914
        %v6203 = vunpack.c.l.b16 %v5915
        %v6204 = vunpack.c.l.b16 %v5916
        %v6205 = vunpack.c.l.b16 %v5917
        %v6206 = vunpack.c.l.b16 %v5918
        %v6207 = vunpack.c.l.b16 %v5919
        %v6208 = vunpack.c.l.b16 %v5920
        %v6209 = vunpack.c.l.b16 %v5921
        %v6210 = vunpack.c.l.b16 %v5922
        %v6211 = vunpack.c.l.b16 %v5923
        %v6212 = vunpack.c.l.b16 %v5924
        %v6213 = vunpack.c.l.b16 %v5925
        %v6214 = vunpack.c.l.b16 %v5926
        %v6215 = vunpack.c.l.b16 %v5927
        %v6216 = vunpack.c.l.b16 %v5928
        %v6217 = vunpack.c.l.b16 %v5929
        %v6218 = vunpack.c.l.b16 %v5930
        %v6219 = vunpack.c.l.b16 %v5931
        %v6220 = vunpack.c.l.b16 %v5932
        %v6221 = vunpack.c.l.b16 %v5933
        %v6222 = vunpack.c.l.b16 %v5934
        %v6223 = vunpack.c.l.b16 %v5935
        %v6224 = vunpack.c.l.b16 %v5936
        %v6225 = vunpack.c.l.b16 %v5937
        %v6226 = vunpack.c.l.b16 %v5938
        %v6227 = vunpack.c.l.b16 %v5939
        %v6228 = vunpack.c.l.b16 %v5940
        %v6229 = vunpack.c.l.b16 %v5941
        %v6230 = vunpack.c.l.b16 %v5942
        %v6231 = vunpack.c.l.b16 %v5943
        %v6232 = vunpack.c.l.b16 %v5944
        %v6233 = vunpack.c.l.b16 %v5945
        %v6234 = vunpack.c.l.b16 %v5946
        %v6235 = vunpack.c.l.b16 %v5947
        %v6236 = vunpack.c.l.b16 %v5948
        %v6237 = vunpack.c.l.b16 %v5949
        %v6238 = vunpack.c.l.b16 %v5950
        %v6239 = vunpack.c.l.b16 %v5951
        %v6240 = vunpack.c.l.b16 %v5952
        %v6241 = vunpack.c.l.b16 %v5953
        %v6242 = vunpack.c.l.b16 %v5954
        %v6243 = vunpack.c.l.b16 %v5955
        %v6244 = vunpack.c.l.b16 %v5956
        %v6245 = vpack.c.b16 %v6102, %v6101
        %v6246 = vpack.c.b16 %v6104, %v6103
        %v6247 = vpack.c.b16 %v6106, %v6105
        %v6248 = vpack.c.b16 %v6108, %v6107
        %v6249 = vpack.c.b16 %v6110, %v6109
        %v6250 = vpack.c.b16 %v6112, %v6111
        %v6251 = vpack.c.b16 %v6114, %v6113
        %v6252 = vpack.c.b16 %v6116, %v6115
        %v6253 = vpack.c.b16 %v6118, %v6117
        %v6254 = vpack.c.b16 %v6120, %v6119
        %v6255 = vpack.c.b16 %v6122, %v6121
        %v6256 = vpack.c.b16 %v6124, %v6123
        %v6257 = vpack.c.b16 %v6126, %v6125
        %v6258 = vpack.c.b16 %v6128, %v6127
        %v6259 = vpack.c.b16 %v6130, %v6129
        %v6260 = vpack.c.b16 %v6132, %v6131
        %v6261 = vpack.c.b16 %v6134, %v6133
        %v6262 = vpack.c.b16 %v6136, %v6135
        %v6263 = vpack.c.b16 %v6138, %v6137
        %v6264 = vpack.c.b16 %v6140, %v6139
        %v6265 = vpack.c.b16 %v6142, %v6141
        %v6266 = vpack.c.b16 %v6144, %v6143
        %v6267 = vpack.c.b16 %v6146, %v6145
        %v6268 = vpack.c.b16 %v6148, %v6147
        %v6269 = vpack.c.b16 %v6150, %v6149
        %v6270 = vpack.c.b16 %v6152, %v6151
        %v6271 = vpack.c.b16 %v6154, %v6153
        %v6272 = vpack.c.b16 %v6156, %v6155
        %v6273 = vpack.c.b16 %v6158, %v6157
        %v6274 = vpack.c.b16 %v6160, %v6159
        %v6275 = vpack.c.b16 %v6162, %v6161
        %v6276 = vpack.c.b16 %v6164, %v6163
        %v6277 = vpack.c.b16 %v6166, %v6165
        %v6278 = vpack.c.b16 %v6168, %v6167
        %v6279 = vpack.c.b16 %v6170, %v6169
        %v6280 = vpack.c.b16 %v6172, %v6171
        %v6281 = vpack.c.b16 %v6174, %v6173
        %v6282 = vpack.c.b16 %v6176, %v6175
        %v6283 = vpack.c.b16 %v6178, %v6177
        %v6284 = vpack.c.b16 %v6180, %v6179
        %v6285 = vpack.c.b16 %v6182, %v6181
        %v6286 = vpack.c.b16 %v6184, %v6183
        %v6287 = vpack.c.b16 %v6186, %v6185
        %v6288 = vpack.c.b16 %v6188, %v6187
        %v6289 = vpack.c.b16 %v6190, %v6189
        %v6290 = vpack.c.b16 %v6192, %v6191
        %v6291 = vpack.c.b16 %v6194, %v6193
        %v6292 = vpack.c.b16 %v6196, %v6195
        %v6293 = vpack.c.b16 %v6198, %v6197
        %v6294 = vpack.c.b16 %v6200, %v6199
        %v6295 = vpack.c.b16 %v6202, %v6201
        %v6296 = vpack.c.b16 %v6204, %v6203
        %v6297 = vpack.c.b16 %v6206, %v6205
        %v6298 = vpack.c.b16 %v6208, %v6207
        %v6299 = vpack.c.b16 %v6210, %v6209
        %v6300 = vpack.c.b16 %v6212, %v6211
        %v6301 = vpack.c.b16 %v6214, %v6213
        %v6302 = vpack.c.b16 %v6216, %v6215
        %v6303 = vpack.c.b16 %v6218, %v6217
        %v6304 = vpack.c.b16 %v6220, %v6219
        %v6305 = vpack.c.b16 %v6222, %v6221
        %v6306 = vpack.c.b16 %v6224, %v6223
        %v6307 = vpack.c.b16 %v6226, %v6225
        %v6308 = vpack.c.b16 %v6228, %v6227
        %v6309 = vpack.c.b16 %v6230, %v6229
        %v6310 = vpack.c.b16 %v6232, %v6231
        %v6311 = vpack.c.b16 %v6234, %v6233
        %v6312 = vpack.c.b16 %v6236, %v6235
        %v6313 = vpack.c.b16 %v6238, %v6237
        %v6314 = vpack.c.b16 %v6240, %v6239
        %v6315 = vpack.c.b16 %v6242, %v6241
        %v6316 = vpack.c.b16 %v6244, %v6243
        %6389 = vmatprep.subr.bf16.mxu0 0
        %6390 = vmatpush1.bf16.msra.mxu0 %v6245
        %6391 = vmatprep.subr.bf16.mxu0 0
        %6392 = vmatpush1.bf16.msra.mxu0 %v6246
        %6393 = vmatprep.subr.bf16.mxu0 0
        %6394 = vmatpush1.bf16.msra.mxu0 %v6247
        %6395 = vmatprep.subr.bf16.mxu0 0
        %6396 = vmatpush1.bf16.msra.mxu0 %v6248
        %6397 = vmatprep.subr.bf16.mxu0 0
        %6398 = vmatpush1.bf16.msra.mxu0 %v6249
        %6399 = vmatprep.subr.bf16.mxu0 0
        %6400 = vmatpush1.bf16.msra.mxu0 %v6250
        %6401 = vmatprep.subr.bf16.mxu0 0
        %6402 = vmatpush1.bf16.msra.mxu0 %v6251
        %6403 = vmatprep.subr.bf16.mxu0 0
        %6404 = vmatpush1.bf16.msra.mxu0 %v6252
        %6405 = vmatprep.subr.bf16.mxu0 0
        %6406 = vmatpush1.bf16.msra.mxu0 %v6253
        %6407 = vmatprep.subr.bf16.mxu0 0
        %6408 = vmatpush1.bf16.msra.mxu0 %v6254
        %6409 = vmatprep.subr.bf16.mxu0 0
        %6410 = vmatpush1.bf16.msra.mxu0 %v6255
        %6411 = vmatprep.subr.bf16.mxu0 0
        %6412 = vmatpush1.bf16.msra.mxu0 %v6256
        %6413 = vmatprep.subr.bf16.mxu0 0
        %6414 = vmatpush1.bf16.msra.mxu0 %v6257
        %6415 = vmatprep.subr.bf16.mxu0 0
        %6416 = vmatpush1.bf16.msra.mxu0 %v6258
        %6417 = vmatprep.subr.bf16.mxu0 0
        %6418 = vmatpush1.bf16.msra.mxu0 %v6259
        %6419 = vmatprep.subr.bf16.mxu0 0
        %6420 = vmatpush1.bf16.msra.mxu0 %v6260
        %6421 = vmatprep.mubr.bf16.mxu0 %v4720
        %6422 = vmatmul.mubr.bf16.gmra.mrb[0].mxu0 %v4629
        %v6423 = vpop.f32.mrb[0].mxu0
        %v6424 = vadd.f32 0.0, %v6423
        %v6425 = vpop.f32.mrb[0].mxu0
        %v6426 = vpop.f32.mrb[0].mxu0
        %v6427 = vadd.f32 0.0, %v6426
        %v6428 = vpop.f32.mrb[0].mxu0
        %6429 = vmatprep.mubr.bf16.mxu0 %v4732
        %6430 = vmatmul.mubr.bf16.gmra.mrb[0].mxu0 %v4630
        %v6431 = vpop.f32.mrb[0].mxu0
        %v6432 = vadd.f32 0.0, %v6431
        %v6433 = vpop.f32.mrb[0].mxu0
        %v6434 = vpop.f32.mrb[0].mxu0
        %v6435 = vadd.f32 0.0, %v6434
        %v6436 = vpop.f32.mrb[0].mxu0
        %6437 = vmatprep.mubr.bf16.mxu0 %v4744
        %6438 = vmatmul.mubr.bf16.gmra.mrb[0].mxu0 %v4631
        %v6439 = vpop.f32.mrb[0].mxu0
        %v6440 = vadd.f32 0.0, %v6439
        %v6441 = vpop.f32.mrb[0].mxu0
        %v6442 = vpop.f32.mrb[0].mxu0
        %v6443 = vadd.f32 0.0, %v6442
        %v6444 = vpop.f32.mrb[0].mxu0
        %6445 = vmatprep.mubr.bf16.mxu0 %v4756
        %6446 = vmatmul.mubr.bf16.gmra.mrb[0].mxu0 %v4632
        %v6447 = vpop.f32.mrb[0].mxu0
        %v6448 = vadd.f32 0.0, %v6447
        %v6449 = vpop.f32.mrb[0].mxu0
        %v6450 = vpop.f32.mrb[0].mxu0
        %v6451 = vadd.f32 0.0, %v6450
        %v6452 = vpop.f32.mrb[0].mxu0
        %6453 = vmatprep.mubr.bf16.mxu0 %v4768
        %6454 = vmatmul.mubr.bf16.gmra.mrb[0].mxu0 %v4633
        %v6455 = vpop.f32.mrb[0].mxu0
        %v6456 = vadd.f32 0.0, %v6455
        %v6457 = vpop.f32.mrb[0].mxu0
        %v6458 = vpop.f32.mrb[0].mxu0
        %v6459 = vadd.f32 0.0, %v6458
        %v6460 = vpop.f32.mrb[0].mxu0
        %6461 = vmatprep.mubr.bf16.mxu0 %v4780
        %6462 = vmatmul.mubr.bf16.gmra.mrb[0].mxu0 %v4634
        %v6463 = vpop.f32.mrb[0].mxu0
        %v6464 = vadd.f32 0.0, %v6463
        %v6465 = vpop.f32.mrb[0].mxu0
        %v6466 = vpop.f32.mrb[0].mxu0
        %v6467 = vadd.f32 0.0, %v6466
        %v6468 = vpop.f32.mrb[0].mxu0
        %6469 = vmatprep.mubr.bf16.mxu0 %v4792
        %6470 = vmatmul.mubr.bf16.gmra.mrb[0].mxu0 %v4635
        %v6471 = vpop.f32.mrb[0].mxu0
        %v6472 = vadd.f32 0.0, %v6471
        %v6473 = vpop.f32.mrb[0].mxu0
        %v6474 = vpop.f32.mrb[0].mxu0
        %v6475 = vadd.f32 0.0, %v6474
        %v6476 = vpop.f32.mrb[0].mxu0
        %6477 = vmatprep.mubr.bf16.mxu0 %v4804
        %6478 = vmatmul.mubr.bf16.gmra.mrb[0].mxu0 %v4636
        %v6479 = vpop.f32.mrb[0].mxu0
        %v6480 = vadd.f32 0.0, %v6479
        %v6481 = vpop.f32.mrb[0].mxu0
        %v6482 = vpop.f32.mrb[0].mxu0
        %v6483 = vadd.f32 0.0, %v6482
        %v6484 = vpop.f32.mrb[0].mxu0
        %6485 = vmatprep.mubr.bf16.mxu0 %v4816
        %6486 = vmatmul.mubr.bf16.gmra.mrb[0].mxu0 %v4637
        %v6487 = vpop.f32.mrb[0].mxu0
        %v6488 = vadd.f32 0.0, %v6487
        %v6489 = vpop.f32.mrb[0].mxu0
        %v6490 = vpop.f32.mrb[0].mxu0
        %v6491 = vadd.f32 0.0, %v6490
        %v6492 = vpop.f32.mrb[0].mxu0
        %6493 = vmatprep.mubr.bf16.mxu0 %v4828
        %6494 = vmatmul.mubr.bf16.gmra.mrb[0].mxu0 %v4638
        %v6495 = vpop.f32.mrb[0].mxu0
        %v6496 = vadd.f32 0.0, %v6495
        %v6497 = vpop.f32.mrb[0].mxu0
        %v6498 = vpop.f32.mrb[0].mxu0
        %v6499 = vadd.f32 0.0, %v6498
        %v6500 = vpop.f32.mrb[0].mxu0
        %6501 = vmatprep.mubr.bf16.mxu0 %v4840
        %6502 = vmatmul.mubr.bf16.gmra.mrb[0].mxu0 %v4639
        %v6503 = vpop.f32.mrb[0].mxu0
        %v6504 = vadd.f32 0.0, %v6503
        %v6505 = vpop.f32.mrb[0].mxu0
        %v6506 = vpop.f32.mrb[0].mxu0
        %v6507 = vadd.f32 0.0, %v6506
        %v6508 = vpop.f32.mrb[0].mxu0
        %6509 = vmatprep.mubr.bf16.mxu0 %v4852
        %6510 = vmatmul.mubr.bf16.gmra.mrb[0].mxu0 %v4640
        %v6511 = vpop.f32.mrb[0].mxu0
        %v6512 = vadd.f32 0.0, %v6511
        %v6513 = vpop.f32.mrb[0].mxu0
        %v6514 = vpop.f32.mrb[0].mxu0
        %v6515 = vadd.f32 0.0, %v6514
        %v6516 = vpop.f32.mrb[0].mxu0
        %6517 = vmatprep.mubr.bf16.mxu0 %v4864
        %6518 = vmatmul.mubr.bf16.gmra.mrb[0].mxu0 %v4641
        %v6519 = vpop.f32.mrb[0].mxu0
        %v6520 = vadd.f32 0.0, %v6519
        %v6521 = vpop.f32.mrb[0].mxu0
        %v6522 = vpop.f32.mrb[0].mxu0
        %v6523 = vadd.f32 0.0, %v6522
        %v6524 = vpop.f32.mrb[0].mxu0
        %6525 = vmatprep.mubr.bf16.mxu0 %v4876
        %6526 = vmatmul.mubr.bf16.gmra.mrb[0].mxu0 %v4642
        %v6527 = vpop.f32.mrb[0].mxu0
        %v6528 = vadd.f32 0.0, %v6527
        %v6529 = vpop.f32.mrb[0].mxu0
        %v6530 = vpop.f32.mrb[0].mxu0
        %v6531 = vadd.f32 0.0, %v6530
        %v6532 = vpop.f32.mrb[0].mxu0
        %6533 = vmatprep.mubr.bf16.mxu0 %v4888
        %6534 = vmatmul.mubr.bf16.gmra.mrb[0].mxu0 %v4643
        %v6535 = vpop.f32.mrb[0].mxu0
        %v6536 = vadd.f32 0.0, %v6535
        %v6537 = vpop.f32.mrb[0].mxu0
        %v6538 = vpop.f32.mrb[0].mxu0
        %v6539 = vadd.f32 0.0, %v6538
        %v6540 = vpop.f32.mrb[0].mxu0
        %6541 = vmatprep.mubr.bf16.mxu0 %v4900
        %6542 = vmatmul.mubr.bf16.gmra.mrb[0].mxu0 %v4644
        %v6543 = vpop.f32.mrb[0].mxu0
        %v6544 = vadd.f32 0.0, %v6543
        %v6545 = vpop.f32.mrb[0].mxu0
        %v6546 = vpop.f32.mrb[0].mxu0
        %v6547 = vadd.f32 0.0, %v6546
        %v6548 = vpop.f32.mrb[0].mxu0
        %6549 = vdwg.mxu0
        %6550 = vmatprep.subr.bf16.mxu0 0
        %6551 = vmatpush1.bf16.msra.mxu0 %v6261
        %6552 = vmatprep.subr.bf16.mxu0 0
        %6553 = vmatpush1.bf16.msra.mxu0 %v6262
        %6554 = vmatprep.subr.bf16.mxu0 0
        %6555 = vmatpush1.bf16.msra.mxu0 %v6263
        %6556 = vmatprep.subr.bf16.mxu0 0
        %6557 = vmatpush1.bf16.msra.mxu0 %v6264
        %6558 = vmatprep.subr.bf16.mxu0 0
        %6559 = vmatpush1.bf16.msra.mxu0 %v6265
        %6560 = vmatprep.subr.bf16.mxu0 0
        %6561 = vmatpush1.bf16.msra.mxu0 %v6266
        %6562 = vmatprep.subr.bf16.mxu0 0
        %6563 = vmatpush1.bf16.msra.mxu0 %v6267
        %6564 = vmatprep.subr.bf16.mxu0 0
        %6565 = vmatpush1.bf16.msra.mxu0 %v6268
        %6566 = vmatprep.subr.bf16.mxu0 0
        %6567 = vmatpush1.bf16.msra.mxu0 %v6269
        %6568 = vmatprep.subr.bf16.mxu0 0
        %6569 = vmatpush1.bf16.msra.mxu0 %v6270
        %6570 = vmatprep.subr.bf16.mxu0 0
        %6571 = vmatpush1.bf16.msra.mxu0 %v6271
        %6572 = vmatprep.subr.bf16.mxu0 0
        %6573 = vmatpush1.bf16.msra.mxu0 %v6272
        %6574 = vmatprep.subr.bf16.mxu0 0
        %6575 = vmatpush1.bf16.msra.mxu0 %v6273
        %6576 = vmatprep.subr.bf16.mxu0 0
        %6577 = vmatpush1.bf16.msra.mxu0 %v6274
        %6578 = vmatprep.subr.bf16.mxu0 0
        %6579 = vmatpush1.bf16.msra.mxu0 %v6275
        %6580 = vmatprep.subr.bf16.mxu0 0
        %6581 = vmatpush1.bf16.msra.mxu0 %v6276
        %6582 = vmatprep.mubr.bf16.mxu0 %v5045
        %6583 = vmatmul.mubr.bf16.gmra.mrb[0].mxu0 %v4919
        %v6584 = vpop.f32.mrb[0].mxu0
        %v6585 = vadd.f32 %v6424, %v6584
        %v6586 = vpop.f32.mrb[0].mxu0
        %v6587 = vpop.f32.mrb[0].mxu0
        %v6588 = vadd.f32 %v6427, %v6587
        %v6589 = vpop.f32.mrb[0].mxu0
        %6590 = vmatprep.mubr.bf16.mxu0 %v5046
        %6591 = vmatmul.mubr.bf16.gmra.mrb[0].mxu0 %v4922
        %v6592 = vpop.f32.mrb[0].mxu0
        %v6593 = vadd.f32 %v6432, %v6592
        %v6594 = vpop.f32.mrb[0].mxu0
        %v6595 = vpop.f32.mrb[0].mxu0
        %v6596 = vadd.f32 %v6435, %v6595
        %v6597 = vpop.f32.mrb[0].mxu0
        %6598 = vmatprep.mubr.bf16.mxu0 %v5047
        %6599 = vmatmul.mubr.bf16.gmra.mrb[0].mxu0 %v4925
        %v6600 = vpop.f32.mrb[0].mxu0
        %v6601 = vadd.f32 %v6440, %v6600
        %v6602 = vpop.f32.mrb[0].mxu0
        %v6603 = vpop.f32.mrb[0].mxu0
        %v6604 = vadd.f32 %v6443, %v6603
        %v6605 = vpop.f32.mrb[0].mxu0
        %6606 = vmatprep.mubr.bf16.mxu0 %v5048
        %6607 = vmatmul.mubr.bf16.gmra.mrb[0].mxu0 %v4928
        %v6608 = vpop.f32.mrb[0].mxu0
        %v6609 = vadd.f32 %v6448, %v6608
        %v6610 = vpop.f32.mrb[0].mxu0
        %v6611 = vpop.f32.mrb[0].mxu0
        %v6612 = vadd.f32 %v6451, %v6611
        %v6613 = vpop.f32.mrb[0].mxu0
        %6614 = vmatprep.mubr.bf16.mxu0 %v5049
        %6615 = vmatmul.mubr.bf16.gmra.mrb[0].mxu0 %v4931
        %v6616 = vpop.f32.mrb[0].mxu0
        %v6617 = vadd.f32 %v6456, %v6616
        %v6618 = vpop.f32.mrb[0].mxu0
        %v6619 = vpop.f32.mrb[0].mxu0
        %v6620 = vadd.f32 %v6459, %v6619
        %v6621 = vpop.f32.mrb[0].mxu0
        %6622 = vmatprep.mubr.bf16.mxu0 %v5050
        %6623 = vmatmul.mubr.bf16.gmra.mrb[0].mxu0 %v4934
        %v6624 = vpop.f32.mrb[0].mxu0
        %v6625 = vadd.f32 %v6464, %v6624
        %v6626 = vpop.f32.mrb[0].mxu0
        %v6627 = vpop.f32.mrb[0].mxu0
        %v6628 = vadd.f32 %v6467, %v6627
        %v6629 = vpop.f32.mrb[0].mxu0
        %6630 = vmatprep.mubr.bf16.mxu0 %v5051
        %6631 = vmatmul.mubr.bf16.gmra.mrb[0].mxu0 %v4937
        %v6632 = vpop.f32.mrb[0].mxu0
        %v6633 = vadd.f32 %v6472, %v6632
        %v6634 = vpop.f32.mrb[0].mxu0
        %v6635 = vpop.f32.mrb[0].mxu0
        %v6636 = vadd.f32 %v6475, %v6635
        %v6637 = vpop.f32.mrb[0].mxu0
        %6638 = vmatprep.mubr.bf16.mxu0 %v5052
        %6639 = vmatmul.mubr.bf16.gmra.mrb[0].mxu0 %v4940
        %v6640 = vpop.f32.mrb[0].mxu0
        %v6641 = vadd.f32 %v6480, %v6640
        %v6642 = vpop.f32.mrb[0].mxu0
        %v6643 = vpop.f32.mrb[0].mxu0
        %v6644 = vadd.f32 %v6483, %v6643
        %v6645 = vpop.f32.mrb[0].mxu0
        %6646 = vmatprep.mubr.bf16.mxu0 %v5053
        %6647 = vmatmul.mubr.bf16.gmra.mrb[0].mxu0 %v4943
        %v6648 = vpop.f32.mrb[0].mxu0
        %v6649 = vadd.f32 %v6488, %v6648
        %v6650 = vpop.f32.mrb[0].mxu0
        %v6651 = vpop.f32.mrb[0].mxu0
        %v6652 = vadd.f32 %v6491, %v6651
        %v6653 = vpop.f32.mrb[0].mxu0
        %6654 = vmatprep.mubr.bf16.mxu0 %v5054
        %6655 = vmatmul.mubr.bf16.gmra.mrb[0].mxu0 %v4946
        %v6656 = vpop.f32.mrb[0].mxu0
        %v6657 = vadd.f32 %v6496, %v6656
        %v6658 = vpop.f32.mrb[0].mxu0
        %v6659 = vpop.f32.mrb[0].mxu0
        %v6660 = vadd.f32 %v6499, %v6659
        %v6661 = vpop.f32.mrb[0].mxu0
        %6662 = vmatprep.mubr.bf16.mxu0 %v5055
        %6663 = vmatmul.mubr.bf16.gmra.mrb[0].mxu0 %v4949
        %v6664 = vpop.f32.mrb[0].mxu0
        %v6665 = vadd.f32 %v6504, %v6664
        %v6666 = vpop.f32.mrb[0].mxu0
        %v6667 = vpop.f32.mrb[0].mxu0
        %v6668 = vadd.f32 %v6507, %v6667
        %v6669 = vpop.f32.mrb[0].mxu0
        %6670 = vmatprep.mubr.bf16.mxu0 %v5056
        %6671 = vmatmul.mubr.bf16.gmra.mrb[0].mxu0 %v4952
        %v6672 = vpop.f32.mrb[0].mxu0
        %v6673 = vadd.f32 %v6512, %v6672
        %v6674 = vpop.f32.mrb[0].mxu0
        %v6675 = vpop.f32.mrb[0].mxu0
        %v6676 = vadd.f32 %v6515, %v6675
        %v6677 = vpop.f32.mrb[0].mxu0
        %6678 = vmatprep.mubr.bf16.mxu0 %v5057
        %6679 = vmatmul.mubr.bf16.gmra.mrb[0].mxu0 %v4955
        %v6680 = vpop.f32.mrb[0].mxu0
        %v6681 = vadd.f32 %v6520, %v6680
        %v6682 = vpop.f32.mrb[0].mxu0
        %v6683 = vpop.f32.mrb[0].mxu0
        %v6684 = vadd.f32 %v6523, %v6683
        %v6685 = vpop.f32.mrb[0].mxu0
        %6686 = vmatprep.mubr.bf16.mxu0 %v5058
        %6687 = vmatmul.mubr.bf16.gmra.mrb[0].mxu0 %v4958
        %v6688 = vpop.f32.mrb[0].mxu0
        %v6689 = vadd.f32 %v6528, %v6688
        %v6690 = vpop.f32.mrb[0].mxu0
        %v6691 = vpop.f32.mrb[0].mxu0
        %v6692 = vadd.f32 %v6531, %v6691
        %v6693 = vpop.f32.mrb[0].mxu0
        %6694 = vmatprep.mubr.bf16.mxu0 %v5059
        %6695 = vmatmul.mubr.bf16.gmra.mrb[0].mxu0 %v4961
        %v6696 = vpop.f32.mrb[0].mxu0
        %v6697 = vadd.f32 %v6536, %v6696
        %v6698 = vpop.f32.mrb[0].mxu0
        %v6699 = vpop.f32.mrb[0].mxu0
        %v6700 = vadd.f32 %v6539, %v6699
        %v6701 = vpop.f32.mrb[0].mxu0
        %6702 = vmatprep.mubr.bf16.mxu0 %v5060
        %6703 = vmatmul.mubr.bf16.gmra.mrb[0].mxu0 %v4964
        %v6704 = vpop.f32.mrb[0].mxu0
        %v6705 = vadd.f32 %v6544, %v6704
        %v6706 = vpop.f32.mrb[0].mxu0
        %v6707 = vpop.f32.mrb[0].mxu0
        %v6708 = vadd.f32 %v6547, %v6707
        %v6709 = vpop.f32.mrb[0].mxu0
        %6710 = vdwg.mxu0
        %6711 = vmatprep.subr.bf16.mxu0 0
        %6712 = vmatpush1.bf16.msra.mxu0 %v6277
        %6713 = vmatprep.subr.bf16.mxu0 0
        %6714 = vmatpush1.bf16.msra.mxu0 %v6278
        %6715 = vmatprep.subr.bf16.mxu0 0
        %6716 = vmatpush1.bf16.msra.mxu0 %v6279
        %6717 = vmatprep.subr.bf16.mxu0 0
        %6718 = vmatpush1.bf16.msra.mxu0 %v6280
        %6719 = vmatprep.subr.bf16.mxu0 0
        %6720 = vmatpush1.bf16.msra.mxu0 %v6281
        %6721 = vmatprep.subr.bf16.mxu0 0
        %6722 = vmatpush1.bf16.msra.mxu0 %v6282
        %6723 = vmatprep.subr.bf16.mxu0 0
        %6724 = vmatpush1.bf16.msra.mxu0 %v6283
        %6725 = vmatprep.subr.bf16.mxu0 0
        %6726 = vmatpush1.bf16.msra.mxu0 %v6284
        %6727 = vmatprep.subr.bf16.mxu0 0
        %6728 = vmatpush1.bf16.msra.mxu0 %v6285
        %6729 = vmatprep.subr.bf16.mxu0 0
        %6730 = vmatpush1.bf16.msra.mxu0 %v6286
        %6731 = vmatprep.subr.bf16.mxu0 0
        %6732 = vmatpush1.bf16.msra.mxu0 %v6287
        %6733 = vmatprep.subr.bf16.mxu0 0
        %6734 = vmatpush1.bf16.msra.mxu0 %v6288
        %6735 = vmatprep.subr.bf16.mxu0 0
        %6736 = vmatpush1.bf16.msra.mxu0 %v6289
        %6737 = vmatprep.subr.bf16.mxu0 0
        %6738 = vmatpush1.bf16.msra.mxu0 %v6290
        %6739 = vmatprep.subr.bf16.mxu0 0
        %6740 = vmatpush1.bf16.msra.mxu0 %v6291
        %6741 = vmatprep.subr.bf16.mxu0 0
        %6742 = vmatpush1.bf16.msra.mxu0 %v6292
        %6743 = vmatprep.mubr.bf16.mxu0 %v5335
        %6744 = vmatmul.mubr.bf16.gmra.mrb[0].mxu0 %v5136
        %v6745 = vpop.f32.mrb[0].mxu0
        %v6746 = vadd.f32 %v6585, %v6745
        %v6747 = vpop.f32.mrb[0].mxu0
        %v6748 = vpop.f32.mrb[0].mxu0
        %v6749 = vadd.f32 %v6588, %v6748
        %v6750 = vpop.f32.mrb[0].mxu0
        %6751 = vmatprep.mubr.bf16.mxu0 %v5338
        %6752 = vmatmul.mubr.bf16.gmra.mrb[0].mxu0 %v5148
        %v6753 = vpop.f32.mrb[0].mxu0
        %v6754 = vadd.f32 %v6593, %v6753
        %v6755 = vpop.f32.mrb[0].mxu0
        %v6756 = vpop.f32.mrb[0].mxu0
        %v6757 = vadd.f32 %v6596, %v6756
        %v6758 = vpop.f32.mrb[0].mxu0
        %6759 = vmatprep.mubr.bf16.mxu0 %v5341
        %6760 = vmatmul.mubr.bf16.gmra.mrb[0].mxu0 %v5160
        %v6761 = vpop.f32.mrb[0].mxu0
        %v6762 = vadd.f32 %v6601, %v6761
        %v6763 = vpop.f32.mrb[0].mxu0
        %v6764 = vpop.f32.mrb[0].mxu0
        %v6765 = vadd.f32 %v6604, %v6764
        %v6766 = vpop.f32.mrb[0].mxu0
        %6767 = vmatprep.mubr.bf16.mxu0 %v5344
        %6768 = vmatmul.mubr.bf16.gmra.mrb[0].mxu0 %v5172
        %v6769 = vpop.f32.mrb[0].mxu0
        %v6770 = vadd.f32 %v6609, %v6769
        %v6771 = vpop.f32.mrb[0].mxu0
        %v6772 = vpop.f32.mrb[0].mxu0
        %v6773 = vadd.f32 %v6612, %v6772
        %v6774 = vpop.f32.mrb[0].mxu0
        %6775 = vmatprep.mubr.bf16.mxu0 %v5347
        %6776 = vmatmul.mubr.bf16.gmra.mrb[0].mxu0 %v5184
        %v6777 = vpop.f32.mrb[0].mxu0
        %v6778 = vadd.f32 %v6617, %v6777
        %v6779 = vpop.f32.mrb[0].mxu0
        %v6780 = vpop.f32.mrb[0].mxu0
        %v6781 = vadd.f32 %v6620, %v6780
        %v6782 = vpop.f32.mrb[0].mxu0
        %6783 = vmatprep.mubr.bf16.mxu0 %v5350
        %6784 = vmatmul.mubr.bf16.gmra.mrb[0].mxu0 %v5196
        %v6785 = vpop.f32.mrb[0].mxu0
        %v6786 = vadd.f32 %v6625, %v6785
        %v6787 = vpop.f32.mrb[0].mxu0
        %v6788 = vpop.f32.mrb[0].mxu0
        %v6789 = vadd.f32 %v6628, %v6788
        %v6790 = vpop.f32.mrb[0].mxu0
        %6791 = vmatprep.mubr.bf16.mxu0 %v5353
        %6792 = vmatmul.mubr.bf16.gmra.mrb[0].mxu0 %v5208
        %v6793 = vpop.f32.mrb[0].mxu0
        %v6794 = vadd.f32 %v6633, %v6793
        %v6795 = vpop.f32.mrb[0].mxu0
        %v6796 = vpop.f32.mrb[0].mxu0
        %v6797 = vadd.f32 %v6636, %v6796
        %v6798 = vpop.f32.mrb[0].mxu0
        %6799 = vmatprep.mubr.bf16.mxu0 %v5356
        %6800 = vmatmul.mubr.bf16.gmra.mrb[0].mxu0 %v5220
        %v6801 = vpop.f32.mrb[0].mxu0
        %v6802 = vadd.f32 %v6641, %v6801
        %v6803 = vpop.f32.mrb[0].mxu0
        %v6804 = vpop.f32.mrb[0].mxu0
        %v6805 = vadd.f32 %v6644, %v6804
        %v6806 = vpop.f32.mrb[0].mxu0
        %6807 = vmatprep.mubr.bf16.mxu0 %v5359
        %6808 = vmatmul.mubr.bf16.gmra.mrb[0].mxu0 %v5232
        %v6809 = vpop.f32.mrb[0].mxu0
        %v6810 = vadd.f32 %v6649, %v6809
        %v6811 = vpop.f32.mrb[0].mxu0
        %v6812 = vpop.f32.mrb[0].mxu0
        %v6813 = vadd.f32 %v6652, %v6812
        %v6814 = vpop.f32.mrb[0].mxu0
        %6815 = vmatprep.mubr.bf16.mxu0 %v5362
        %6816 = vmatmul.mubr.bf16.gmra.mrb[0].mxu0 %v5244
        %v6817 = vpop.f32.mrb[0].mxu0
        %v6818 = vadd.f32 %v6657, %v6817
        %v6819 = vpop.f32.mrb[0].mxu0
        %v6820 = vpop.f32.mrb[0].mxu0
        %v6821 = vadd.f32 %v6660, %v6820
        %v6822 = vpop.f32.mrb[0].mxu0
        %6823 = vmatprep.mubr.bf16.mxu0 %v5365
        %6824 = vmatmul.mubr.bf16.gmra.mrb[0].mxu0 %v5256
        %v6825 = vpop.f32.mrb[0].mxu0
        %v6826 = vadd.f32 %v6665, %v6825
        %v6827 = vpop.f32.mrb[0].mxu0
        %v6828 = vpop.f32.mrb[0].mxu0
        %v6829 = vadd.f32 %v6668, %v6828
        %v6830 = vpop.f32.mrb[0].mxu0
        %6831 = vmatprep.mubr.bf16.mxu0 %v5368
        %6832 = vmatmul.mubr.bf16.gmra.mrb[0].mxu0 %v5268
        %v6833 = vpop.f32.mrb[0].mxu0
        %v6834 = vadd.f32 %v6673, %v6833
        %v6835 = vpop.f32.mrb[0].mxu0
        %v6836 = vpop.f32.mrb[0].mxu0
        %v6837 = vadd.f32 %v6676, %v6836
        %v6838 = vpop.f32.mrb[0].mxu0
        %6839 = vmatprep.mubr.bf16.mxu0 %v5371
        %6840 = vmatmul.mubr.bf16.gmra.mrb[0].mxu0 %v5280
        %v6841 = vpop.f32.mrb[0].mxu0
        %v6842 = vadd.f32 %v6681, %v6841
        %v6843 = vpop.f32.mrb[0].mxu0
        %v6844 = vpop.f32.mrb[0].mxu0
        %v6845 = vadd.f32 %v6684, %v6844
        %v6846 = vpop.f32.mrb[0].mxu0
        %6847 = vmatprep.mubr.bf16.mxu0 %v5374
        %6848 = vmatmul.mubr.bf16.gmra.mrb[0].mxu0 %v5292
        %v6849 = vpop.f32.mrb[0].mxu0
        %v6850 = vadd.f32 %v6689, %v6849
        %v6851 = vpop.f32.mrb[0].mxu0
        %v6852 = vpop.f32.mrb[0].mxu0
        %v6853 = vadd.f32 %v6692, %v6852
        %v6854 = vpop.f32.mrb[0].mxu0
        %6855 = vmatprep.mubr.bf16.mxu0 %v5377
        %6856 = vmatmul.mubr.bf16.gmra.mrb[0].mxu0 %v5304
        %v6857 = vpop.f32.mrb[0].mxu0
        %v6858 = vadd.f32 %v6697, %v6857
        %v6859 = vpop.f32.mrb[0].mxu0
        %v6860 = vpop.f32.mrb[0].mxu0
        %v6861 = vadd.f32 %v6700, %v6860
        %v6862 = vpop.f32.mrb[0].mxu0
        %6863 = vmatprep.mubr.bf16.mxu0 %v5380
        %6864 = vmatmul.mubr.bf16.gmra.mrb[0].mxu0 %v5316
        %v6865 = vpop.f32.mrb[0].mxu0
        %v6866 = vadd.f32 %v6705, %v6865
        %v6867 = vpop.f32.mrb[0].mxu0
        %v6868 = vpop.f32.mrb[0].mxu0
        %v6869 = vadd.f32 %v6708, %v6868
        %v6870 = vpop.f32.mrb[0].mxu0
        %6871 = vdwg.mxu0
        %6872 = vmatprep.subr.bf16.mxu0 0
        %6873 = vmatpush1.bf16.msra.mxu0 %v6293
        %6874 = vmatprep.subr.bf16.mxu0 0
        %6875 = vmatpush1.bf16.msra.mxu0 %v6294
        %6876 = vmatprep.subr.bf16.mxu0 0
        %6877 = vmatpush1.bf16.msra.mxu0 %v6295
        %6878 = vmatprep.subr.bf16.mxu0 0
        %6879 = vmatpush1.bf16.msra.mxu0 %v6296
        %6880 = vmatprep.subr.bf16.mxu0 0
        %6881 = vmatpush1.bf16.msra.mxu0 %v6297
        %6882 = vmatprep.subr.bf16.mxu0 0
        %6883 = vmatpush1.bf16.msra.mxu0 %v6298
        %6884 = vmatprep.subr.bf16.mxu0 0
        %6885 = vmatpush1.bf16.msra.mxu0 %v6299
        %6886 = vmatprep.subr.bf16.mxu0 0
        %6887 = vmatpush1.bf16.msra.mxu0 %v6300
        %6888 = vmatprep.subr.bf16.mxu0 0
        %6889 = vmatpush1.bf16.msra.mxu0 %v6301
        %6890 = vmatprep.subr.bf16.mxu0 0
        %6891 = vmatpush1.bf16.msra.mxu0 %v6302
        %6892 = vmatprep.subr.bf16.mxu0 0
        %6893 = vmatpush1.bf16.msra.mxu0 %v6303
        %6894 = vmatprep.subr.bf16.mxu0 0
        %6895 = vmatpush1.bf16.msra.mxu0 %v6304
        %6896 = vmatprep.subr.bf16.mxu0 0
        %6897 = vmatpush1.bf16.msra.mxu0 %v6305
        %6898 = vmatprep.subr.bf16.mxu0 0
        %6899 = vmatpush1.bf16.msra.mxu0 %v6306
        %6900 = vmatprep.subr.bf16.mxu0 0
        %6901 = vmatpush1.bf16.msra.mxu0 %v6307
        %6902 = vmatprep.subr.bf16.mxu0 0
        %6903 = vmatpush1.bf16.msra.mxu0 %v6308
        %6904 = vmatprep.mubr.bf16.mxu0 %v5552
        %6905 = vmatmul.mubr.bf16.gmra.mrb[0].mxu0 %v5461
        %v6906 = vpop.f32.mrb[0].mxu0
        %v6907 = vadd.f32 %v6746, %v6906
        %v6908 = vpop.f32.mrb[0].mxu0
        %v6909 = vpop.f32.mrb[0].mxu0
        %v6910 = vadd.f32 %v6749, %v6909
        %v6911 = vpop.f32.mrb[0].mxu0
        %6912 = vmatprep.mubr.bf16.mxu0 %v5564
        %6913 = vmatmul.mubr.bf16.gmra.mrb[0].mxu0 %v5462
        %v6914 = vpop.f32.mrb[0].mxu0
        %v6915 = vadd.f32 %v6754, %v6914
        %v6916 = vpop.f32.mrb[0].mxu0
        %v6917 = vpop.f32.mrb[0].mxu0
        %v6918 = vadd.f32 %v6757, %v6917
        %v6919 = vpop.f32.mrb[0].mxu0
        %6920 = vmatprep.mubr.bf16.mxu0 %v5576
        %6921 = vmatmul.mubr.bf16.gmra.mrb[0].mxu0 %v5463
        %v6922 = vpop.f32.mrb[0].mxu0
        %v6923 = vadd.f32 %v6762, %v6922
        %v6924 = vpop.f32.mrb[0].mxu0
        %v6925 = vpop.f32.mrb[0].mxu0
        %v6926 = vadd.f32 %v6765, %v6925
        %v6927 = vpop.f32.mrb[0].mxu0
        %6928 = vmatprep.mubr.bf16.mxu0 %v5588
        %6929 = vmatmul.mubr.bf16.gmra.mrb[0].mxu0 %v5464
        %v6930 = vpop.f32.mrb[0].mxu0
        %v6931 = vadd.f32 %v6770, %v6930
        %v6932 = vpop.f32.mrb[0].mxu0
        %v6933 = vpop.f32.mrb[0].mxu0
        %v6934 = vadd.f32 %v6773, %v6933
        %v6935 = vpop.f32.mrb[0].mxu0
        %6936 = vmatprep.mubr.bf16.mxu0 %v5600
        %6937 = vmatmul.mubr.bf16.gmra.mrb[0].mxu0 %v5465
        %v6938 = vpop.f32.mrb[0].mxu0
        %v6939 = vadd.f32 %v6778, %v6938
        %v6940 = vpop.f32.mrb[0].mxu0
        %v6941 = vpop.f32.mrb[0].mxu0
        %v6942 = vadd.f32 %v6781, %v6941
        %v6943 = vpop.f32.mrb[0].mxu0
        %6944 = vmatprep.mubr.bf16.mxu0 %v5612
        %6945 = vmatmul.mubr.bf16.gmra.mrb[0].mxu0 %v5466
        %v6946 = vpop.f32.mrb[0].mxu0
        %v6947 = vadd.f32 %v6786, %v6946
        %v6948 = vpop.f32.mrb[0].mxu0
        %v6949 = vpop.f32.mrb[0].mxu0
        %v6950 = vadd.f32 %v6789, %v6949
        %v6951 = vpop.f32.mrb[0].mxu0
        %6952 = vmatprep.mubr.bf16.mxu0 %v5624
        %6953 = vmatmul.mubr.bf16.gmra.mrb[0].mxu0 %v5467
        %v6954 = vpop.f32.mrb[0].mxu0
        %v6955 = vadd.f32 %v6794, %v6954
        %v6956 = vpop.f32.mrb[0].mxu0
        %v6957 = vpop.f32.mrb[0].mxu0
        %v6958 = vadd.f32 %v6797, %v6957
        %v6959 = vpop.f32.mrb[0].mxu0
        %6960 = vmatprep.mubr.bf16.mxu0 %v5636
        %6961 = vmatmul.mubr.bf16.gmra.mrb[0].mxu0 %v5468
        %v6962 = vpop.f32.mrb[0].mxu0
        %v6963 = vadd.f32 %v6802, %v6962
        %v6964 = vpop.f32.mrb[0].mxu0
        %v6965 = vpop.f32.mrb[0].mxu0
        %v6966 = vadd.f32 %v6805, %v6965
        %v6967 = vpop.f32.mrb[0].mxu0
        %6968 = vmatprep.mubr.bf16.mxu0 %v5648
        %6969 = vmatmul.mubr.bf16.gmra.mrb[0].mxu0 %v5469
        %v6970 = vpop.f32.mrb[0].mxu0
        %v6971 = vadd.f32 %v6810, %v6970
        %v6972 = vpop.f32.mrb[0].mxu0
        %v6973 = vpop.f32.mrb[0].mxu0
        %v6974 = vadd.f32 %v6813, %v6973
        %v6975 = vpop.f32.mrb[0].mxu0
        %6976 = vmatprep.mubr.bf16.mxu0 %v5660
        %6977 = vmatmul.mubr.bf16.gmra.mrb[0].mxu0 %v5470
        %v6978 = vpop.f32.mrb[0].mxu0
        %v6979 = vadd.f32 %v6818, %v6978
        %v6980 = vpop.f32.mrb[0].mxu0
        %v6981 = vpop.f32.mrb[0].mxu0
        %v6982 = vadd.f32 %v6821, %v6981
        %v6983 = vpop.f32.mrb[0].mxu0
        %6984 = vmatprep.mubr.bf16.mxu0 %v5672
        %6985 = vmatmul.mubr.bf16.gmra.mrb[0].mxu0 %v5471
        %v6986 = vpop.f32.mrb[0].mxu0
        %v6987 = vadd.f32 %v6826, %v6986
        %v6988 = vpop.f32.mrb[0].mxu0
        %v6989 = vpop.f32.mrb[0].mxu0
        %v6990 = vadd.f32 %v6829, %v6989
        %v6991 = vpop.f32.mrb[0].mxu0
        %6992 = vmatprep.mubr.bf16.mxu0 %v5684
        %6993 = vmatmul.mubr.bf16.gmra.mrb[0].mxu0 %v5472
        %v6994 = vpop.f32.mrb[0].mxu0
        %v6995 = vadd.f32 %v6834, %v6994
        %v6996 = vpop.f32.mrb[0].mxu0
        %v6997 = vpop.f32.mrb[0].mxu0
        %v6998 = vadd.f32 %v6837, %v6997
        %v6999 = vpop.f32.mrb[0].mxu0
        %7000 = vmatprep.mubr.bf16.mxu0 %v5696
        %7001 = vmatmul.mubr.bf16.gmra.mrb[0].mxu0 %v5473
        %v7002 = vpop.f32.mrb[0].mxu0
        %v7003 = vadd.f32 %v6842, %v7002
        %v7004 = vpop.f32.mrb[0].mxu0
        %v7005 = vpop.f32.mrb[0].mxu0
        %v7006 = vadd.f32 %v6845, %v7005
        %v7007 = vpop.f32.mrb[0].mxu0
        %7008 = vmatprep.mubr.bf16.mxu0 %v5708
        %7009 = vmatmul.mubr.bf16.gmra.mrb[0].mxu0 %v5474
        %v7010 = vpop.f32.mrb[0].mxu0
        %v7011 = vadd.f32 %v6850, %v7010
        %v7012 = vpop.f32.mrb[0].mxu0
        %v7013 = vpop.f32.mrb[0].mxu0
        %v7014 = vadd.f32 %v6853, %v7013
        %v7015 = vpop.f32.mrb[0].mxu0
        %7016 = vmatprep.mubr.bf16.mxu0 %v5720
        %7017 = vmatmul.mubr.bf16.gmra.mrb[0].mxu0 %v5475
        %v7018 = vpop.f32.mrb[0].mxu0
        %v7019 = vadd.f32 %v6858, %v7018
        %v7020 = vpop.f32.mrb[0].mxu0
        %v7021 = vpop.f32.mrb[0].mxu0
        %v7022 = vadd.f32 %v6861, %v7021
        %v7023 = vpop.f32.mrb[0].mxu0
        %7024 = vmatprep.mubr.bf16.mxu0 %v5732
        %7025 = vmatmul.mubr.bf16.gmra.mrb[0].mxu0 %v5476
        %v7026 = vpop.f32.mrb[0].mxu0
        %v7027 = vadd.f32 %v6866, %v7026
        %v7028 = vpop.f32.mrb[0].mxu0
        %v7029 = vpop.f32.mrb[0].mxu0
        %v7030 = vadd.f32 %v6869, %v7029
        %v7031 = vpop.f32.mrb[0].mxu0
        %7032 = vdwg.mxu0
        %7033 = vmatprep.subr.bf16.mxu0 0
        %7034 = vmatpush1.bf16.msra.mxu0 %v6309
        %7035 = vmatprep.subr.bf16.mxu0 0
        %7036 = vmatpush1.bf16.msra.mxu0 %v6310
        %7037 = vmatprep.subr.bf16.mxu0 0
        %7038 = vmatpush1.bf16.msra.mxu0 %v6311
        %7039 = vmatprep.subr.bf16.mxu0 0
        %7040 = vmatpush1.bf16.msra.mxu0 %v6312
        %7041 = vmatprep.subr.bf16.mxu0 0
        %7042 = vmatpush1.bf16.msra.mxu0 %v6313
        %7043 = vmatprep.subr.bf16.mxu0 0
        %7044 = vmatpush1.bf16.msra.mxu0 %v6314
        %7045 = vmatprep.subr.bf16.mxu0 0
        %7046 = vmatpush1.bf16.msra.mxu0 %v6315
        %7047 = vmatprep.subr.bf16.mxu0 0
        %7048 = vmatpush1.bf16.msra.mxu0 %v6316
        %7049 = vmatprep.subr.bf16.mxu0 0
        %7050 = vmatpush1.bf16.msra.mxu0 0
        %7051 = vmatprep.subr.bf16.mxu0 0
        %7052 = vmatpush1.bf16.msra.mxu0 0
        %7053 = vmatprep.subr.bf16.mxu0 0
        %7054 = vmatpush1.bf16.msra.mxu0 0
        %7055 = vmatprep.subr.bf16.mxu0 0
        %7056 = vmatpush1.bf16.msra.mxu0 0
        %7057 = vmatprep.subr.bf16.mxu0 0
        %7058 = vmatpush1.bf16.msra.mxu0 0
        %7059 = vmatprep.subr.bf16.mxu0 0
        %7060 = vmatpush1.bf16.msra.mxu0 0
        %7061 = vmatprep.subr.bf16.mxu0 0
        %7062 = vmatpush1.bf16.msra.mxu0 0
        %7063 = vmatprep.subr.bf16.mxu0 0
        %7064 = vmatpush1.bf16.msra.mxu0 0
        %7065 = vmatprep.mubr.bf16.mxu0 0
        %7066 = vmatmul.mubr.bf16.gmra.mrb[0].mxu0 %v5751
        %v7067 = vpop.f32.mrb[0].mxu0
        %v7068 = vadd.f32 %v6907, %v7067
        %v7069 = vpop.f32.mrb[0].mxu0
        %v7070 = vpop.f32.mrb[0].mxu0
        %v7071 = vadd.f32 %v6910, %v7070
        %v7072 = vpop.f32.mrb[0].mxu0
        %7073 = vmatprep.mubr.bf16.mxu0 0
        %7074 = vmatmul.mubr.bf16.gmra.mrb[0].mxu0 %v5754
        %v7075 = vpop.f32.mrb[0].mxu0
        %v7076 = vadd.f32 %v6915, %v7075
        %v7077 = vpop.f32.mrb[0].mxu0
        %v7078 = vpop.f32.mrb[0].mxu0
        %v7079 = vadd.f32 %v6918, %v7078
        %v7080 = vpop.f32.mrb[0].mxu0
        %7081 = vmatprep.mubr.bf16.mxu0 0
        %7082 = vmatmul.mubr.bf16.gmra.mrb[0].mxu0 %v5757
        %v7083 = vpop.f32.mrb[0].mxu0
        %v7084 = vadd.f32 %v6923, %v7083
        %v7085 = vpop.f32.mrb[0].mxu0
        %v7086 = vpop.f32.mrb[0].mxu0
        %v7087 = vadd.f32 %v6926, %v7086
        %v7088 = vpop.f32.mrb[0].mxu0
        %7089 = vmatprep.mubr.bf16.mxu0 0
        %7090 = vmatmul.mubr.bf16.gmra.mrb[0].mxu0 %v5760
        %v7091 = vpop.f32.mrb[0].mxu0
        %v7092 = vadd.f32 %v6931, %v7091
        %v7093 = vpop.f32.mrb[0].mxu0
        %v7094 = vpop.f32.mrb[0].mxu0
        %v7095 = vadd.f32 %v6934, %v7094
        %v7096 = vpop.f32.mrb[0].mxu0
        %7097 = vmatprep.mubr.bf16.mxu0 0
        %7098 = vmatmul.mubr.bf16.gmra.mrb[0].mxu0 %v5763
        %v7099 = vpop.f32.mrb[0].mxu0
        %v7100 = vadd.f32 %v6939, %v7099
        %v7101 = vpop.f32.mrb[0].mxu0
        %v7102 = vpop.f32.mrb[0].mxu0
        %v7103 = vadd.f32 %v6942, %v7102
        %v7104 = vpop.f32.mrb[0].mxu0
        %7105 = vmatprep.mubr.bf16.mxu0 0
        %7106 = vmatmul.mubr.bf16.gmra.mrb[0].mxu0 %v5766
        %v7107 = vpop.f32.mrb[0].mxu0
        %v7108 = vadd.f32 %v6947, %v7107
        %v7109 = vpop.f32.mrb[0].mxu0
        %v7110 = vpop.f32.mrb[0].mxu0
        %v7111 = vadd.f32 %v6950, %v7110
        %v7112 = vpop.f32.mrb[0].mxu0
        %7113 = vmatprep.mubr.bf16.mxu0 0
        %7114 = vmatmul.mubr.bf16.gmra.mrb[0].mxu0 %v5769
        %v7115 = vpop.f32.mrb[0].mxu0
        %v7116 = vadd.f32 %v6955, %v7115
        %v7117 = vpop.f32.mrb[0].mxu0
        %v7118 = vpop.f32.mrb[0].mxu0
        %v7119 = vadd.f32 %v6958, %v7118
        %v7120 = vpop.f32.mrb[0].mxu0
        %7121 = vmatprep.mubr.bf16.mxu0 0
        %7122 = vmatmul.mubr.bf16.gmra.mrb[0].mxu0 %v5772
        %v7123 = vpop.f32.mrb[0].mxu0
        %v7124 = vadd.f32 %v6963, %v7123
        %v7125 = vpop.f32.mrb[0].mxu0
        %v7126 = vpop.f32.mrb[0].mxu0
        %v7127 = vadd.f32 %v6966, %v7126
        %v7128 = vpop.f32.mrb[0].mxu0
        %7129 = vmatprep.mubr.bf16.mxu0 0
        %7130 = vmatmul.mubr.bf16.gmra.mrb[0].mxu0 %v5775
        %v7131 = vpop.f32.mrb[0].mxu0
        %v7132 = vadd.f32 %v6971, %v7131
        %v7133 = vpop.f32.mrb[0].mxu0
        %v7134 = vpop.f32.mrb[0].mxu0
        %v7135 = vadd.f32 %v6974, %v7134
        %v7136 = vpop.f32.mrb[0].mxu0
        %7137 = vmatprep.mubr.bf16.mxu0 0
        %7138 = vmatmul.mubr.bf16.gmra.mrb[0].mxu0 %v5778
        %v7139 = vpop.f32.mrb[0].mxu0
        %v7140 = vadd.f32 %v6979, %v7139
        %v7141 = vpop.f32.mrb[0].mxu0
        %v7142 = vpop.f32.mrb[0].mxu0
        %v7143 = vadd.f32 %v6982, %v7142
        %v7144 = vpop.f32.mrb[0].mxu0
        %7145 = vmatprep.mubr.bf16.mxu0 0
        %7146 = vmatmul.mubr.bf16.gmra.mrb[0].mxu0 %v5781
        %v7147 = vpop.f32.mrb[0].mxu0
        %v7148 = vadd.f32 %v6987, %v7147
        %v7149 = vpop.f32.mrb[0].mxu0
        %v7150 = vpop.f32.mrb[0].mxu0
        %v7151 = vadd.f32 %v6990, %v7150
        %v7152 = vpop.f32.mrb[0].mxu0
        %7153 = vmatprep.mubr.bf16.mxu0 0
        %7154 = vmatmul.mubr.bf16.gmra.mrb[0].mxu0 %v5784
        %v7155 = vpop.f32.mrb[0].mxu0
        %v7156 = vadd.f32 %v6995, %v7155
        %v7157 = vpop.f32.mrb[0].mxu0
        %v7158 = vpop.f32.mrb[0].mxu0
        %v7159 = vadd.f32 %v6998, %v7158
        %v7160 = vpop.f32.mrb[0].mxu0
        %7161 = vmatprep.mubr.bf16.mxu0 0
        %7162 = vmatmul.mubr.bf16.gmra.mrb[0].mxu0 %v5787
        %v7163 = vpop.f32.mrb[0].mxu0
        %v7164 = vadd.f32 %v7003, %v7163
        %v7165 = vpop.f32.mrb[0].mxu0
        %v7166 = vpop.f32.mrb[0].mxu0
        %v7167 = vadd.f32 %v7006, %v7166
        %v7168 = vpop.f32.mrb[0].mxu0
        %7169 = vmatprep.mubr.bf16.mxu0 0
        %7170 = vmatmul.mubr.bf16.gmra.mrb[0].mxu0 %v5790
        %v7171 = vpop.f32.mrb[0].mxu0
        %v7172 = vadd.f32 %v7011, %v7171
        %v7173 = vpop.f32.mrb[0].mxu0
        %v7174 = vpop.f32.mrb[0].mxu0
        %v7175 = vadd.f32 %v7014, %v7174
        %v7176 = vpop.f32.mrb[0].mxu0
        %7177 = vmatprep.mubr.bf16.mxu0 0
        %7178 = vmatmul.mubr.bf16.gmra.mrb[0].mxu0 %v5793
        %v7179 = vpop.f32.mrb[0].mxu0
        %v7180 = vadd.f32 %v7019, %v7179
        %v7181 = vpop.f32.mrb[0].mxu0
        %v7182 = vpop.f32.mrb[0].mxu0
        %v7183 = vadd.f32 %v7022, %v7182
        %v7184 = vpop.f32.mrb[0].mxu0
        %7185 = vmatprep.mubr.bf16.mxu0 0
        %7186 = vmatmul.mubr.bf16.gmra.mrb[0].mxu0 %v5796
        %v7187 = vpop.f32.mrb[0].mxu0
        %v7188 = vadd.f32 %v7027, %v7187
        %v7189 = vpop.f32.mrb[0].mxu0
        %v7190 = vpop.f32.mrb[0].mxu0
        %v7191 = vadd.f32 %v7030, %v7190
        %v7192 = vpop.f32.mrb[0].mxu0
        %7193 = vdwg.mxu0
        %v7194 = vlaneseq
        %v7195 = vshrl.u32 %v7194, 7
        %v7196 = vsub.s32 5, %v7195
        %v7197 = vrot.slane %v336, %v7196
        %v7198 = vmul.f32 %v7068, %v7197
        %v7199 = vmul.f32 %v7071, %v7197
        %v7200 = vmul.f32 %v7076, %v7197
        %v7201 = vmul.f32 %v7079, %v7197
        %v7202 = vmul.f32 %v7084, %v7197
        %v7203 = vmul.f32 %v7087, %v7197
        %v7204 = vmul.f32 %v7092, %v7197
        %v7205 = vmul.f32 %v7095, %v7197
        %v7206 = vmul.f32 %v7100, %v7197
        %v7207 = vmul.f32 %v7103, %v7197
        %v7208 = vmul.f32 %v7108, %v7197
        %v7209 = vmul.f32 %v7111, %v7197
        %v7210 = vmul.f32 %v7116, %v7197
        %v7211 = vmul.f32 %v7119, %v7197
        %v7212 = vmul.f32 %v7124, %v7197
        %v7213 = vmul.f32 %v7127, %v7197
        %v7214 = vmul.f32 %v7132, %v7197
        %v7215 = vmul.f32 %v7135, %v7197
        %v7216 = vmul.f32 %v7140, %v7197
        %v7217 = vmul.f32 %v7143, %v7197
        %v7218 = vmul.f32 %v7148, %v7197
        %v7219 = vmul.f32 %v7151, %v7197
        %v7220 = vmul.f32 %v7156, %v7197
        %v7221 = vmul.f32 %v7159, %v7197
        %v7222 = vmul.f32 %v7164, %v7197
        %v7223 = vmul.f32 %v7167, %v7197
        %v7224 = vmul.f32 %v7172, %v7197
        %v7225 = vmul.f32 %v7175, %v7197
        %v7226 = vmul.f32 %v7180, %v7197
        %v7227 = vmul.f32 %v7183, %v7197
        %v7228 = vmul.f32 %v7188, %v7197
        %v7229 = vmul.f32 %v7191, %v7197
        %v7230 = vlaneseq
        %v7231 = vshrl.u32 %v7230, 7
        %v7232 = vsub.s32 6, %v7231
        %v7233 = vrot.slane %v336, %v7232
        %v7234 = vadd.f32 %v7198, %v7233
        %v7235 = vadd.f32 %v7199, %v7233
        %v7236 = vadd.f32 %v7200, %v7233
        %v7237 = vadd.f32 %v7201, %v7233
        %v7238 = vadd.f32 %v7202, %v7233
        %v7239 = vadd.f32 %v7203, %v7233
        %v7240 = vadd.f32 %v7204, %v7233
        %v7241 = vadd.f32 %v7205, %v7233
        %v7242 = vadd.f32 %v7206, %v7233
        %v7243 = vadd.f32 %v7207, %v7233
        %v7244 = vadd.f32 %v7208, %v7233
        %v7245 = vadd.f32 %v7209, %v7233
        %v7246 = vadd.f32 %v7210, %v7233
        %v7247 = vadd.f32 %v7211, %v7233
        %v7248 = vadd.f32 %v7212, %v7233
        %v7249 = vadd.f32 %v7213, %v7233
        %v7250 = vadd.f32 %v7214, %v7233
        %v7251 = vadd.f32 %v7215, %v7233
        %v7252 = vadd.f32 %v7216, %v7233
        %v7253 = vadd.f32 %v7217, %v7233
        %v7254 = vadd.f32 %v7218, %v7233
        %v7255 = vadd.f32 %v7219, %v7233
        %v7256 = vadd.f32 %v7220, %v7233
        %v7257 = vadd.f32 %v7221, %v7233
        %v7258 = vadd.f32 %v7222, %v7233
        %v7259 = vadd.f32 %v7223, %v7233
        %v7260 = vadd.f32 %v7224, %v7233
        %v7261 = vadd.f32 %v7225, %v7233
        %v7262 = vadd.f32 %v7226, %v7233
        %v7263 = vadd.f32 %v7227, %v7233
        %v7264 = vadd.f32 %v7228, %v7233
        %v7265 = vadd.f32 %v7229, %v7233
        %v7266 = vadd.f32 %v7234, %v304
        %v7267 = vadd.f32 %v7235, %v305
        %v7268 = vadd.f32 %v7236, %v306
        %v7269 = vadd.f32 %v7237, %v307
        %v7270 = vadd.f32 %v7238, %v308
        %v7271 = vadd.f32 %v7239, %v309
        %v7272 = vadd.f32 %v7240, %v310
        %v7273 = vadd.f32 %v7241, %v311
        %v7274 = vadd.f32 %v7242, %v312
        %v7275 = vadd.f32 %v7243, %v313
        %v7276 = vadd.f32 %v7244, %v314
        %v7277 = vadd.f32 %v7245, %v315
        %v7278 = vadd.f32 %v7246, %v316
        %v7279 = vadd.f32 %v7247, %v317
        %v7280 = vadd.f32 %v7248, %v318
        %v7281 = vadd.f32 %v7249, %v319
        %v7282 = vadd.f32 %v7250, %v320
        %v7283 = vadd.f32 %v7251, %v321
        %v7284 = vadd.f32 %v7252, %v322
        %v7285 = vadd.f32 %v7253, %v323
        %v7286 = vadd.f32 %v7254, %v324
        %v7287 = vadd.f32 %v7255, %v325
        %v7288 = vadd.f32 %v7256, %v326
        %v7289 = vadd.f32 %v7257, %v327
        %v7290 = vadd.f32 %v7258, %v328
        %v7291 = vadd.f32 %v7259, %v329
        %v7292 = vadd.f32 %v7260, %v330
        %v7293 = vadd.f32 %v7261, %v331
        %v7294 = vadd.f32 %v7262, %v332
        %v7295 = vadd.f32 %v7263, %v333
        %v7296 = vadd.f32 %v7264, %v334
        %v7297 = vadd.f32 %v7265, %v335
        %7298 = vst [vmem:[%s244] sm:$0xff] %v7266
        %7299 = vst [vmem:[%s244 + $0x8] sm:$0xff] %v7267
        %7300 = vst [vmem:[%s244 + $0x10] sm:$0xff] %v7268
        %7301 = vst [vmem:[%s244 + $0x18] sm:$0xff] %v7269
        %7302 = vst [vmem:[%s244 + $0x20] sm:$0xff] %v7270
        %7303 = vst [vmem:[%s244 + $0x28] sm:$0xff] %v7271
        %7304 = vst [vmem:[%s244 + $0x30] sm:$0xff] %v7272
        %7305 = vst [vmem:[%s244 + $0x38] sm:$0xff] %v7273
        %7306 = vst [vmem:[%s244 + $0x40] sm:$0xff] %v7274
        %7307 = vst [vmem:[%s244 + $0x48] sm:$0xff] %v7275
        %7308 = vst [vmem:[%s244 + $0x50] sm:$0xff] %v7276
        %7309 = vst [vmem:[%s244 + $0x58] sm:$0xff] %v7277
        %7310 = vst [vmem:[%s244 + $0x60] sm:$0xff] %v7278
        %7311 = vst [vmem:[%s244 + $0x68] sm:$0xff] %v7279
        %7312 = vst [vmem:[%s244 + $0x70] sm:$0xff] %v7280
        %7313 = vst [vmem:[%s244 + $0x78] sm:$0xff] %v7281
        %7314 = vst [vmem:[%s244 + $0x80] sm:$0xff] %v7282
        %7315 = vst [vmem:[%s244 + $0x88] sm:$0xff] %v7283
        %7316 = vst [vmem:[%s244 + $0x90] sm:$0xff] %v7284
        %7317 = vst [vmem:[%s244 + $0x98] sm:$0xff] %v7285
        %7318 = vst [vmem:[%s244 + $0xa0] sm:$0xff] %v7286
        %7319 = vst [vmem:[%s244 + $0xa8] sm:$0xff] %v7287
        %7320 = vst [vmem:[%s244 + $0xb0] sm:$0xff] %v7288
        %7321 = vst [vmem:[%s244 + $0xb8] sm:$0xff] %v7289
        %7322 = vst [vmem:[%s244 + $0xc0] sm:$0xff] %v7290
        %7323 = vst [vmem:[%s244 + $0xc8] sm:$0xff] %v7291
        %7324 = vst [vmem:[%s244 + $0xd0] sm:$0xff] %v7292
        %7325 = vst [vmem:[%s244 + $0xd8] sm:$0xff] %v7293
        %7326 = vst [vmem:[%s244 + $0xe0] sm:$0xff] %v7294
        %7327 = vst [vmem:[%s244 + $0xe8] sm:$0xff] %v7295
        %7328 = vst [vmem:[%s244 + $0xf0] sm:$0xff] %v7296
        %7329 = vst [vmem:[%s244 + $0xf8] sm:$0xff] %v7297
        %s7330 = sand.u32 %s119, 1
        %s7331 = scalar_lea.sflag [#allocation5], %s7330
        %s7332 = sand.u32 %s119, 1
        %s7333 = smul.addr %s7332, 256
        %s7334 = scalar_lea.vmem [#allocation9], %s7333
        // Predicated region
        $region53: #{tpu_custom_call.1} parent=35 // pred_check
          %p7335 = pneg %p129
        $region54: #{tpu_custom_call.1} parent=35 // pred_check_branch
          %7337 = sbr.rel (%p7335) target = $region56
        $region55: #{tpu_custom_call.1} parent=35 // pred_region
          %s7339 = ssub.s32 4096, 4096
          %7340 = vsyncadd %s7331, %s7339
          %s7341 = smul.addr %s22, 32
          %s7342 = smul.addr %s7341, 128
          %s7343 = scalar_lea.hbm %s4, %s7342
          %s7344 = sshll.u32 %s7334, 4
          %s7345 = int_to_ptr.vmem [resolvable:$true] %s7344
          %7350 = dma.vmem_to_hbm [thread:$0]  %s7345, 4096, %s7343, %s7331, 128, 128, 8
        $region56: #{tpu_custom_call.1} parent=35 // pred_fallthru
          _
      $region36: #{tpu_custom_call.1} parent=5 // pred_fallthru
        _
      %p7351 = scmp.le.s32.totalorder 2, %s17
      // Predicated region
      $region57: #{tpu_custom_call.1} parent=5 // pred_check
        %p7352 = pneg %p7351
      $region58: #{tpu_custom_call.1} parent=5 // pred_check_branch
        %7354 = sbr.rel (%p7352) target = $region60
      $region59: #{tpu_custom_call.1} parent=5 // pred_region
        %s7355 = ssub.s32 %s17, 2
        // Predicated region
        $region61: #{tpu_custom_call.1} parent=59 // pred_check
          %p7356 = pneg %p135
        $region62: #{tpu_custom_call.1} parent=59 // pred_check_branch
          %7358 = sbr.rel (%p7356) target = $region64
        $region63: #{tpu_custom_call.1} parent=59 // pred_region
          %s7359 = sand.u32 %s120, 1
          %s7360 = scalar_lea.sflag [#allocation5], %s7359
          %s7361 = sand.u32 %s120, 1
          %s7362 = smul.addr %s7361, 256
          %s7363 = scalar_lea.vmem [#allocation9], %s7362
          %7364 = dma.done %s7360, 4096
        $region64: #{tpu_custom_call.1} parent=59 // pred_fallthru
          _
      $region60: #{tpu_custom_call.1} parent=5 // pred_fallthru
        _
    $region6: #{tpu_custom_call.1} parent=1 // loop_footer
      %s21 = sadd.s32 1, %s17
    $region7: #{tpu_custom_call.1} parent=1 // loop_footer_branch
      %16 = sbr.rel target = $region3
    $region8: #{tpu_custom_call.1} parent=1 // loop_exit
      _
    %7365 = vsyncpa [#allocation4], 1
    %s7366 = scalar_lea.sflag [#allocation4], 1
    %7367 = vsyncpa %s7366, 1
    %7368 = vsyncpa [#allocation7], 1
    %7369 = vsyncpa [#allocation5], 1
    %s7370 = scalar_lea.sflag [#allocation5], 1
    %7371 = vsyncpa %s7370, 1

</llo_original>
